<compile_context>
chip_gen: v6e
topology: v6e:2x2x1
jax: 0.10.0
libtpu: 0.0.40
codegen_flags: <defaults>
</compile_context>

<pallas_src>
import numpy as np

import jax
import jax.numpy as jnp
from jax.experimental import pallas as pl
from jax.experimental.pallas import tpu as pltpu


TR = 256  # relation-row tile (sublane aligned); R is bucketed to a multiple of TR

# meta lanes: 0=head word idx, 1=tail word idx, 2=head label, 3=tail label,
#             4=relation label, 5..7 unused padding
_META_W = 8


# ----------------------------------------------------------------------------
# Pallas kernel: gather + FFNN(head/tail) + BiAffine + per-tile CE partial sum
# ----------------------------------------------------------------------------
def _re_kernel(counts_ref,                                   # SMEM scalar prefetch (B,)
               meta_ref, hid_ref,
               w1h_ref, tabh_ref, b1h_ref, w2h_ref, b2h_ref,
               w1t_ref, tabt_ref, b1t_ref, w2t_ref, b2t_ref,
               wbil_ref, wlint_ref, blin_ref,
               logits_ref, loss_ref):
    f32 = jnp.float32
    bf16 = jnp.bfloat16
    b = pl.program_id(0)
    i = pl.program_id(1)
    tr = meta_ref.shape[1]
    count = counts_ref[b]                                    # true R for this doc

    @pl.when(i * tr < count)                                 # skip fully-padded tiles
    def _compute():
        meta = meta_ref[0]                                   # (tr, 8) int32
        hs = hid_ref[0]                                      # (n_words, H) bf16, doc-resident
        n_words = hs.shape[0]
        iota_words = jax.lax.broadcasted_iota(jnp.int32, (tr, n_words), 1)
        iota_lab = jax.lax.broadcasted_iota(jnp.int32, (tr, _META_W), 1)

        def project(idx_col, lab_col, w1, tab, b1, w2, b2):
            # one-hot MXU gather of hidden rows (exact: 0/1 * bf16)
            oh_rows = jnp.where(iota_words == idx_col, 1.0, 0.0).astype(bf16)
            oh_lab = jnp.where(iota_lab == lab_col, 1.0, 0.0).astype(bf16)
            x = jnp.dot(oh_rows, hs, preferred_element_type=f32).astype(bf16)
            # layer 1: x @ W1[:H] + onehot(label) @ (emb @ W1[H:]) + b1  (== concat path)
            h = (jnp.dot(x, w1[...], preferred_element_type=f32)
                 + jnp.dot(oh_lab, tab[...], preferred_element_type=f32)
                 + b1[...])
            h = jnp.maximum(h, 0.0).astype(bf16)
            # TODO(synk): Dropout treated as identity (inference mode); stochastic masks omitted.
            h2 = jnp.dot(h, w2[...], preferred_element_type=f32) + b2[...]
            return jnp.maximum(h2, 0.0)                      # (tr, H2) f32

        heads = project(meta[:, 0:1], meta[:, 2:3],
                        w1h_ref, tabh_ref, b1h_ref, w2h_ref, b2h_ref)
        tails = project(meta[:, 1:2], meta[:, 3:4],
                        w1t_ref, tabt_ref, b1t_ref, w2t_ref, b2t_ref)

        H2 = heads.shape[-1]
        # one stacked MXU matmul: heads @ [W_bil0 | W_bil1 | W_lin_head] -> (tr, 2*H2+2)
        hw = jnp.dot(heads.astype(bf16), wbil_ref[...], preferred_element_type=f32)
        blin = blin_ref[...]                                 # (1, 2) f32
        # tails-side linear term as VPU multiply + lane reduce (no N=2 matmul)
        lin_t0 = jnp.sum(tails * wlint_ref[0:1, :], axis=-1, keepdims=True)
        lin_t1 = jnp.sum(tails * wlint_ref[1:2, :], axis=-1, keepdims=True)
        l0 = (jnp.sum(hw[:, :H2] * tails, axis=-1, keepdims=True)
              + hw[:, 2 * H2:2 * H2 + 1] + lin_t0 + blin[:, 0:1])
        l1 = (jnp.sum(hw[:, H2:2 * H2] * tails, axis=-1, keepdims=True)
              + hw[:, 2 * H2 + 1:2 * H2 + 2] + lin_t1 + blin[:, 1:2])

        # lane-dense logits store: 2-wide logits placed into a 128-lane block
        lane = jax.lax.broadcasted_iota(jnp.int32, (tr, 128), 1)
        logits_ref[0] = jnp.where(lane == 0, l0, jnp.where(lane == 1, l1, 0.0))

        # per-row cross-entropy (2 classes, stable logsumexp), masked & /count,
        # reduced in-kernel to a per-tile partial sum (lane-dense (8,128) tile).
        m = jnp.maximum(l0, l1)
        lse = m + jnp.log(jnp.exp(l0 - m) + jnp.exp(l1 - m))
        lbl = meta[:, 4:5]
        picked = jnp.where(lbl == 1, l1, l0)
        ce = lse - picked                                    # (tr, 1)
        row = i * tr + jax.lax.broadcasted_iota(jnp.int32, ce.shape, 0)
        valid = row < count
        inv_count = 1.0 / jnp.maximum(count, 1).astype(f32)
        part = jnp.sum(jnp.where(valid, ce * inv_count, 0.0),
                       axis=0, keepdims=True)                # (1, 1)
        loss_ref[0, 0] = jnp.zeros((8, 128), f32) + part     # replicated, lane-dense

    @pl.when(i * tr >= count)
    def _skip():
        # logits for rows >= count are never read by the host; only the loss
        # partial must be defined for the wrapper's sum.
        loss_ref[0, 0] = jnp.zeros((8, 128), jnp.float32)


# ----------------------------------------------------------------------------
# pallas_call wrapper: one batched launch over grid=(B, R_pad // TR)
# ----------------------------------------------------------------------------
def re_decode_batched(counts, meta, hidden_bf16, W, tr=TR):
    B, R_pad, _ = meta.shape
    _, n_words, H = hidden_bf16.shape
    n_tiles = R_pad // tr

    meta_spec = pl.BlockSpec((1, tr, _META_W), lambda b, i, c: (b, i, 0))
    hid_spec = pl.BlockSpec((1, n_words, H), lambda b, i, c: (b, 0, 0))  # doc-resident

    def resident(x):  # full-array block, constant index_map -> stays VMEM-resident
        nd = x.ndim
        return pl.BlockSpec(x.shape, lambda b, i, c, _n=nd: (0,) * _n)

    wh, wt = W['head'], W['tail']
    weights = (wh['w1'], wh['tab'], wh['b1'], wh['w2'], wh['b2'],
               wt['w1'], wt['tab'], wt['b1'], wt['w2'], wt['b2'],
               W['wbil_ext'], W['wlin_t'], W['blin'])

    grid_spec = pltpu.PrefetchScalarGridSpec(
        num_scalar_prefetch=1,                     # counts -> SMEM, usable in kernel
        grid=(B, n_tiles),
        in_specs=[meta_spec, hid_spec] + [resident(w) for w in weights],
        out_specs=[pl.BlockSpec((1, tr, 128), lambda b, i, c: (b, i, 0)),
                   pl.BlockSpec((1, 1, 8, 128), lambda b, i, c: (b, i, 0, 0))],
    )

    logits_pad, loss_part = pl.pallas_call(
        _re_kernel,
        grid_spec=grid_spec,
        out_shape=(jax.ShapeDtypeStruct((B, R_pad, 128), jnp.float32),
                   jax.ShapeDtypeStruct((B, n_tiles, 8, 128), jnp.float32)),
        compiler_params=pltpu.CompilerParams(
            dimension_semantics=("parallel", "parallel")),
    )(counts, meta, hidden_bf16, *weights)
    return logits_pad, loss_part


# ----------------------------------------------------------------------------
# One-time weight preprocessing (bf16 cast, label-embedding fold, stacking)
# ----------------------------------------------------------------------------
def prepare_kernel_weights(params):
    bf16, f32 = jnp.bfloat16, jnp.float32
    H = params['head_w1'].shape[1]
    emb = params['entity_emb']                               # (3, H) f32

    def ffnn_pack(prefix):
        w1 = params[prefix + '_w1']                          # (2H, H)
        tab = jnp.matmul(emb, w1[H:, :])                     # (3, H): emb folded through layer 1
        tab = jnp.pad(tab, ((0, _META_W - tab.shape[0]), (0, 0)))  # pad to (8, H)
        return dict(w1=w1[:H, :].astype(bf16),
                    tab=tab.astype(bf16),
                    b1=params[prefix + '_b1'].astype(f32),
                    w2=params[prefix + '_w2'].astype(bf16),
                    b2=params[prefix + '_b2'].astype(f32))

    # stacked BiAffine RHS: [W_bil0 | W_bil1 | W_lin_head]  -> (H2, 2*H2 + 2)
    wbil_ext = jnp.concatenate(
        [params['bil_w'][0], params['bil_w'][1], params['lin_w_h']], axis=1)
    return dict(head=ffnn_pack('head'), tail=ffnn_pack('tail'),
                wbil_ext=wbil_ext.astype(bf16),
                wlin_t=params['lin_w_t'].T.astype(f32),      # (2, H2) for VPU reduce
                blin=params['lin_b'].astype(f32))


# ----------------------------------------------------------------------------
# Python glue replicating the PyTorch module's data-dependent logic
# ----------------------------------------------------------------------------
def build_relation(relations, entities):
    batch_size = len(relations)
    new_relations = []
    for b in range(batch_size):
        if len(entities[b]['start']) <= 2:
            entities[b] = {'end': [1, 1], 'label': [0, 0], 'start': [0, 0]}
        all_possible_relations = set(
            [(i, j)
             for i in range(len(entities[b]['label']))
             for j in range(len(entities[b]['label']))
             if entities[b]['label'][i] == 1 and entities[b]['label'][j] == 2])
        if len(all_possible_relations) == 0:
            all_possible_relations = set([(0, 1)])
        positive_relations = set(list(zip(relations[b]['head'], relations[b]['tail'])))
        negative_relations = all_possible_relations - positive_relations
        positive_relations = set([i for i in positive_relations if i in all_possible_relations])
        reordered_relations = sorted(positive_relations) + sorted(negative_relations)
        relation_per_doc = {
            'head': [i[0] for i in reordered_relations],
            'tail': [i[1] for i in reordered_relations],
            'label': [1] * len(positive_relations)
                     + [0] * (len(reordered_relations) - len(positive_relations)),
        }
        assert len(relation_per_doc['head']) != 0
        new_relations.append(relation_per_doc)
    return new_relations, entities


def get_predicted_relations(logits, relations, entities):
    pred_relations = []
    for i, pred_label in enumerate(np.argmax(logits, axis=-1)):
        if pred_label != 1:
            continue
        rel = {}
        rel['head_id'] = relations['head'][i]
        rel['head'] = (entities['start'][rel['head_id']], entities['end'][rel['head_id']])
        rel['head_type'] = entities['label'][rel['head_id']]
        rel['tail_id'] = relations['tail'][i]
        rel['tail'] = (entities['start'][rel['tail_id']], entities['end'][rel['tail_id']])
        rel['tail_type'] = entities['label'][rel['tail_id']]
        rel['type'] = 1
        pred_relations.append(rel)
    return pred_relations


def layoutlmv2_re_decoder_forward(params, hidden_states, entities, relations, tr=TR):
    B, max_n_words, H = hidden_states.shape
    relations, entities = build_relation(relations, entities)

    # Host-side packed int32 metadata, padded to a common R bucket.
    docs = []
    for b in range(B):
        head_e = np.asarray(relations[b]['head'], np.int32)
        tail_e = np.asarray(relations[b]['tail'], np.int32)
        lbls = np.asarray(relations[b]['label'], np.int32)
        e_start = np.asarray(entities[b]['start'], np.int32)
        e_lab = np.asarray(entities[b]['label'], np.int32)
        docs.append((e_start[head_e], e_lab[head_e], e_start[tail_e], e_lab[tail_e], lbls))

    counts = np.array([len(d[4]) for d in docs], np.int32)
    r_max = int(counts.max())
    R_pad = max(tr, ((r_max + tr - 1) // tr) * tr)

    meta = np.zeros((B, R_pad, _META_W), np.int32)
    for b, (hi, hl, ti, tl, lb) in enumerate(docs):
        r = len(lb)
        meta[b, :r, 0] = hi
        meta[b, :r, 1] = ti
        meta[b, :r, 2] = hl
        meta[b, :r, 3] = tl
        meta[b, :r, 4] = lb

    W = prepare_kernel_weights(params)

    logits_pad, loss_part = re_decode_batched(
        jnp.asarray(counts),
        jnp.asarray(meta),
        hidden_states.astype(jnp.bfloat16),
        W, tr=tr)

    # total loss = sum_b (mean CE over that doc's true relations);
    # padded tiles contribute exactly 0.
    total_loss = jnp.sum(loss_part[:, :, 0, 0])

    logits_np = np.asarray(logits_pad)[:, :, :2]
    all_pred_relations = []
    for b in range(B):
        pred = get_predicted_relations(logits_np[b, :counts[b]], relations[b], entities[b])
        all_pred_relations.append(pred)
    return total_loss, all_pred_relations


# ----------------------------------------------------------------------------
# Deterministic parameter init (shapes per module __init__; values synthetic)
# ----------------------------------------------------------------------------
def init_params(key, hidden_size):
    H = hidden_size
    H2 = H // 2
    ks = jax.random.split(key, 13)

    def u(k, shape, scale=0.2):
        return jax.random.uniform(k, shape, jnp.float32, -1.0, 1.0) * scale

    return {
        'entity_emb': u(ks[0], (3, H), 1.0),          # nn.Embedding(3, H)
        'head_w1': u(ks[1], (2 * H, H)),              # Linear(2H -> H)
        'head_b1': u(ks[2], (1, H)),
        'head_w2': u(ks[3], (H, H2)),                 # Linear(H -> H/2)
        'head_b2': u(ks[4], (1, H2)),
        'tail_w1': u(ks[5], (2 * H, H)),
        'tail_b1': u(ks[6], (1, H)),
        'tail_w2': u(ks[7], (H, H2)),
        'tail_b2': u(ks[8], (1, H2)),
        'bil_w': u(ks[9], (2, H2, H2)),               # nn.Bilinear(H/2, H/2, 2, bias=False)
        'lin_w_h': u(ks[10], (H2, 2)),                # nn.Linear(2*(H/2) -> 2), split in two
        'lin_w_t': u(ks[11], (H2, 2)),
        'lin_b': u(ks[12], (1, 2)),
    }


if __name__ == "__main__":
    hidden_size = 32
    batch_size = 2
    max_n_words = 8

    key = jax.random.PRNGKey(0)
    k_params, k_hs = jax.random.split(key)
    params = init_params(k_params, hidden_size)
    hidden_states = jax.random.normal(k_hs, (batch_size, max_n_words, hidden_size),
                                      dtype=jnp.float32)

    entities = [
        {'start': [0, 2, 4, 6], 'end': [1, 3, 5, 7], 'label': [1, 2, 1, 2]},
        {'start': [1, 3, 5],    'end': [2, 4, 6],    'label': [1, 2, 2]},
    ]
    relations = [
        {'head': [0], 'tail': [1]},
        {'head': [0], 'tail': [2]},
    ]

    loss, all_pred_relations = layoutlmv2_re_decoder_forward(
        params, hidden_states, entities, relations)
    jax.block_until_ready(loss)

    print("KERNEL_OK")
</pallas_src>

<mosaic_0001>
module attributes {stable_mosaic.version = 11 : i64} {
  func.func @_re_kernel(%arg0: i32, %arg1: i32, %arg2: memref<2xi32, #tpu.memory_space<smem>>, %arg3: memref<1x256x8xi32, #tpu.memory_space<vmem>>, %arg4: memref<1x8x32xbf16, #tpu.memory_space<vmem>>, %arg5: memref<32x32xbf16, #tpu.memory_space<vmem>>, %arg6: memref<8x32xbf16, #tpu.memory_space<vmem>>, %arg7: memref<1x32xf32, #tpu.memory_space<vmem>>, %arg8: memref<32x16xbf16, #tpu.memory_space<vmem>>, %arg9: memref<1x16xf32, #tpu.memory_space<vmem>>, %arg10: memref<32x32xbf16, #tpu.memory_space<vmem>>, %arg11: memref<8x32xbf16, #tpu.memory_space<vmem>>, %arg12: memref<1x32xf32, #tpu.memory_space<vmem>>, %arg13: memref<32x16xbf16, #tpu.memory_space<vmem>>, %arg14: memref<1x16xf32, #tpu.memory_space<vmem>>, %arg15: memref<16x34xbf16, #tpu.memory_space<vmem>>, %arg16: memref<2x16xf32, #tpu.memory_space<vmem>>, %arg17: memref<1x2xf32, #tpu.memory_space<vmem>>, %arg18: memref<1x256x128xf32, #tpu.memory_space<vmem>>, %arg19: memref<1x1x8x128xf32, #tpu.memory_space<vmem>>) attributes {dimension_semantics = [#tpu.dimension_semantics<parallel>, #tpu.dimension_semantics<parallel>], iteration_bounds = array<i64: 2, 1>, scalar_prefetch = 1 : i64, scratch_operands = 0 : i64, tpu.core_type = #tpu.core_type<tc>, window_params = [{transform_indices = @transform_0, window_bounds = array<i64: 1, 256, 8>}, {transform_indices = @transform_1, window_bounds = array<i64: 1, 8, 32>}, {pipeline_mode = #tpu.pipeline_mode<synchronous>, transform_indices = @transform_2, window_bounds = array<i64: 32, 32>}, {pipeline_mode = #tpu.pipeline_mode<synchronous>, transform_indices = @transform_3, window_bounds = array<i64: 8, 32>}, {pipeline_mode = #tpu.pipeline_mode<synchronous>, transform_indices = @transform_4, window_bounds = array<i64: 1, 32>}, {pipeline_mode = #tpu.pipeline_mode<synchronous>, transform_indices = @transform_5, window_bounds = array<i64: 32, 16>}, {pipeline_mode = #tpu.pipeline_mode<synchronous>, transform_indices = @transform_6, window_bounds = array<i64: 1, 16>}, {pipeline_mode = #tpu.pipeline_mode<synchronous>, transform_indices = @transform_7, window_bounds = array<i64: 32, 32>}, {pipeline_mode = #tpu.pipeline_mode<synchronous>, transform_indices = @transform_8, window_bounds = array<i64: 8, 32>}, {pipeline_mode = #tpu.pipeline_mode<synchronous>, transform_indices = @transform_9, window_bounds = array<i64: 1, 32>}, {pipeline_mode = #tpu.pipeline_mode<synchronous>, transform_indices = @transform_10, window_bounds = array<i64: 32, 16>}, {pipeline_mode = #tpu.pipeline_mode<synchronous>, transform_indices = @transform_11, window_bounds = array<i64: 1, 16>}, {pipeline_mode = #tpu.pipeline_mode<synchronous>, transform_indices = @transform_12, window_bounds = array<i64: 16, 34>}, {pipeline_mode = #tpu.pipeline_mode<synchronous>, transform_indices = @transform_13, window_bounds = array<i64: 2, 16>}, {pipeline_mode = #tpu.pipeline_mode<synchronous>, transform_indices = @transform_14, window_bounds = array<i64: 1, 2>}, {transform_indices = @transform_15, window_bounds = array<i64: 1, 256, 128>}, {transform_indices = @transform_16, window_bounds = array<i64: 1, 1, 8, 128>}]} {
    %0 = arith.index_cast %arg0 : i32 to index
    %1 = memref.load %arg2[%0] : memref<2xi32, #tpu.memory_space<smem>>
    %c256_i32 = arith.constant 256 : i32
    %2 = arith.muli %arg1, %c256_i32 : i32
    %3 = arith.cmpi slt, %2, %1 : i32
    %4 = arith.extui %3 : i1 to i32
    %c0_i32 = arith.constant 0 : i32
    %5 = arith.cmpi ne, %4, %c0_i32 : i32
    scf.if %5 {
      %c0 = arith.constant 0 : index
      %c0_2 = arith.constant 0 : index
      %c0_3 = arith.constant 0 : index
      %10 = vector.load %arg3[%c0, %c0_2, %c0_3] : memref<1x256x8xi32, #tpu.memory_space<vmem>>, vector<1x256x8xi32>
      %11 = vector.shape_cast %10 : vector<1x256x8xi32> to vector<256x8xi32>
      %c0_4 = arith.constant 0 : index
      %c0_5 = arith.constant 0 : index
      %c0_6 = arith.constant 0 : index
      %12 = vector.load %arg4[%c0_4, %c0_5, %c0_6] : memref<1x8x32xbf16, #tpu.memory_space<vmem>>, vector<1x8x32xbf16>
      %13 = vector.shape_cast %12 : vector<1x8x32xbf16> to vector<8x32xbf16>
      %14 = tpu.iota {dimensions = array<i32: 1>} : vector<256x8xi32>
      %15 = tpu.iota {dimensions = array<i32: 1>} : vector<256x8xi32>
      %16 = vector.extract_strided_slice %11 {offsets = [0, 0], sizes = [256, 1], strides = [1, 1]} : vector<256x8xi32> to vector<256x1xi32>
      %17 = vector.extract_strided_slice %11 {offsets = [0, 2], sizes = [256, 1], strides = [1, 1]} : vector<256x8xi32> to vector<256x1xi32>
      %18 = vector.broadcast %16 : vector<256x1xi32> to vector<256x8xi32>
      %19 = arith.cmpi eq, %14, %18 : vector<256x8xi32>
      %cst = arith.constant 1.000000e+00 : f32
      %cst_7 = arith.constant 0.000000e+00 : f32
      %20 = vector.broadcast %cst : f32 to vector<256x8xf32>
      %21 = vector.broadcast %cst_7 : f32 to vector<256x8xf32>
      %22 = arith.select %19, %20, %21 : vector<256x8xi1>, vector<256x8xf32>
      %23 = arith.truncf %22 : vector<256x8xf32> to vector<256x8xbf16>
      %24 = vector.broadcast %17 : vector<256x1xi32> to vector<256x8xi32>
      %25 = arith.cmpi eq, %15, %24 : vector<256x8xi32>
      %cst_8 = arith.constant 1.000000e+00 : f32
      %cst_9 = arith.constant 0.000000e+00 : f32
      %26 = vector.broadcast %cst_8 : f32 to vector<256x8xf32>
      %27 = vector.broadcast %cst_9 : f32 to vector<256x8xf32>
      %28 = arith.select %25, %26, %27 : vector<256x8xi1>, vector<256x8xf32>
      %29 = arith.truncf %28 : vector<256x8xf32> to vector<256x8xbf16>
      %cst_10 = arith.constant dense<0.000000e+00> : vector<256x32xf32>
      %30 = tpu.matmul %23, %13, %cst_10 {dimension_numbers = #tpu.dot_dimension_numbers<[1], [0], [0], [1], [0, 0, 1, 1], [], []>} : vector<256x8xbf16>, vector<8x32xbf16>, vector<256x32xf32> -> vector<256x32xf32>
      %31 = arith.truncf %30 : vector<256x32xf32> to vector<256x32xbf16>
      %c0_11 = arith.constant 0 : index
      %c0_12 = arith.constant 0 : index
      %32 = vector.load %arg5[%c0_11, %c0_12] : memref<32x32xbf16, #tpu.memory_space<vmem>>, vector<32x32xbf16>
      %cst_13 = arith.constant dense<0.000000e+00> : vector<256x32xf32>
      %33 = tpu.matmul %31, %32, %cst_13 {dimension_numbers = #tpu.dot_dimension_numbers<[1], [0], [0], [1], [0, 0, 1, 1], [], []>} : vector<256x32xbf16>, vector<32x32xbf16>, vector<256x32xf32> -> vector<256x32xf32>
      %c0_14 = arith.constant 0 : index
      %c0_15 = arith.constant 0 : index
      %34 = vector.load %arg6[%c0_14, %c0_15] : memref<8x32xbf16, #tpu.memory_space<vmem>>, vector<8x32xbf16>
      %cst_16 = arith.constant dense<0.000000e+00> : vector<256x32xf32>
      %35 = tpu.matmul %29, %34, %cst_16 {dimension_numbers = #tpu.dot_dimension_numbers<[1], [0], [0], [1], [0, 0, 1, 1], [], []>} : vector<256x8xbf16>, vector<8x32xbf16>, vector<256x32xf32> -> vector<256x32xf32>
      %36 = arith.addf %33, %35 : vector<256x32xf32>
      %c0_17 = arith.constant 0 : index
      %c0_18 = arith.constant 0 : index
      %37 = vector.load %arg7[%c0_17, %c0_18] : memref<1x32xf32, #tpu.memory_space<vmem>>, vector<1x32xf32>
      %38 = vector.broadcast %37 : vector<1x32xf32> to vector<256x32xf32>
      %39 = arith.addf %36, %38 : vector<256x32xf32>
      %cst_19 = arith.constant 0.000000e+00 : f32
      %40 = vector.broadcast %cst_19 : f32 to vector<256x32xf32>
      %41 = arith.maximumf %39, %40 : vector<256x32xf32>
      %42 = arith.truncf %41 : vector<256x32xf32> to vector<256x32xbf16>
      %c0_20 = arith.constant 0 : index
      %c0_21 = arith.constant 0 : index
      %43 = vector.load %arg8[%c0_20, %c0_21] : memref<32x16xbf16, #tpu.memory_space<vmem>>, vector<32x16xbf16>
      %cst_22 = arith.constant dense<0.000000e+00> : vector<256x16xf32>
      %44 = tpu.matmul %42, %43, %cst_22 {dimension_numbers = #tpu.dot_dimension_numbers<[1], [0], [0], [1], [0, 0, 1, 1], [], []>} : vector<256x32xbf16>, vector<32x16xbf16>, vector<256x16xf32> -> vector<256x16xf32>
      %c0_23 = arith.constant 0 : index
      %c0_24 = arith.constant 0 : index
      %45 = vector.load %arg9[%c0_23, %c0_24] : memref<1x16xf32, #tpu.memory_space<vmem>>, vector<1x16xf32>
      %46 = vector.broadcast %45 : vector<1x16xf32> to vector<256x16xf32>
      %47 = arith.addf %44, %46 : vector<256x16xf32>
      %cst_25 = arith.constant 0.000000e+00 : f32
      %48 = vector.broadcast %cst_25 : f32 to vector<256x16xf32>
      %49 = arith.maximumf %47, %48 : vector<256x16xf32>
      %50 = vector.extract_strided_slice %11 {offsets = [0, 1], sizes = [256, 1], strides = [1, 1]} : vector<256x8xi32> to vector<256x1xi32>
      %51 = vector.extract_strided_slice %11 {offsets = [0, 3], sizes = [256, 1], strides = [1, 1]} : vector<256x8xi32> to vector<256x1xi32>
      %52 = vector.broadcast %50 : vector<256x1xi32> to vector<256x8xi32>
      %53 = arith.cmpi eq, %14, %52 : vector<256x8xi32>
      %cst_26 = arith.constant 1.000000e+00 : f32
      %cst_27 = arith.constant 0.000000e+00 : f32
      %54 = vector.broadcast %cst_26 : f32 to vector<256x8xf32>
      %55 = vector.broadcast %cst_27 : f32 to vector<256x8xf32>
      %56 = arith.select %53, %54, %55 : vector<256x8xi1>, vector<256x8xf32>
      %57 = arith.truncf %56 : vector<256x8xf32> to vector<256x8xbf16>
      %58 = vector.broadcast %51 : vector<256x1xi32> to vector<256x8xi32>
      %59 = arith.cmpi eq, %15, %58 : vector<256x8xi32>
      %cst_28 = arith.constant 1.000000e+00 : f32
      %cst_29 = arith.constant 0.000000e+00 : f32
      %60 = vector.broadcast %cst_28 : f32 to vector<256x8xf32>
      %61 = vector.broadcast %cst_29 : f32 to vector<256x8xf32>
      %62 = arith.select %59, %60, %61 : vector<256x8xi1>, vector<256x8xf32>
      %63 = arith.truncf %62 : vector<256x8xf32> to vector<256x8xbf16>
      %cst_30 = arith.constant dense<0.000000e+00> : vector<256x32xf32>
      %64 = tpu.matmul %57, %13, %cst_30 {dimension_numbers = #tpu.dot_dimension_numbers<[1], [0], [0], [1], [0, 0, 1, 1], [], []>} : vector<256x8xbf16>, vector<8x32xbf16>, vector<256x32xf32> -> vector<256x32xf32>
      %65 = arith.truncf %64 : vector<256x32xf32> to vector<256x32xbf16>
      %c0_31 = arith.constant 0 : index
      %c0_32 = arith.constant 0 : index
      %66 = vector.load %arg10[%c0_31, %c0_32] : memref<32x32xbf16, #tpu.memory_space<vmem>>, vector<32x32xbf16>
      %cst_33 = arith.constant dense<0.000000e+00> : vector<256x32xf32>
      %67 = tpu.matmul %65, %66, %cst_33 {dimension_numbers = #tpu.dot_dimension_numbers<[1], [0], [0], [1], [0, 0, 1, 1], [], []>} : vector<256x32xbf16>, vector<32x32xbf16>, vector<256x32xf32> -> vector<256x32xf32>
      %c0_34 = arith.constant 0 : index
      %c0_35 = arith.constant 0 : index
      %68 = vector.load %arg11[%c0_34, %c0_35] : memref<8x32xbf16, #tpu.memory_space<vmem>>, vector<8x32xbf16>
      %cst_36 = arith.constant dense<0.000000e+00> : vector<256x32xf32>
      %69 = tpu.matmul %63, %68, %cst_36 {dimension_numbers = #tpu.dot_dimension_numbers<[1], [0], [0], [1], [0, 0, 1, 1], [], []>} : vector<256x8xbf16>, vector<8x32xbf16>, vector<256x32xf32> -> vector<256x32xf32>
      %70 = arith.addf %67, %69 : vector<256x32xf32>
      %c0_37 = arith.constant 0 : index
      %c0_38 = arith.constant 0 : index
      %71 = vector.load %arg12[%c0_37, %c0_38] : memref<1x32xf32, #tpu.memory_space<vmem>>, vector<1x32xf32>
      %72 = vector.broadcast %71 : vector<1x32xf32> to vector<256x32xf32>
      %73 = arith.addf %70, %72 : vector<256x32xf32>
      %cst_39 = arith.constant 0.000000e+00 : f32
      %74 = vector.broadcast %cst_39 : f32 to vector<256x32xf32>
      %75 = arith.maximumf %73, %74 : vector<256x32xf32>
      %76 = arith.truncf %75 : vector<256x32xf32> to vector<256x32xbf16>
      %c0_40 = arith.constant 0 : index
      %c0_41 = arith.constant 0 : index
      %77 = vector.load %arg13[%c0_40, %c0_41] : memref<32x16xbf16, #tpu.memory_space<vmem>>, vector<32x16xbf16>
      %cst_42 = arith.constant dense<0.000000e+00> : vector<256x16xf32>
      %78 = tpu.matmul %76, %77, %cst_42 {dimension_numbers = #tpu.dot_dimension_numbers<[1], [0], [0], [1], [0, 0, 1, 1], [], []>} : vector<256x32xbf16>, vector<32x16xbf16>, vector<256x16xf32> -> vector<256x16xf32>
      %c0_43 = arith.constant 0 : index
      %c0_44 = arith.constant 0 : index
      %79 = vector.load %arg14[%c0_43, %c0_44] : memref<1x16xf32, #tpu.memory_space<vmem>>, vector<1x16xf32>
      %80 = vector.broadcast %79 : vector<1x16xf32> to vector<256x16xf32>
      %81 = arith.addf %78, %80 : vector<256x16xf32>
      %cst_45 = arith.constant 0.000000e+00 : f32
      %82 = vector.broadcast %cst_45 : f32 to vector<256x16xf32>
      %83 = arith.maximumf %81, %82 : vector<256x16xf32>
      %84 = arith.truncf %49 : vector<256x16xf32> to vector<256x16xbf16>
      %c0_46 = arith.constant 0 : index
      %c0_47 = arith.constant 0 : index
      %85 = vector.load %arg15[%c0_46, %c0_47] : memref<16x34xbf16, #tpu.memory_space<vmem>>, vector<16x34xbf16>
      %cst_48 = arith.constant dense<0.000000e+00> : vector<256x34xf32>
      %86 = tpu.matmul %84, %85, %cst_48 {dimension_numbers = #tpu.dot_dimension_numbers<[1], [0], [0], [1], [0, 0, 1, 1], [], []>} : vector<256x16xbf16>, vector<16x34xbf16>, vector<256x34xf32> -> vector<256x34xf32>
      %c0_49 = arith.constant 0 : index
      %c0_50 = arith.constant 0 : index
      %87 = vector.load %arg17[%c0_49, %c0_50] : memref<1x2xf32, #tpu.memory_space<vmem>>, vector<1x2xf32>
      %c0_51 = arith.constant 0 : index
      %c0_52 = arith.constant 0 : index
      %88 = vector.load %arg16[%c0_51, %c0_52] : memref<2x16xf32, #tpu.memory_space<vmem>>, vector<1x16xf32>
      %89 = vector.broadcast %88 : vector<1x16xf32> to vector<256x16xf32>
      %90 = arith.mulf %83, %89 : vector<256x16xf32>
      %cst_53 = arith.constant dense<0.000000e+00> : vector<256xf32>
      %91 = vector.multi_reduction <add>, %90, %cst_53 [1] : vector<256x16xf32> to vector<256xf32>
      %92 = vector.shape_cast %91 : vector<256xf32> to vector<256x1xf32>
      %c1 = arith.constant 1 : index
      %c0_54 = arith.constant 0 : index
      %93 = vector.load %arg16[%c1, %c0_54] : memref<2x16xf32, #tpu.memory_space<vmem>>, vector<1x16xf32>
      %94 = vector.broadcast %93 : vector<1x16xf32> to vector<256x16xf32>
      %95 = arith.mulf %83, %94 : vector<256x16xf32>
      %cst_55 = arith.constant dense<0.000000e+00> : vector<256xf32>
      %96 = vector.multi_reduction <add>, %95, %cst_55 [1] : vector<256x16xf32> to vector<256xf32>
      %97 = vector.shape_cast %96 : vector<256xf32> to vector<256x1xf32>
      %98 = vector.extract_strided_slice %86 {offsets = [0, 0], sizes = [256, 16], strides = [1, 1]} : vector<256x34xf32> to vector<256x16xf32>
      %99 = arith.mulf %98, %83 : vector<256x16xf32>
      %cst_56 = arith.constant dense<0.000000e+00> : vector<256xf32>
      %100 = vector.multi_reduction <add>, %99, %cst_56 [1] : vector<256x16xf32> to vector<256xf32>
      %101 = vector.shape_cast %100 : vector<256xf32> to vector<256x1xf32>
      %102 = vector.extract_strided_slice %86 {offsets = [0, 32], sizes = [256, 1], strides = [1, 1]} : vector<256x34xf32> to vector<256x1xf32>
      %103 = arith.addf %101, %102 : vector<256x1xf32>
      %104 = arith.addf %103, %92 : vector<256x1xf32>
      %105 = vector.extract_strided_slice %87 {offsets = [0, 0], sizes = [1, 1], strides = [1, 1]} : vector<1x2xf32> to vector<1x1xf32>
      %106 = vector.broadcast %105 : vector<1x1xf32> to vector<256x1xf32>
      %107 = arith.addf %104, %106 : vector<256x1xf32>
      %108 = vector.extract_strided_slice %86 {offsets = [0, 16], sizes = [256, 16], strides = [1, 1]} : vector<256x34xf32> to vector<256x16xf32>
      %109 = arith.mulf %108, %83 : vector<256x16xf32>
      %cst_57 = arith.constant dense<0.000000e+00> : vector<256xf32>
      %110 = vector.multi_reduction <add>, %109, %cst_57 [1] : vector<256x16xf32> to vector<256xf32>
      %111 = vector.shape_cast %110 : vector<256xf32> to vector<256x1xf32>
      %112 = vector.extract_strided_slice %86 {offsets = [0, 33], sizes = [256, 1], strides = [1, 1]} : vector<256x34xf32> to vector<256x1xf32>
      %113 = arith.addf %111, %112 : vector<256x1xf32>
      %114 = arith.addf %113, %97 : vector<256x1xf32>
      %115 = vector.extract_strided_slice %87 {offsets = [0, 1], sizes = [1, 1], strides = [1, 1]} : vector<1x2xf32> to vector<1x1xf32>
      %116 = vector.broadcast %115 : vector<1x1xf32> to vector<256x1xf32>
      %117 = arith.addf %114, %116 : vector<256x1xf32>
      %118 = tpu.iota {dimensions = array<i32: 1>} : vector<256x128xi32>
      %c0_i32_58 = arith.constant 0 : i32
      %119 = vector.broadcast %c0_i32_58 : i32 to vector<256x128xi32>
      %120 = arith.cmpi eq, %118, %119 : vector<256x128xi32>
      %c1_i32 = arith.constant 1 : i32
      %121 = vector.broadcast %c1_i32 : i32 to vector<256x128xi32>
      %122 = arith.cmpi eq, %118, %121 : vector<256x128xi32>
      %cst_59 = arith.constant 0.000000e+00 : f32
      %123 = vector.shape_cast %117 : vector<256x1xf32> to vector<256x1xf32>
      %124 = vector.broadcast %123 : vector<256x1xf32> to vector<256x128xf32>
      %125 = vector.broadcast %cst_59 : f32 to vector<256x128xf32>
      %126 = arith.select %122, %124, %125 : vector<256x128xi1>, vector<256x128xf32>
      %127 = vector.shape_cast %107 : vector<256x1xf32> to vector<256x1xf32>
      %128 = vector.broadcast %127 : vector<256x1xf32> to vector<256x128xf32>
      %129 = arith.select %120, %128, %126 : vector<256x128xi1>, vector<256x128xf32>
      %c0_60 = arith.constant 0 : index
      %c0_61 = arith.constant 0 : index
      %c0_62 = arith.constant 0 : index
      %130 = vector.load %arg18[%c0_60, %c0_61, %c0_62] : memref<1x256x128xf32, #tpu.memory_space<vmem>>, vector<1x256x128xf32>
      %131 = vector.shape_cast %130 : vector<1x256x128xf32> to vector<256x128xf32>
      %132 = vector.shape_cast %129 : vector<256x128xf32> to vector<1x256x128xf32>
      tpu.vector_store %arg18[%c0_60, %c0_61, %c0_62], %132 {strides = array<i32>} : memref<1x256x128xf32, #tpu.memory_space<vmem>>, vector<1x256x128xf32>,
      %133 = arith.maximumf %107, %117 : vector<256x1xf32>
      %134 = arith.subf %107, %133 : vector<256x1xf32>
      %135 = math.exp %134 : vector<256x1xf32>
      %136 = arith.subf %117, %133 : vector<256x1xf32>
      %137 = math.exp %136 : vector<256x1xf32>
      %138 = arith.addf %135, %137 : vector<256x1xf32>
      %139 = math.log %138 : vector<256x1xf32>
      %140 = arith.addf %133, %139 : vector<256x1xf32>
      %141 = vector.extract_strided_slice %11 {offsets = [0, 4], sizes = [256, 1], strides = [1, 1]} : vector<256x8xi32> to vector<256x1xi32>
      %c1_i32_63 = arith.constant 1 : i32
      %142 = vector.broadcast %c1_i32_63 : i32 to vector<256x1xi32>
      %143 = arith.cmpi eq, %141, %142 : vector<256x1xi32>
      %144 = arith.select %143, %117, %107 : vector<256x1xi1>, vector<256x1xf32>
      %145 = arith.subf %140, %144 : vector<256x1xf32>
      %c256_i32_64 = arith.constant 256 : i32
      %146 = arith.muli %arg1, %c256_i32_64 : i32
      %147 = tpu.iota {dimensions = array<i32: 0>} : vector<256x1xi32>
      %148 = vector.broadcast %146 : i32 to vector<256x1xi32>
      %149 = arith.addi %148, %147 : vector<256x1xi32>
      %150 = vector.broadcast %1 : i32 to vector<256x1xi32>
      %151 = arith.cmpi slt, %149, %150 : vector<256x1xi32>
      %c1_i32_65 = arith.constant 1 : i32
      %152 = arith.maxsi %1, %c1_i32_65 : i32
      %153 = arith.sitofp %152 : i32 to f32
      %cst_66 = arith.constant 1.000000e+00 : f32
      %154 = arith.divf %cst_66, %153 : f32
      %155 = vector.broadcast %154 : f32 to vector<256x1xf32>
      %156 = arith.mulf %145, %155 : vector<256x1xf32>
      %cst_67 = arith.constant 0.000000e+00 : f32
      %157 = vector.broadcast %cst_67 : f32 to vector<256x1xf32>
      %158 = arith.select %151, %156, %157 : vector<256x1xi1>, vector<256x1xf32>
      %cst_68 = arith.constant dense<0.000000e+00> : vector<1xf32>
      %159 = vector.multi_reduction <add>, %158, %cst_68 [0] : vector<256x1xf32> to vector<1xf32>
      %160 = vector.shape_cast %159 : vector<1xf32> to vector<1x1xf32>
      %cst_69 = arith.constant 0.000000e+00 : f32
      %161 = vector.broadcast %cst_69 : f32 to vector<8x128xf32>
      %162 = vector.broadcast %160 : vector<1x1xf32> to vector<8x128xf32>
      %163 = arith.addf %161, %162 : vector<8x128xf32>
      %c0_70 = arith.constant 0 : index
      %c0_71 = arith.constant 0 : index
      %c0_72 = arith.constant 0 : index
      %c0_73 = arith.constant 0 : index
      %164 = vector.load %arg19[%c0_70, %c0_71, %c0_72, %c0_73] : memref<1x1x8x128xf32, #tpu.memory_space<vmem>>, vector<1x1x8x128xf32>
      %165 = vector.shape_cast %164 : vector<1x1x8x128xf32> to vector<8x128xf32>
      %166 = vector.shape_cast %163 : vector<8x128xf32> to vector<1x1x8x128xf32>
      tpu.vector_store %arg19[%c0_70, %c0_71, %c0_72, %c0_73], %166 {strides = array<i32>} : memref<1x1x8x128xf32, #tpu.memory_space<vmem>>, vector<1x1x8x128xf32>,
    } else {
    }
    %c256_i32_0 = arith.constant 256 : i32
    %6 = arith.muli %arg1, %c256_i32_0 : i32
    %7 = arith.cmpi sge, %6, %1 : i32
    %8 = arith.extui %7 : i1 to i32
    %c0_i32_1 = arith.constant 0 : i32
    %9 = arith.cmpi ne, %8, %c0_i32_1 : i32
    scf.if %9 {
      %cst = arith.constant 0.000000e+00 : f32
      %10 = vector.broadcast %cst : f32 to vector<8x128xf32>
      %c0 = arith.constant 0 : index
      %c0_2 = arith.constant 0 : index
      %c0_3 = arith.constant 0 : index
      %c0_4 = arith.constant 0 : index
      %11 = vector.load %arg19[%c0, %c0_2, %c0_3, %c0_4] : memref<1x1x8x128xf32, #tpu.memory_space<vmem>>, vector<1x1x8x128xf32>
      %12 = vector.shape_cast %11 : vector<1x1x8x128xf32> to vector<8x128xf32>
      %13 = vector.shape_cast %10 : vector<8x128xf32> to vector<1x1x8x128xf32>
      tpu.vector_store %arg19[%c0, %c0_2, %c0_3, %c0_4], %13 {strides = array<i32>} : memref<1x1x8x128xf32, #tpu.memory_space<vmem>>, vector<1x1x8x128xf32>,
    } else {
    }
    return
  }
  func.func @transform_0(%arg0: i32, %arg1: i32, %arg2: memref<2xi32, #tpu.memory_space<smem>>) -> (i32, i32, i32) {
    %c0_i32 = arith.constant 0 : i32
    %c0_i32_0 = arith.constant 0 : i32
    return %arg0, %arg1, %c0_i32 : i32, i32, i32
  }
  func.func @transform_1(%arg0: i32, %arg1: i32, %arg2: memref<2xi32, #tpu.memory_space<smem>>) -> (i32, i32, i32) {
    %c0_i32 = arith.constant 0 : i32
    %c0_i32_0 = arith.constant 0 : i32
    %c0_i32_1 = arith.constant 0 : i32
    return %arg0, %c0_i32, %c0_i32_0 : i32, i32, i32
  }
  func.func @transform_2(%arg0: i32, %arg1: i32, %arg2: memref<2xi32, #tpu.memory_space<smem>>) -> (i32, i32) {
    %c0_i32 = arith.constant 0 : i32
    %c0_i32_0 = arith.constant 0 : i32
    %c0_i32_1 = arith.constant 0 : i32
    return %c0_i32, %c0_i32_0 : i32, i32
  }
  func.func @transform_3(%arg0: i32, %arg1: i32, %arg2: memref<2xi32, #tpu.memory_space<smem>>) -> (i32, i32) {
    %c0_i32 = arith.constant 0 : i32
    %c0_i32_0 = arith.constant 0 : i32
    %c0_i32_1 = arith.constant 0 : i32
    return %c0_i32, %c0_i32_0 : i32, i32
  }
  func.func @transform_4(%arg0: i32, %arg1: i32, %arg2: memref<2xi32, #tpu.memory_space<smem>>) -> (i32, i32) {
    %c0_i32 = arith.constant 0 : i32
    %c0_i32_0 = arith.constant 0 : i32
    %c0_i32_1 = arith.constant 0 : i32
    return %c0_i32, %c0_i32_0 : i32, i32
  }
  func.func @transform_5(%arg0: i32, %arg1: i32, %arg2: memref<2xi32, #tpu.memory_space<smem>>) -> (i32, i32) {
    %c0_i32 = arith.constant 0 : i32
    %c0_i32_0 = arith.constant 0 : i32
    %c0_i32_1 = arith.constant 0 : i32
    return %c0_i32, %c0_i32_0 : i32, i32
  }
  func.func @transform_6(%arg0: i32, %arg1: i32, %arg2: memref<2xi32, #tpu.memory_space<smem>>) -> (i32, i32) {
    %c0_i32 = arith.constant 0 : i32
    %c0_i32_0 = arith.constant 0 : i32
    %c0_i32_1 = arith.constant 0 : i32
    return %c0_i32, %c0_i32_0 : i32, i32
  }
  func.func @transform_7(%arg0: i32, %arg1: i32, %arg2: memref<2xi32, #tpu.memory_space<smem>>) -> (i32, i32) {
    %c0_i32 = arith.constant 0 : i32
    %c0_i32_0 = arith.constant 0 : i32
    %c0_i32_1 = arith.constant 0 : i32
    return %c0_i32, %c0_i32_0 : i32, i32
  }
  func.func @transform_8(%arg0: i32, %arg1: i32, %arg2: memref<2xi32, #tpu.memory_space<smem>>) -> (i32, i32) {
    %c0_i32 = arith.constant 0 : i32
    %c0_i32_0 = arith.constant 0 : i32
    %c0_i32_1 = arith.constant 0 : i32
    return %c0_i32, %c0_i32_0 : i32, i32
  }
  func.func @transform_9(%arg0: i32, %arg1: i32, %arg2: memref<2xi32, #tpu.memory_space<smem>>) -> (i32, i32) {
    %c0_i32 = arith.constant 0 : i32
    %c0_i32_0 = arith.constant 0 : i32
    %c0_i32_1 = arith.constant 0 : i32
    return %c0_i32, %c0_i32_0 : i32, i32
  }
  func.func @transform_10(%arg0: i32, %arg1: i32, %arg2: memref<2xi32, #tpu.memory_space<smem>>) -> (i32, i32) {
    %c0_i32 = arith.constant 0 : i32
    %c0_i32_0 = arith.constant 0 : i32
    %c0_i32_1 = arith.constant 0 : i32
    return %c0_i32, %c0_i32_0 : i32, i32
  }
  func.func @transform_11(%arg0: i32, %arg1: i32, %arg2: memref<2xi32, #tpu.memory_space<smem>>) -> (i32, i32) {
    %c0_i32 = arith.constant 0 : i32
    %c0_i32_0 = arith.constant 0 : i32
    %c0_i32_1 = arith.constant 0 : i32
    return %c0_i32, %c0_i32_0 : i32, i32
  }
  func.func @transform_12(%arg0: i32, %arg1: i32, %arg2: memref<2xi32, #tpu.memory_space<smem>>) -> (i32, i32) {
    %c0_i32 = arith.constant 0 : i32
    %c0_i32_0 = arith.constant 0 : i32
    %c0_i32_1 = arith.constant 0 : i32
    return %c0_i32, %c0_i32_0 : i32, i32
  }
  func.func @transform_13(%arg0: i32, %arg1: i32, %arg2: memref<2xi32, #tpu.memory_space<smem>>) -> (i32, i32) {
    %c0_i32 = arith.constant 0 : i32
    %c0_i32_0 = arith.constant 0 : i32
    %c0_i32_1 = arith.constant 0 : i32
    return %c0_i32, %c0_i32_0 : i32, i32
  }
  func.func @transform_14(%arg0: i32, %arg1: i32, %arg2: memref<2xi32, #tpu.memory_space<smem>>) -> (i32, i32) {
    %c0_i32 = arith.constant 0 : i32
    %c0_i32_0 = arith.constant 0 : i32
    %c0_i32_1 = arith.constant 0 : i32
    return %c0_i32, %c0_i32_0 : i32, i32
  }
  func.func @transform_15(%arg0: i32, %arg1: i32, %arg2: memref<2xi32, #tpu.memory_space<smem>>) -> (i32, i32, i32) {
    %c0_i32 = arith.constant 0 : i32
    %c0_i32_0 = arith.constant 0 : i32
    return %arg0, %arg1, %c0_i32 : i32, i32, i32
  }
  func.func @transform_16(%arg0: i32, %arg1: i32, %arg2: memref<2xi32, #tpu.memory_space<smem>>) -> (i32, i32, i32, i32) {
    %c0_i32 = arith.constant 0 : i32
    %c0_i32_0 = arith.constant 0 : i32
    %c0_i32_1 = arith.constant 0 : i32
    return %arg0, %arg1, %c0_i32, %c0_i32_0 : i32, i32, i32, i32
  }
}

</mosaic_0001>

<llo_original>
// kernel: tpu_custom_call.1
$region0: #{tpu_custom_call.1}
  #allocation0 [shape = 'u32[]', space=smem, size = 0x4, offset = 0x4, fixed_abs, tag = 'smem constant byte address 0x4 - core index']
  #allocation1 [shape = 'u32[144,128]{1,0:T(1,128)}', space=vmem, size = 0x12000, scoped, tag = 'internal scratch']
  #allocation2 [shape = 's32[1]{0}', space=sflag, size = 0x4, scoped, tag = 'scoped memory for tpu_custom_call.1']
  #allocation3 [shape = 'u8[512]{0}', space=smem, size = 0x200, scoped, tag = 'prefetched SMEM operand 0']
  %s0 = inlined_call_operand.vmem [shape: s32[2], index: 0, kind: input, shape index: {}]
  %s1 = inlined_call_operand.vmem [shape: s32[2,256,8], index: 1, kind: input, shape index: {}]
  %s2 = inlined_call_operand.vmem [shape: bf16[2,8,32], index: 2, kind: input, shape index: {}]
  %s3 = inlined_call_operand.vmem [shape: bf16[32,32], index: 3, kind: input, shape index: {}]
  %s4 = inlined_call_operand.vmem [shape: bf16[8,32], index: 4, kind: input, shape index: {}]
  %s5 = inlined_call_operand.vmem [shape: f32[1,32], index: 5, kind: input, shape index: {}]
  %s6 = inlined_call_operand.vmem [shape: bf16[32,16], index: 6, kind: input, shape index: {}]
  %s7 = inlined_call_operand.vmem [shape: f32[1,16], index: 7, kind: input, shape index: {}]
  %s8 = inlined_call_operand.vmem [shape: bf16[32,32], index: 8, kind: input, shape index: {}]
  %s9 = inlined_call_operand.vmem [shape: bf16[8,32], index: 9, kind: input, shape index: {}]
  %s10 = inlined_call_operand.vmem [shape: f32[1,32], index: 10, kind: input, shape index: {}]
  %s11 = inlined_call_operand.vmem [shape: bf16[32,16], index: 11, kind: input, shape index: {}]
  %s12 = inlined_call_operand.vmem [shape: f32[1,16], index: 12, kind: input, shape index: {}]
  %s13 = inlined_call_operand.vmem [shape: bf16[16,34], index: 13, kind: input, shape index: {}]
  %s14 = inlined_call_operand.vmem [shape: f32[2,16], index: 14, kind: input, shape index: {}]
  %s15 = inlined_call_operand.vmem [shape: f32[1,2], index: 15, kind: input, shape index: {}]
  %s16 = inlined_call_operand.hbm [shape: f32[2,256,128], index: 16, kind: output, shape index: {0}]
  %s17 = inlined_call_operand.hbm [shape: f32[2,1,8,128], index: 17, kind: output, shape index: {1}]
  %18 = xla_tuple %s16, %s17
  %s19 = sld [smem:[#allocation0]]
  $region109: #{tpu_custom_call.1} parent=0
    _
  %s21 = ssub.s32 1, %s19
  %s22 = scalar_select 0, %s21, %s19
  %s23 = sshll.u32 %s0, 4
  %s24 = int_to_ptr.vmem [resolvable:$true] %s23
  %26 = dma.vmem_to_smem %s24, 16, [#allocation3], [#allocation2]
  %27 = dma.done [#allocation2], 16
  %28 = sfence
  $region1: #{tpu_custom_call.1} parent=0
    #allocation4 [shape = 'u8[262144]{0}', space=vmem, size = 0x40000, scoped, tag = 'output window, operand 0']
    #allocation5 [shape = 's32[2]{0}', space=sflag, size = 0x8, scoped, tag = 'scoped memory for tpu_custom_call.1']
    #allocation6 [shape = 'u8[8192]{0}', space=vmem, size = 0x2000, scoped, tag = 'output window, operand 1']
    #allocation7 [shape = 's32[2]{0}', space=sflag, size = 0x8, scoped, tag = 'scoped memory for tpu_custom_call.1']
    %29 = vsyncpa [#allocation5], 0
    %s30 = scalar_lea.sflag [#allocation5], 1
    %31 = vsyncpa %s30, 0
    %32 = vsyncpa [#allocation7], 0
    %s33 = scalar_lea.sflag [#allocation7], 1
    %34 = vsyncpa %s33, 0
    loop: start=0, step=1, limit=4
    $region2: #{tpu_custom_call.1} parent=1 // loop_pre_header
      _
    $region3: #{tpu_custom_call.1} parent=1 // loop_header
      %s36 = sphi 0, %s40
      %p37 = scmp.ge.s32.totalorder %s36, 4
      %s43 = sphi 0, %s55
      %s44 = sphi 0, %s51
      %s45 = sphi 0, %s43
      %s46 = sphi 0, %s44
      %s47 = sphi 0, %s45
      %s48 = sphi 0, %s46
      %s60 = sphi 0, %s62
      %s63 = sphi 0, %s60
      %s64 = sphi 0, %s63
      %s80 = sphi 0, %s64
      %s86 = sphi 0, %s88
      %s89 = sphi 0, %s86
      %s90 = sphi 0, %s89
      %s106 = sphi 0, %s90
      %s110 = sphi 0, %s110
      %s112 = sphi 0, %s110
      %s113 = sphi 0, %s112
      %s127 = sphi 0, %s113
      %s131 = sphi 0, %s131
      %s133 = sphi 0, %s131
      %s134 = sphi 0, %s133
      %s148 = sphi 0, %s134
      %s152 = sphi 0, %s152
      %s154 = sphi 0, %s152
      %s155 = sphi 0, %s154
      %s169 = sphi 0, %s155
      %s173 = sphi 0, %s173
      %s175 = sphi 0, %s173
      %s176 = sphi 0, %s175
      %s190 = sphi 0, %s176
      %s194 = sphi 0, %s194
      %s196 = sphi 0, %s194
      %s197 = sphi 0, %s196
      %s211 = sphi 0, %s197
      %s215 = sphi 0, %s215
      %s217 = sphi 0, %s215
      %s218 = sphi 0, %s217
      %s232 = sphi 0, %s218
      %s236 = sphi 0, %s236
      %s238 = sphi 0, %s236
      %s239 = sphi 0, %s238
      %s253 = sphi 0, %s239
      %s257 = sphi 0, %s257
      %s259 = sphi 0, %s257
      %s260 = sphi 0, %s259
      %s274 = sphi 0, %s260
      %s278 = sphi 0, %s278
      %s280 = sphi 0, %s278
      %s281 = sphi 0, %s280
      %s295 = sphi 0, %s281
      %s299 = sphi 0, %s299
      %s301 = sphi 0, %s299
      %s302 = sphi 0, %s301
      %s316 = sphi 0, %s302
      %s320 = sphi 0, %s320
      %s322 = sphi 0, %s320
      %s323 = sphi 0, %s322
      %s337 = sphi 0, %s323
      %s341 = sphi 0, %s341
      %s343 = sphi 0, %s341
      %s344 = sphi 0, %s343
      %s358 = sphi 0, %s344
      %s362 = sphi 0, %s362
      %s364 = sphi 0, %s362
      %s365 = sphi 0, %s364
      %s379 = sphi 0, %s365
      %s387 = sphi 0, %s389
      %s390 = sphi 0, %s387
      %s391 = sphi 0, %s390
      %s407 = sphi 0, %s391
      %s415 = sphi 0, %s417
      %s418 = sphi 0, %s415
      %s419 = sphi 0, %s418
      %s435 = sphi 0, %s419
    $region4: #{tpu_custom_call.1} parent=1 // loop_header_branch
      %39 = sbr.rel (%p37) target = $region8
    $region5: #{tpu_custom_call.1} parent=1 // loop_body
      %s41 = ssub.s32 %s36, 1
      %s42 = ssub.s32 %s36, 2
      %s49 = sadd.s32 1, %s44
      %p50 = scmp.ge.s32.totalorder %s49, 1
      %s51 = scalar_select %p50, 0, %s49
      %s52 = sadd.s32 1, %s43
      %s53 = scalar_select %p50, %s52, %s43
      %p54 = scmp.ge.s32.totalorder %s53, 2
      %s55 = scalar_select %p54, 0, %s53
      %s56 = ssub.s32 %s43, %s55
      %s57 = ssub.s32 %s44, %s51
      %s58 = sor.u32 %s56, %s57
      %p59 = scmp.eq.s32.totalorder %s58, 0
      %s61 = sadd.s32 %s60, 1
      %s62 = scalar_select %p59, %s60, %s61
      %p65 = pneg %p59
      %p66 = scmp.eq.s32.totalorder %s36, 1
      %p67 = por %p65, %p66
      %p68 = scmp.ne.s32.totalorder %s60, %s63
      %p69 = scmp.eq.s32.totalorder %s36, 0
      %p70 = por %p68, %p69
      %p71 = scmp.ne.s32.totalorder %s60, %s63
      %p72 = scmp.eq.s32.totalorder %s41, 1
      %p73 = por %p71, %p72
      %p74 = scmp.ne.s32.totalorder %s63, %s64
      %p75 = scmp.eq.s32.totalorder %s41, 0
      %p76 = por %p74, %p75
      %p77 = scmp.ne.s32.totalorder %s63, %s64
      %p78 = scmp.eq.s32.totalorder %s42, 1
      %p79 = por %p77, %p78
      %p81 = scmp.ne.s32.totalorder %s64, %s80
      %p82 = scmp.eq.s32.totalorder %s42, 0
      %p83 = por %p81, %p82
      %s84 = ssub.s32 %s43, %s55
      %p85 = scmp.eq.s32.totalorder %s84, 0
      %s87 = sadd.s32 %s86, 1
      %s88 = scalar_select %p85, %s86, %s87
      %p91 = pneg %p85
      %p92 = scmp.eq.s32.totalorder %s36, 1
      %p93 = por %p91, %p92
      %p94 = scmp.ne.s32.totalorder %s86, %s89
      %p95 = scmp.eq.s32.totalorder %s36, 0
      %p96 = por %p94, %p95
      %p97 = scmp.ne.s32.totalorder %s86, %s89
      %p98 = scmp.eq.s32.totalorder %s41, 1
      %p99 = por %p97, %p98
      %p100 = scmp.ne.s32.totalorder %s89, %s90
      %p101 = scmp.eq.s32.totalorder %s41, 0
      %p102 = por %p100, %p101
      %p103 = scmp.ne.s32.totalorder %s89, %s90
      %p104 = scmp.eq.s32.totalorder %s42, 1
      %p105 = por %p103, %p104
      %p107 = scmp.ne.s32.totalorder %s90, %s106
      %p108 = scmp.eq.s32.totalorder %s42, 0
      %p109 = por %p107, %p108
      %s111 = sadd.s32 %s110, 1
      %p114 = scmp.eq.s32.totalorder %s36, 1
      %p115 = scmp.ne.s32.totalorder %s110, %s112
      %p116 = scmp.eq.s32.totalorder %s36, 0
      %p117 = por %p115, %p116
      %p118 = scmp.ne.s32.totalorder %s110, %s112
      %p119 = scmp.eq.s32.totalorder %s41, 1
      %p120 = por %p118, %p119
      %p121 = scmp.ne.s32.totalorder %s112, %s113
      %p122 = scmp.eq.s32.totalorder %s41, 0
      %p123 = por %p121, %p122
      %p124 = scmp.ne.s32.totalorder %s112, %s113
      %p125 = scmp.eq.s32.totalorder %s42, 1
      %p126 = por %p124, %p125
      %p128 = scmp.ne.s32.totalorder %s113, %s127
      %p129 = scmp.eq.s32.totalorder %s42, 0
      %p130 = por %p128, %p129
      %s132 = sadd.s32 %s131, 1
      %p135 = scmp.eq.s32.totalorder %s36, 1
      %p136 = scmp.ne.s32.totalorder %s131, %s133
      %p137 = scmp.eq.s32.totalorder %s36, 0
      %p138 = por %p136, %p137
      %p139 = scmp.ne.s32.totalorder %s131, %s133
      %p140 = scmp.eq.s32.totalorder %s41, 1
      %p141 = por %p139, %p140
      %p142 = scmp.ne.s32.totalorder %s133, %s134
      %p143 = scmp.eq.s32.totalorder %s41, 0
      %p144 = por %p142, %p143
      %p145 = scmp.ne.s32.totalorder %s133, %s134
      %p146 = scmp.eq.s32.totalorder %s42, 1
      %p147 = por %p145, %p146
      %p149 = scmp.ne.s32.totalorder %s134, %s148
      %p150 = scmp.eq.s32.totalorder %s42, 0
      %p151 = por %p149, %p150
      %s153 = sadd.s32 %s152, 1
      %p156 = scmp.eq.s32.totalorder %s36, 1
      %p157 = scmp.ne.s32.totalorder %s152, %s154
      %p158 = scmp.eq.s32.totalorder %s36, 0
      %p159 = por %p157, %p158
      %p160 = scmp.ne.s32.totalorder %s152, %s154
      %p161 = scmp.eq.s32.totalorder %s41, 1
      %p162 = por %p160, %p161
      %p163 = scmp.ne.s32.totalorder %s154, %s155
      %p164 = scmp.eq.s32.totalorder %s41, 0
      %p165 = por %p163, %p164
      %p166 = scmp.ne.s32.totalorder %s154, %s155
      %p167 = scmp.eq.s32.totalorder %s42, 1
      %p168 = por %p166, %p167
      %p170 = scmp.ne.s32.totalorder %s155, %s169
      %p171 = scmp.eq.s32.totalorder %s42, 0
      %p172 = por %p170, %p171
      %s174 = sadd.s32 %s173, 1
      %p177 = scmp.eq.s32.totalorder %s36, 1
      %p178 = scmp.ne.s32.totalorder %s173, %s175
      %p179 = scmp.eq.s32.totalorder %s36, 0
      %p180 = por %p178, %p179
      %p181 = scmp.ne.s32.totalorder %s173, %s175
      %p182 = scmp.eq.s32.totalorder %s41, 1
      %p183 = por %p181, %p182
      %p184 = scmp.ne.s32.totalorder %s175, %s176
      %p185 = scmp.eq.s32.totalorder %s41, 0
      %p186 = por %p184, %p185
      %p187 = scmp.ne.s32.totalorder %s175, %s176
      %p188 = scmp.eq.s32.totalorder %s42, 1
      %p189 = por %p187, %p188
      %p191 = scmp.ne.s32.totalorder %s176, %s190
      %p192 = scmp.eq.s32.totalorder %s42, 0
      %p193 = por %p191, %p192
      %s195 = sadd.s32 %s194, 1
      %p198 = scmp.eq.s32.totalorder %s36, 1
      %p199 = scmp.ne.s32.totalorder %s194, %s196
      %p200 = scmp.eq.s32.totalorder %s36, 0
      %p201 = por %p199, %p200
      %p202 = scmp.ne.s32.totalorder %s194, %s196
      %p203 = scmp.eq.s32.totalorder %s41, 1
      %p204 = por %p202, %p203
      %p205 = scmp.ne.s32.totalorder %s196, %s197
      %p206 = scmp.eq.s32.totalorder %s41, 0
      %p207 = por %p205, %p206
      %p208 = scmp.ne.s32.totalorder %s196, %s197
      %p209 = scmp.eq.s32.totalorder %s42, 1
      %p210 = por %p208, %p209
      %p212 = scmp.ne.s32.totalorder %s197, %s211
      %p213 = scmp.eq.s32.totalorder %s42, 0
      %p214 = por %p212, %p213
      %s216 = sadd.s32 %s215, 1
      %p219 = scmp.eq.s32.totalorder %s36, 1
      %p220 = scmp.ne.s32.totalorder %s215, %s217
      %p221 = scmp.eq.s32.totalorder %s36, 0
      %p222 = por %p220, %p221
      %p223 = scmp.ne.s32.totalorder %s215, %s217
      %p224 = scmp.eq.s32.totalorder %s41, 1
      %p225 = por %p223, %p224
      %p226 = scmp.ne.s32.totalorder %s217, %s218
      %p227 = scmp.eq.s32.totalorder %s41, 0
      %p228 = por %p226, %p227
      %p229 = scmp.ne.s32.totalorder %s217, %s218
      %p230 = scmp.eq.s32.totalorder %s42, 1
      %p231 = por %p229, %p230
      %p233 = scmp.ne.s32.totalorder %s218, %s232
      %p234 = scmp.eq.s32.totalorder %s42, 0
      %p235 = por %p233, %p234
      %s237 = sadd.s32 %s236, 1
      %p240 = scmp.eq.s32.totalorder %s36, 1
      %p241 = scmp.ne.s32.totalorder %s236, %s238
      %p242 = scmp.eq.s32.totalorder %s36, 0
      %p243 = por %p241, %p242
      %p244 = scmp.ne.s32.totalorder %s236, %s238
      %p245 = scmp.eq.s32.totalorder %s41, 1
      %p246 = por %p244, %p245
      %p247 = scmp.ne.s32.totalorder %s238, %s239
      %p248 = scmp.eq.s32.totalorder %s41, 0
      %p249 = por %p247, %p248
      %p250 = scmp.ne.s32.totalorder %s238, %s239
      %p251 = scmp.eq.s32.totalorder %s42, 1
      %p252 = por %p250, %p251
      %p254 = scmp.ne.s32.totalorder %s239, %s253
      %p255 = scmp.eq.s32.totalorder %s42, 0
      %p256 = por %p254, %p255
      %s258 = sadd.s32 %s257, 1
      %p261 = scmp.eq.s32.totalorder %s36, 1
      %p262 = scmp.ne.s32.totalorder %s257, %s259
      %p263 = scmp.eq.s32.totalorder %s36, 0
      %p264 = por %p262, %p263
      %p265 = scmp.ne.s32.totalorder %s257, %s259
      %p266 = scmp.eq.s32.totalorder %s41, 1
      %p267 = por %p265, %p266
      %p268 = scmp.ne.s32.totalorder %s259, %s260
      %p269 = scmp.eq.s32.totalorder %s41, 0
      %p270 = por %p268, %p269
      %p271 = scmp.ne.s32.totalorder %s259, %s260
      %p272 = scmp.eq.s32.totalorder %s42, 1
      %p273 = por %p271, %p272
      %p275 = scmp.ne.s32.totalorder %s260, %s274
      %p276 = scmp.eq.s32.totalorder %s42, 0
      %p277 = por %p275, %p276
      %s279 = sadd.s32 %s278, 1
      %p282 = scmp.eq.s32.totalorder %s36, 1
      %p283 = scmp.ne.s32.totalorder %s278, %s280
      %p284 = scmp.eq.s32.totalorder %s36, 0
      %p285 = por %p283, %p284
      %p286 = scmp.ne.s32.totalorder %s278, %s280
      %p287 = scmp.eq.s32.totalorder %s41, 1
      %p288 = por %p286, %p287
      %p289 = scmp.ne.s32.totalorder %s280, %s281
      %p290 = scmp.eq.s32.totalorder %s41, 0
      %p291 = por %p289, %p290
      %p292 = scmp.ne.s32.totalorder %s280, %s281
      %p293 = scmp.eq.s32.totalorder %s42, 1
      %p294 = por %p292, %p293
      %p296 = scmp.ne.s32.totalorder %s281, %s295
      %p297 = scmp.eq.s32.totalorder %s42, 0
      %p298 = por %p296, %p297
      %s300 = sadd.s32 %s299, 1
      %p303 = scmp.eq.s32.totalorder %s36, 1
      %p304 = scmp.ne.s32.totalorder %s299, %s301
      %p305 = scmp.eq.s32.totalorder %s36, 0
      %p306 = por %p304, %p305
      %p307 = scmp.ne.s32.totalorder %s299, %s301
      %p308 = scmp.eq.s32.totalorder %s41, 1
      %p309 = por %p307, %p308
      %p310 = scmp.ne.s32.totalorder %s301, %s302
      %p311 = scmp.eq.s32.totalorder %s41, 0
      %p312 = por %p310, %p311
      %p313 = scmp.ne.s32.totalorder %s301, %s302
      %p314 = scmp.eq.s32.totalorder %s42, 1
      %p315 = por %p313, %p314
      %p317 = scmp.ne.s32.totalorder %s302, %s316
      %p318 = scmp.eq.s32.totalorder %s42, 0
      %p319 = por %p317, %p318
      %s321 = sadd.s32 %s320, 1
      %p324 = scmp.eq.s32.totalorder %s36, 1
      %p325 = scmp.ne.s32.totalorder %s320, %s322
      %p326 = scmp.eq.s32.totalorder %s36, 0
      %p327 = por %p325, %p326
      %p328 = scmp.ne.s32.totalorder %s320, %s322
      %p329 = scmp.eq.s32.totalorder %s41, 1
      %p330 = por %p328, %p329
      %p331 = scmp.ne.s32.totalorder %s322, %s323
      %p332 = scmp.eq.s32.totalorder %s41, 0
      %p333 = por %p331, %p332
      %p334 = scmp.ne.s32.totalorder %s322, %s323
      %p335 = scmp.eq.s32.totalorder %s42, 1
      %p336 = por %p334, %p335
      %p338 = scmp.ne.s32.totalorder %s323, %s337
      %p339 = scmp.eq.s32.totalorder %s42, 0
      %p340 = por %p338, %p339
      %s342 = sadd.s32 %s341, 1
      %p345 = scmp.eq.s32.totalorder %s36, 1
      %p346 = scmp.ne.s32.totalorder %s341, %s343
      %p347 = scmp.eq.s32.totalorder %s36, 0
      %p348 = por %p346, %p347
      %p349 = scmp.ne.s32.totalorder %s341, %s343
      %p350 = scmp.eq.s32.totalorder %s41, 1
      %p351 = por %p349, %p350
      %p352 = scmp.ne.s32.totalorder %s343, %s344
      %p353 = scmp.eq.s32.totalorder %s41, 0
      %p354 = por %p352, %p353
      %p355 = scmp.ne.s32.totalorder %s343, %s344
      %p356 = scmp.eq.s32.totalorder %s42, 1
      %p357 = por %p355, %p356
      %p359 = scmp.ne.s32.totalorder %s344, %s358
      %p360 = scmp.eq.s32.totalorder %s42, 0
      %p361 = por %p359, %p360
      %s363 = sadd.s32 %s362, 1
      %p366 = scmp.eq.s32.totalorder %s36, 1
      %p367 = scmp.ne.s32.totalorder %s362, %s364
      %p368 = scmp.eq.s32.totalorder %s36, 0
      %p369 = por %p367, %p368
      %p370 = scmp.ne.s32.totalorder %s362, %s364
      %p371 = scmp.eq.s32.totalorder %s41, 1
      %p372 = por %p370, %p371
      %p373 = scmp.ne.s32.totalorder %s364, %s365
      %p374 = scmp.eq.s32.totalorder %s41, 0
      %p375 = por %p373, %p374
      %p376 = scmp.ne.s32.totalorder %s364, %s365
      %p377 = scmp.eq.s32.totalorder %s42, 1
      %p378 = por %p376, %p377
      %p380 = scmp.ne.s32.totalorder %s365, %s379
      %p381 = scmp.eq.s32.totalorder %s42, 0
      %p382 = por %p380, %p381
      %s383 = ssub.s32 %s43, %s55
      %s384 = ssub.s32 %s44, %s51
      %s385 = sor.u32 %s383, %s384
      %p386 = scmp.eq.s32.totalorder %s385, 0
      %s388 = sadd.s32 %s387, 1
      %s389 = scalar_select %p386, %s387, %s388
      %p392 = pneg %p386
      %p393 = scmp.eq.s32.totalorder %s36, 1
      %p394 = por %p392, %p393
      %p395 = scmp.ne.s32.totalorder %s387, %s390
      %p396 = scmp.eq.s32.totalorder %s36, 0
      %p397 = por %p395, %p396
      %p398 = scmp.ne.s32.totalorder %s387, %s390
      %p399 = scmp.eq.s32.totalorder %s41, 1
      %p400 = por %p398, %p399
      %p401 = scmp.ne.s32.totalorder %s390, %s391
      %p402 = scmp.eq.s32.totalorder %s41, 0
      %p403 = por %p401, %p402
      %p404 = scmp.ne.s32.totalorder %s390, %s391
      %p405 = scmp.eq.s32.totalorder %s42, 1
      %p406 = por %p404, %p405
      %p408 = scmp.ne.s32.totalorder %s391, %s407
      %p409 = scmp.eq.s32.totalorder %s42, 0
      %p410 = por %p408, %p409
      %s411 = ssub.s32 %s43, %s55
      %s412 = ssub.s32 %s44, %s51
      %s413 = sor.u32 %s411, %s412
      %p414 = scmp.eq.s32.totalorder %s413, 0
      %s416 = sadd.s32 %s415, 1
      %s417 = scalar_select %p414, %s415, %s416
      %p420 = pneg %p414
      %p421 = scmp.eq.s32.totalorder %s36, 1
      %p422 = por %p420, %p421
      %p423 = scmp.ne.s32.totalorder %s415, %s418
      %p424 = scmp.eq.s32.totalorder %s36, 0
      %p425 = por %p423, %p424
      %p426 = scmp.ne.s32.totalorder %s415, %s418
      %p427 = scmp.eq.s32.totalorder %s41, 1
      %p428 = por %p426, %p427
      %p429 = scmp.ne.s32.totalorder %s418, %s419
      %p430 = scmp.eq.s32.totalorder %s41, 0
      %p431 = por %p429, %p430
      %p432 = scmp.ne.s32.totalorder %s418, %s419
      %p433 = scmp.eq.s32.totalorder %s42, 1
      %p434 = por %p432, %p433
      %p436 = scmp.ne.s32.totalorder %s419, %s435
      %p437 = scmp.eq.s32.totalorder %s42, 0
      %p438 = por %p436, %p437
      %p439 = scmp.le.s32.totalorder 1, %s36
      %p440 = scmp.lt.s32.totalorder %s36, 3
      %p441 = pnand %p439, %p440
      %p442 = pneg %p441
      // Predicated region
      $region9: #{tpu_custom_call.1} parent=5 // pred_check
        _
      $region10: #{tpu_custom_call.1} parent=5 // pred_check_branch
        %444 = sbr.rel (%p441) target = $region12
      $region11: #{tpu_custom_call.1} parent=5 // pred_region
        %s445 = ssub.s32 %s36, 1
        // Predicated region
        $region13: #{tpu_custom_call.1} parent=11 // pred_check
          %p446 = pneg %p123
        $region14: #{tpu_custom_call.1} parent=11 // pred_check_branch
          %448 = sbr.rel (%p446) target = $region16
        $region15: #{tpu_custom_call.1} parent=11 // pred_region
          _
        $region16: #{tpu_custom_call.1} parent=11 // pred_fallthru
          _
        // Predicated region
        $region17: #{tpu_custom_call.1} parent=11 // pred_check
          %p449 = pneg %p144
        $region18: #{tpu_custom_call.1} parent=11 // pred_check_branch
          %451 = sbr.rel (%p449) target = $region20
        $region19: #{tpu_custom_call.1} parent=11 // pred_region
          _
        $region20: #{tpu_custom_call.1} parent=11 // pred_fallthru
          _
        // Predicated region
        $region21: #{tpu_custom_call.1} parent=11 // pred_check
          %p452 = pneg %p165
        $region22: #{tpu_custom_call.1} parent=11 // pred_check_branch
          %454 = sbr.rel (%p452) target = $region24
        $region23: #{tpu_custom_call.1} parent=11 // pred_region
          _
        $region24: #{tpu_custom_call.1} parent=11 // pred_fallthru
          _
        // Predicated region
        $region25: #{tpu_custom_call.1} parent=11 // pred_check
          %p455 = pneg %p186
        $region26: #{tpu_custom_call.1} parent=11 // pred_check_branch
          %457 = sbr.rel (%p455) target = $region28
        $region27: #{tpu_custom_call.1} parent=11 // pred_region
          _
        $region28: #{tpu_custom_call.1} parent=11 // pred_fallthru
          _
        // Predicated region
        $region29: #{tpu_custom_call.1} parent=11 // pred_check
          %p458 = pneg %p207
        $region30: #{tpu_custom_call.1} parent=11 // pred_check_branch
          %460 = sbr.rel (%p458) target = $region32
        $region31: #{tpu_custom_call.1} parent=11 // pred_region
          _
        $region32: #{tpu_custom_call.1} parent=11 // pred_fallthru
          _
        // Predicated region
        $region33: #{tpu_custom_call.1} parent=11 // pred_check
          %p461 = pneg %p228
        $region34: #{tpu_custom_call.1} parent=11 // pred_check_branch
          %463 = sbr.rel (%p461) target = $region36
        $region35: #{tpu_custom_call.1} parent=11 // pred_region
          _
        $region36: #{tpu_custom_call.1} parent=11 // pred_fallthru
          _
        // Predicated region
        $region37: #{tpu_custom_call.1} parent=11 // pred_check
          %p464 = pneg %p249
        $region38: #{tpu_custom_call.1} parent=11 // pred_check_branch
          %466 = sbr.rel (%p464) target = $region40
        $region39: #{tpu_custom_call.1} parent=11 // pred_region
          _
        $region40: #{tpu_custom_call.1} parent=11 // pred_fallthru
          _
        // Predicated region
        $region41: #{tpu_custom_call.1} parent=11 // pred_check
          %p467 = pneg %p270
        $region42: #{tpu_custom_call.1} parent=11 // pred_check_branch
          %469 = sbr.rel (%p467) target = $region44
        $region43: #{tpu_custom_call.1} parent=11 // pred_region
          _
        $region44: #{tpu_custom_call.1} parent=11 // pred_fallthru
          _
        // Predicated region
        $region45: #{tpu_custom_call.1} parent=11 // pred_check
          %p470 = pneg %p291
        $region46: #{tpu_custom_call.1} parent=11 // pred_check_branch
          %472 = sbr.rel (%p470) target = $region48
        $region47: #{tpu_custom_call.1} parent=11 // pred_region
          _
        $region48: #{tpu_custom_call.1} parent=11 // pred_fallthru
          _
        // Predicated region
        $region49: #{tpu_custom_call.1} parent=11 // pred_check
          %p473 = pneg %p312
        $region50: #{tpu_custom_call.1} parent=11 // pred_check_branch
          %475 = sbr.rel (%p473) target = $region52
        $region51: #{tpu_custom_call.1} parent=11 // pred_region
          _
        $region52: #{tpu_custom_call.1} parent=11 // pred_fallthru
          _
        // Predicated region
        $region53: #{tpu_custom_call.1} parent=11 // pred_check
          %p476 = pneg %p333
        $region54: #{tpu_custom_call.1} parent=11 // pred_check_branch
          %478 = sbr.rel (%p476) target = $region56
        $region55: #{tpu_custom_call.1} parent=11 // pred_region
          _
        $region56: #{tpu_custom_call.1} parent=11 // pred_fallthru
          _
        // Predicated region
        $region57: #{tpu_custom_call.1} parent=11 // pred_check
          %p479 = pneg %p354
        $region58: #{tpu_custom_call.1} parent=11 // pred_check_branch
          %481 = sbr.rel (%p479) target = $region60
        $region59: #{tpu_custom_call.1} parent=11 // pred_region
          _
        $region60: #{tpu_custom_call.1} parent=11 // pred_fallthru
          _
        // Predicated region
        $region61: #{tpu_custom_call.1} parent=11 // pred_check
          %p482 = pneg %p375
        $region62: #{tpu_custom_call.1} parent=11 // pred_check_branch
          %484 = sbr.rel (%p482) target = $region64
        $region63: #{tpu_custom_call.1} parent=11 // pred_region
          _
        $region64: #{tpu_custom_call.1} parent=11 // pred_fallthru
          _
      $region12: #{tpu_custom_call.1} parent=5 // pred_fallthru
        _
      %p485 = scmp.lt.s32.totalorder %s36, 2
      // Predicated region
      $region65: #{tpu_custom_call.1} parent=5 // pred_check
        %p486 = pneg %p485
      $region66: #{tpu_custom_call.1} parent=5 // pred_check_branch
        %488 = sbr.rel (%p486) target = $region68
      $region67: #{tpu_custom_call.1} parent=5 // pred_region
        // Predicated region
        $region69: #{tpu_custom_call.1} parent=67 // pred_check
          %p489 = pneg %p70
        $region70: #{tpu_custom_call.1} parent=67 // pred_check_branch
          %491 = sbr.rel (%p489) target = $region72
        $region71: #{tpu_custom_call.1} parent=67 // pred_region
          %s492 = smul.u32 32, %s44
          %p493 = scmp.lt.s32.totalorder %s43, 1
          %s494 = scalar_select %p493, %s43, 1
          %p495 = scmp.lt.s32.totalorder %s492, 31
          %s496 = scalar_select %p495, %s492, 31
          %s497 = smul.addr %s494, 32
          %s498 = sadd.s32 %s496, %s497
          %s499 = smul.addr %s498, 8
          %s500 = scalar_lea.vmem %s1, %s499
          %s501 = smul.u32 32, %s44
        $region72: #{tpu_custom_call.1} parent=67 // pred_fallthru
          _
        // Predicated region
        $region73: #{tpu_custom_call.1} parent=67 // pred_check
          %p502 = pneg %p96
        $region74: #{tpu_custom_call.1} parent=67 // pred_check_branch
          %504 = sbr.rel (%p502) target = $region76
        $region75: #{tpu_custom_call.1} parent=67 // pred_region
          %p505 = scmp.lt.s32.totalorder %s43, 1
          %s506 = scalar_select %p505, %s43, 1
          %s507 = smul.addr %s506, 4
          %s508 = scalar_lea.vmem %s2, %s507
        $region76: #{tpu_custom_call.1} parent=67 // pred_fallthru
          _
      $region68: #{tpu_custom_call.1} parent=5 // pred_fallthru
        _
      %p509 = scmp.le.s32.totalorder 1, %s36
      %p510 = scmp.lt.s32.totalorder %s36, 3
      %p511 = pnand %p509, %p510
      %p512 = pneg %p511
      // Predicated region
      $region77: #{tpu_custom_call.1} parent=5 // pred_check
        _
      $region78: #{tpu_custom_call.1} parent=5 // pred_check_branch
        %514 = sbr.rel (%p511) target = $region80
      $region79: #{tpu_custom_call.1} parent=5 // pred_region
        %s515 = ssub.s32 %s36, 1
        %s516 = smul.u32 32, %s46
        %p517 = scmp.lt.s32.totalorder %s45, 1
        %s518 = scalar_select %p517, %s45, 1
        %p519 = scmp.lt.s32.totalorder %s516, 31
        %s520 = scalar_select %p519, %s516, 31
        %s521 = smul.addr %s518, 32
        %s522 = sadd.s32 %s520, %s521
        %s523 = smul.addr %s522, 8
        %s524 = scalar_lea.vmem %s1, %s523
        %p525 = pneg %p76
        %p526 = pneg %p73
        %p527 = scmp.lt.s32.totalorder %s45, 1
        %s528 = scalar_select %p527, %s45, 1
        %s529 = smul.addr %s528, 4
        %s530 = scalar_lea.vmem %s2, %s529
        %p531 = pneg %p102
        %p532 = pneg %p99
        %p533 = pneg %p123
        %p534 = pneg %p120
        %p535 = pneg %p144
        %p536 = pneg %p141
        %p537 = pneg %p165
        %p538 = pneg %p162
        %p539 = pneg %p186
        %p540 = pneg %p183
        %p541 = pneg %p207
        %p542 = pneg %p204
        %p543 = pneg %p228
        %p544 = pneg %p225
        %p545 = pneg %p249
        %p546 = pneg %p246
        %p547 = pneg %p270
        %p548 = pneg %p267
        %p549 = pneg %p291
        %p550 = pneg %p288
        %p551 = pneg %p312
        %p552 = pneg %p309
        %p553 = pneg %p333
        %p554 = pneg %p330
        %p555 = pneg %p354
        %p556 = pneg %p351
        %p557 = pneg %p375
        %p558 = pneg %p372
        %p559 = pneg %p403
        %p560 = pneg %p400
        %s561 = sand.u32 %s390, 1
        %s562 = scalar_lea.sflag [#allocation5], %s561
        %s563 = sand.u32 %s390, 1
        %s564 = smul.addr %s563, 256
        %s565 = scalar_lea.vmem [#allocation4], %s564
        %p566 = pneg %p431
        %p567 = pneg %p428
        %s568 = sand.u32 %s418, 1
        %s569 = scalar_lea.sflag [#allocation7], %s568
        %s570 = sand.u32 %s418, 1
        %s571 = smul.addr %s570, 8
        %s572 = scalar_lea.vmem [#allocation6], %s571
        %s573 = smul.u32 32, %s46
        %p574 = scmp.lt.s32.totalorder %s45, 1
        %s575 = scalar_select %p574, %s45, 1
        %p576 = scmp.lt.s32.totalorder %s573, 31
        %s577 = scalar_select %p576, %s573, 31
        %s578 = smul.addr %s575, 32
        %s579 = sadd.s32 %s577, %s578
        %s580 = smul.addr %s579, 8
        %s581 = scalar_lea.vmem %s1, %s580
        %s582 = smul.u32 32, %s46
        %p583 = scmp.lt.s32.totalorder %s45, 1
        %s584 = scalar_select %p583, %s45, 1
        %s585 = smul.addr %s584, 4
        %s586 = scalar_lea.vmem %s2, %s585
        %s587 = smul.u32 32, %s46
        %s589 = sld [smem:[#allocation3 + %s45]]
        %s590 = smul.u32 %s46, 256
        %p591 = scmp.lt.s32.totalorder %s590, %s589
        // Predicated region
        $region81: #{tpu_custom_call.1} parent=79 // pred_check
          %p592 = pneg %p591
        $region82: #{tpu_custom_call.1} parent=79 // pred_check_branch
          %594 = sbr.rel (%p592) target = $region84
        $region83: #{tpu_custom_call.1} parent=79 // pred_region
          %v595 = vld [vmem:[%s581] sm:$0xff]
          %v596 = vld [vmem:[%s581 + $0x8] sm:$0xff]
          %v597 = vld [vmem:[%s581 + $0x10] sm:$0xff]
          %v598 = vld [vmem:[%s581 + $0x18] sm:$0xff]
          %v599 = vld [vmem:[%s581 + $0x20] sm:$0xff]
          %v600 = vld [vmem:[%s581 + $0x28] sm:$0xff]
          %v601 = vld [vmem:[%s581 + $0x30] sm:$0xff]
          %v602 = vld [vmem:[%s581 + $0x38] sm:$0xff]
          %v603 = vld [vmem:[%s581 + $0x40] sm:$0xff]
          %v604 = vld [vmem:[%s581 + $0x48] sm:$0xff]
          %v605 = vld [vmem:[%s581 + $0x50] sm:$0xff]
          %v606 = vld [vmem:[%s581 + $0x58] sm:$0xff]
          %v607 = vld [vmem:[%s581 + $0x60] sm:$0xff]
          %v608 = vld [vmem:[%s581 + $0x68] sm:$0xff]
          %v609 = vld [vmem:[%s581 + $0x70] sm:$0xff]
          %v610 = vld [vmem:[%s581 + $0x78] sm:$0xff]
          %v611 = vld [vmem:[%s581 + $0x80] sm:$0xff]
          %v612 = vld [vmem:[%s581 + $0x88] sm:$0xff]
          %v613 = vld [vmem:[%s581 + $0x90] sm:$0xff]
          %v614 = vld [vmem:[%s581 + $0x98] sm:$0xff]
          %v615 = vld [vmem:[%s581 + $0xa0] sm:$0xff]
          %v616 = vld [vmem:[%s581 + $0xa8] sm:$0xff]
          %v617 = vld [vmem:[%s581 + $0xb0] sm:$0xff]
          %v618 = vld [vmem:[%s581 + $0xb8] sm:$0xff]
          %v619 = vld [vmem:[%s581 + $0xc0] sm:$0xff]
          %v620 = vld [vmem:[%s581 + $0xc8] sm:$0xff]
          %v621 = vld [vmem:[%s581 + $0xd0] sm:$0xff]
          %v622 = vld [vmem:[%s581 + $0xd8] sm:$0xff]
          %v623 = vld [vmem:[%s581 + $0xe0] sm:$0xff]
          %v624 = vld [vmem:[%s581 + $0xe8] sm:$0xff]
          %v625 = vld [vmem:[%s581 + $0xf0] sm:$0xff]
          %v626 = vld [vmem:[%s581 + $0xf8] sm:$0xff]
          %v627 = vld [vmem:[%s586] sm:$0xf]
          %v628 = vlaneseq
          %v629 = vand.u32 %v628, 127
          %630 = vset.pattern.permute.xlu0 0
          %631 = vperm.xlu0 %630, %v595
          %v632 = vpop.permute.xlu0 %631
          %633 = vset.pattern.permute.xlu0 0
          %634 = vperm.xlu0 %633, %v596
          %v635 = vpop.permute.xlu0 %634
          %636 = vset.pattern.permute.xlu0 0
          %637 = vperm.xlu0 %636, %v597
          %v638 = vpop.permute.xlu0 %637
          %639 = vset.pattern.permute.xlu0 0
          %640 = vperm.xlu0 %639, %v598
          %v641 = vpop.permute.xlu0 %640
          %642 = vset.pattern.permute.xlu0 0
          %643 = vperm.xlu0 %642, %v599
          %v644 = vpop.permute.xlu0 %643
          %645 = vset.pattern.permute.xlu0 0
          %646 = vperm.xlu0 %645, %v600
          %v647 = vpop.permute.xlu0 %646
          %648 = vset.pattern.permute.xlu0 0
          %649 = vperm.xlu0 %648, %v601
          %v650 = vpop.permute.xlu0 %649
          %651 = vset.pattern.permute.xlu0 0
          %652 = vperm.xlu0 %651, %v602
          %v653 = vpop.permute.xlu0 %652
          %654 = vset.pattern.permute.xlu0 0
          %655 = vperm.xlu0 %654, %v603
          %v656 = vpop.permute.xlu0 %655
          %657 = vset.pattern.permute.xlu0 0
          %658 = vperm.xlu0 %657, %v604
          %v659 = vpop.permute.xlu0 %658
          %660 = vset.pattern.permute.xlu0 0
          %661 = vperm.xlu0 %660, %v605
          %v662 = vpop.permute.xlu0 %661
          %663 = vset.pattern.permute.xlu0 0
          %664 = vperm.xlu0 %663, %v606
          %v665 = vpop.permute.xlu0 %664
          %666 = vset.pattern.permute.xlu0 0
          %667 = vperm.xlu0 %666, %v607
          %v668 = vpop.permute.xlu0 %667
          %669 = vset.pattern.permute.xlu0 0
          %670 = vperm.xlu0 %669, %v608
          %v671 = vpop.permute.xlu0 %670
          %672 = vset.pattern.permute.xlu0 0
          %673 = vperm.xlu0 %672, %v609
          %v674 = vpop.permute.xlu0 %673
          %675 = vset.pattern.permute.xlu0 0
          %676 = vperm.xlu0 %675, %v610
          %v677 = vpop.permute.xlu0 %676
          %678 = vset.pattern.permute.xlu0 0
          %679 = vperm.xlu0 %678, %v611
          %v680 = vpop.permute.xlu0 %679
          %681 = vset.pattern.permute.xlu0 0
          %682 = vperm.xlu0 %681, %v612
          %v683 = vpop.permute.xlu0 %682
          %684 = vset.pattern.permute.xlu0 0
          %685 = vperm.xlu0 %684, %v613
          %v686 = vpop.permute.xlu0 %685
          %687 = vset.pattern.permute.xlu0 0
          %688 = vperm.xlu0 %687, %v614
          %v689 = vpop.permute.xlu0 %688
          %690 = vset.pattern.permute.xlu0 0
          %691 = vperm.xlu0 %690, %v615
          %v692 = vpop.permute.xlu0 %691
          %693 = vset.pattern.permute.xlu0 0
          %694 = vperm.xlu0 %693, %v616
          %v695 = vpop.permute.xlu0 %694
          %696 = vset.pattern.permute.xlu0 0
          %697 = vperm.xlu0 %696, %v617
          %v698 = vpop.permute.xlu0 %697
          %699 = vset.pattern.permute.xlu0 0
          %700 = vperm.xlu0 %699, %v618
          %v701 = vpop.permute.xlu0 %700
          %702 = vset.pattern.permute.xlu0 0
          %703 = vperm.xlu0 %702, %v619
          %v704 = vpop.permute.xlu0 %703
          %705 = vset.pattern.permute.xlu0 0
          %706 = vperm.xlu0 %705, %v620
          %v707 = vpop.permute.xlu0 %706
          %708 = vset.pattern.permute.xlu0 0
          %709 = vperm.xlu0 %708, %v621
          %v710 = vpop.permute.xlu0 %709
          %711 = vset.pattern.permute.xlu0 0
          %712 = vperm.xlu0 %711, %v622
          %v713 = vpop.permute.xlu0 %712
          %714 = vset.pattern.permute.xlu0 0
          %715 = vperm.xlu0 %714, %v623
          %v716 = vpop.permute.xlu0 %715
          %717 = vset.pattern.permute.xlu0 0
          %718 = vperm.xlu0 %717, %v624
          %v719 = vpop.permute.xlu0 %718
          %720 = vset.pattern.permute.xlu0 0
          %721 = vperm.xlu0 %720, %v625
          %v722 = vpop.permute.xlu0 %721
          %723 = vset.pattern.permute.xlu0 0
          %724 = vperm.xlu0 %723, %v626
          %v725 = vpop.permute.xlu0 %724
          %vm726 = vcmp.eq.s32.totalorder %v629, %v632
          %vm727 = vcmp.eq.s32.totalorder %v629, %v635
          %vm728 = vcmp.eq.s32.totalorder %v629, %v638
          %vm729 = vcmp.eq.s32.totalorder %v629, %v641
          %vm730 = vcmp.eq.s32.totalorder %v629, %v644
          %vm731 = vcmp.eq.s32.totalorder %v629, %v647
          %vm732 = vcmp.eq.s32.totalorder %v629, %v650
          %vm733 = vcmp.eq.s32.totalorder %v629, %v653
          %vm734 = vcmp.eq.s32.totalorder %v629, %v656
          %vm735 = vcmp.eq.s32.totalorder %v629, %v659
          %vm736 = vcmp.eq.s32.totalorder %v629, %v662
          %vm737 = vcmp.eq.s32.totalorder %v629, %v665
          %vm738 = vcmp.eq.s32.totalorder %v629, %v668
          %vm739 = vcmp.eq.s32.totalorder %v629, %v671
          %vm740 = vcmp.eq.s32.totalorder %v629, %v674
          %vm741 = vcmp.eq.s32.totalorder %v629, %v677
          %vm742 = vcmp.eq.s32.totalorder %v629, %v680
          %vm743 = vcmp.eq.s32.totalorder %v629, %v683
          %vm744 = vcmp.eq.s32.totalorder %v629, %v686
          %vm745 = vcmp.eq.s32.totalorder %v629, %v689
          %vm746 = vcmp.eq.s32.totalorder %v629, %v692
          %vm747 = vcmp.eq.s32.totalorder %v629, %v695
          %vm748 = vcmp.eq.s32.totalorder %v629, %v698
          %vm749 = vcmp.eq.s32.totalorder %v629, %v701
          %vm750 = vcmp.eq.s32.totalorder %v629, %v704
          %vm751 = vcmp.eq.s32.totalorder %v629, %v707
          %vm752 = vcmp.eq.s32.totalorder %v629, %v710
          %vm753 = vcmp.eq.s32.totalorder %v629, %v713
          %vm754 = vcmp.eq.s32.totalorder %v629, %v716
          %vm755 = vcmp.eq.s32.totalorder %v629, %v719
          %vm756 = vcmp.eq.s32.totalorder %v629, %v722
          %vm757 = vcmp.eq.s32.totalorder %v629, %v725
          %v758 = vsel %vm726, 1.0, 0.0
          %v759 = vsel %vm727, 1.0, 0.0
          %v760 = vsel %vm728, 1.0, 0.0
          %v761 = vsel %vm729, 1.0, 0.0
          %v762 = vsel %vm730, 1.0, 0.0
          %v763 = vsel %vm731, 1.0, 0.0
          %v764 = vsel %vm732, 1.0, 0.0
          %v765 = vsel %vm733, 1.0, 0.0
          %v766 = vsel %vm734, 1.0, 0.0
          %v767 = vsel %vm735, 1.0, 0.0
          %v768 = vsel %vm736, 1.0, 0.0
          %v769 = vsel %vm737, 1.0, 0.0
          %v770 = vsel %vm738, 1.0, 0.0
          %v771 = vsel %vm739, 1.0, 0.0
          %v772 = vsel %vm740, 1.0, 0.0
          %v773 = vsel %vm741, 1.0, 0.0
          %v774 = vsel %vm742, 1.0, 0.0
          %v775 = vsel %vm743, 1.0, 0.0
          %v776 = vsel %vm744, 1.0, 0.0
          %v777 = vsel %vm745, 1.0, 0.0
          %v778 = vsel %vm746, 1.0, 0.0
          %v779 = vsel %vm747, 1.0, 0.0
          %v780 = vsel %vm748, 1.0, 0.0
          %v781 = vsel %vm749, 1.0, 0.0
          %v782 = vsel %vm750, 1.0, 0.0
          %v783 = vsel %vm751, 1.0, 0.0
          %v784 = vsel %vm752, 1.0, 0.0
          %v785 = vsel %vm753, 1.0, 0.0
          %v786 = vsel %vm754, 1.0, 0.0
          %v787 = vsel %vm755, 1.0, 0.0
          %v788 = vsel %vm756, 1.0, 0.0
          %v789 = vsel %vm757, 1.0, 0.0
          %v790 = vpack.c.bf16 %v759, %v758
          %v791 = vpack.c.bf16 %v761, %v760
          %v792 = vpack.c.bf16 %v763, %v762
          %v793 = vpack.c.bf16 %v765, %v764
          %v794 = vpack.c.bf16 %v767, %v766
          %v795 = vpack.c.bf16 %v769, %v768
          %v796 = vpack.c.bf16 %v771, %v770
          %v797 = vpack.c.bf16 %v773, %v772
          %v798 = vpack.c.bf16 %v775, %v774
          %v799 = vpack.c.bf16 %v777, %v776
          %v800 = vpack.c.bf16 %v779, %v778
          %v801 = vpack.c.bf16 %v781, %v780
          %v802 = vpack.c.bf16 %v783, %v782
          %v803 = vpack.c.bf16 %v785, %v784
          %v804 = vpack.c.bf16 %v787, %v786
          %v805 = vpack.c.bf16 %v789, %v788
          %806 = vset.pattern.permute.xlu0 2
          %807 = vperm.xlu0 %806, %v595
          %v808 = vpop.permute.xlu0 %807
          %809 = vset.pattern.permute.xlu0 2
          %810 = vperm.xlu0 %809, %v596
          %v811 = vpop.permute.xlu0 %810
          %812 = vset.pattern.permute.xlu0 2
          %813 = vperm.xlu0 %812, %v597
          %v814 = vpop.permute.xlu0 %813
          %815 = vset.pattern.permute.xlu0 2
          %816 = vperm.xlu0 %815, %v598
          %v817 = vpop.permute.xlu0 %816
          %818 = vset.pattern.permute.xlu0 2
          %819 = vperm.xlu0 %818, %v599
          %v820 = vpop.permute.xlu0 %819
          %821 = vset.pattern.permute.xlu0 2
          %822 = vperm.xlu0 %821, %v600
          %v823 = vpop.permute.xlu0 %822
          %824 = vset.pattern.permute.xlu0 2
          %825 = vperm.xlu0 %824, %v601
          %v826 = vpop.permute.xlu0 %825
          %827 = vset.pattern.permute.xlu0 2
          %828 = vperm.xlu0 %827, %v602
          %v829 = vpop.permute.xlu0 %828
          %830 = vset.pattern.permute.xlu0 2
          %831 = vperm.xlu0 %830, %v603
          %v832 = vpop.permute.xlu0 %831
          %833 = vset.pattern.permute.xlu0 2
          %834 = vperm.xlu0 %833, %v604
          %v835 = vpop.permute.xlu0 %834
          %836 = vset.pattern.permute.xlu0 2
          %837 = vperm.xlu0 %836, %v605
          %v838 = vpop.permute.xlu0 %837
          %839 = vset.pattern.permute.xlu0 2
          %840 = vperm.xlu0 %839, %v606
          %v841 = vpop.permute.xlu0 %840
          %842 = vset.pattern.permute.xlu0 2
          %843 = vperm.xlu0 %842, %v607
          %v844 = vpop.permute.xlu0 %843
          %845 = vset.pattern.permute.xlu0 2
          %846 = vperm.xlu0 %845, %v608
          %v847 = vpop.permute.xlu0 %846
          %848 = vset.pattern.permute.xlu0 2
          %849 = vperm.xlu0 %848, %v609
          %v850 = vpop.permute.xlu0 %849
          %851 = vset.pattern.permute.xlu0 2
          %852 = vperm.xlu0 %851, %v610
          %v853 = vpop.permute.xlu0 %852
          %854 = vset.pattern.permute.xlu0 2
          %855 = vperm.xlu0 %854, %v611
          %v856 = vpop.permute.xlu0 %855
          %857 = vset.pattern.permute.xlu0 2
          %858 = vperm.xlu0 %857, %v612
          %v859 = vpop.permute.xlu0 %858
          %860 = vset.pattern.permute.xlu0 2
          %861 = vperm.xlu0 %860, %v613
          %v862 = vpop.permute.xlu0 %861
          %863 = vset.pattern.permute.xlu0 2
          %864 = vperm.xlu0 %863, %v614
          %v865 = vpop.permute.xlu0 %864
          %866 = vset.pattern.permute.xlu0 2
          %867 = vperm.xlu0 %866, %v615
          %v868 = vpop.permute.xlu0 %867
          %869 = vset.pattern.permute.xlu0 2
          %870 = vperm.xlu0 %869, %v616
          %v871 = vpop.permute.xlu0 %870
          %872 = vset.pattern.permute.xlu0 2
          %873 = vperm.xlu0 %872, %v617
          %v874 = vpop.permute.xlu0 %873
          %875 = vset.pattern.permute.xlu0 2
          %876 = vperm.xlu0 %875, %v618
          %v877 = vpop.permute.xlu0 %876
          %878 = vset.pattern.permute.xlu0 2
          %879 = vperm.xlu0 %878, %v619
          %v880 = vpop.permute.xlu0 %879
          %881 = vset.pattern.permute.xlu0 2
          %882 = vperm.xlu0 %881, %v620
          %v883 = vpop.permute.xlu0 %882
          %884 = vset.pattern.permute.xlu0 2
          %885 = vperm.xlu0 %884, %v621
          %v886 = vpop.permute.xlu0 %885
          %887 = vset.pattern.permute.xlu0 2
          %888 = vperm.xlu0 %887, %v622
          %v889 = vpop.permute.xlu0 %888
          %890 = vset.pattern.permute.xlu0 2
          %891 = vperm.xlu0 %890, %v623
          %v892 = vpop.permute.xlu0 %891
          %893 = vset.pattern.permute.xlu0 2
          %894 = vperm.xlu0 %893, %v624
          %v895 = vpop.permute.xlu0 %894
          %896 = vset.pattern.permute.xlu0 2
          %897 = vperm.xlu0 %896, %v625
          %v898 = vpop.permute.xlu0 %897
          %899 = vset.pattern.permute.xlu0 2
          %900 = vperm.xlu0 %899, %v626
          %v901 = vpop.permute.xlu0 %900
          %vm902 = vcmp.eq.s32.totalorder %v629, %v808
          %vm903 = vcmp.eq.s32.totalorder %v629, %v811
          %vm904 = vcmp.eq.s32.totalorder %v629, %v814
          %vm905 = vcmp.eq.s32.totalorder %v629, %v817
          %vm906 = vcmp.eq.s32.totalorder %v629, %v820
          %vm907 = vcmp.eq.s32.totalorder %v629, %v823
          %vm908 = vcmp.eq.s32.totalorder %v629, %v826
          %vm909 = vcmp.eq.s32.totalorder %v629, %v829
          %vm910 = vcmp.eq.s32.totalorder %v629, %v832
          %vm911 = vcmp.eq.s32.totalorder %v629, %v835
          %vm912 = vcmp.eq.s32.totalorder %v629, %v838
          %vm913 = vcmp.eq.s32.totalorder %v629, %v841
          %vm914 = vcmp.eq.s32.totalorder %v629, %v844
          %vm915 = vcmp.eq.s32.totalorder %v629, %v847
          %vm916 = vcmp.eq.s32.totalorder %v629, %v850
          %vm917 = vcmp.eq.s32.totalorder %v629, %v853
          %vm918 = vcmp.eq.s32.totalorder %v629, %v856
          %vm919 = vcmp.eq.s32.totalorder %v629, %v859
          %vm920 = vcmp.eq.s32.totalorder %v629, %v862
          %vm921 = vcmp.eq.s32.totalorder %v629, %v865
          %vm922 = vcmp.eq.s32.totalorder %v629, %v868
          %vm923 = vcmp.eq.s32.totalorder %v629, %v871
          %vm924 = vcmp.eq.s32.totalorder %v629, %v874
          %vm925 = vcmp.eq.s32.totalorder %v629, %v877
          %vm926 = vcmp.eq.s32.totalorder %v629, %v880
          %vm927 = vcmp.eq.s32.totalorder %v629, %v883
          %vm928 = vcmp.eq.s32.totalorder %v629, %v886
          %vm929 = vcmp.eq.s32.totalorder %v629, %v889
          %vm930 = vcmp.eq.s32.totalorder %v629, %v892
          %vm931 = vcmp.eq.s32.totalorder %v629, %v895
          %vm932 = vcmp.eq.s32.totalorder %v629, %v898
          %vm933 = vcmp.eq.s32.totalorder %v629, %v901
          %v934 = vsel %vm902, 1.0, 0.0
          %v935 = vsel %vm903, 1.0, 0.0
          %v936 = vsel %vm904, 1.0, 0.0
          %v937 = vsel %vm905, 1.0, 0.0
          %v938 = vsel %vm906, 1.0, 0.0
          %v939 = vsel %vm907, 1.0, 0.0
          %v940 = vsel %vm908, 1.0, 0.0
          %v941 = vsel %vm909, 1.0, 0.0
          %v942 = vsel %vm910, 1.0, 0.0
          %v943 = vsel %vm911, 1.0, 0.0
          %v944 = vsel %vm912, 1.0, 0.0
          %v945 = vsel %vm913, 1.0, 0.0
          %v946 = vsel %vm914, 1.0, 0.0
          %v947 = vsel %vm915, 1.0, 0.0
          %v948 = vsel %vm916, 1.0, 0.0
          %v949 = vsel %vm917, 1.0, 0.0
          %v950 = vsel %vm918, 1.0, 0.0
          %v951 = vsel %vm919, 1.0, 0.0
          %v952 = vsel %vm920, 1.0, 0.0
          %v953 = vsel %vm921, 1.0, 0.0
          %v954 = vsel %vm922, 1.0, 0.0
          %v955 = vsel %vm923, 1.0, 0.0
          %v956 = vsel %vm924, 1.0, 0.0
          %v957 = vsel %vm925, 1.0, 0.0
          %v958 = vsel %vm926, 1.0, 0.0
          %v959 = vsel %vm927, 1.0, 0.0
          %v960 = vsel %vm928, 1.0, 0.0
          %v961 = vsel %vm929, 1.0, 0.0
          %v962 = vsel %vm930, 1.0, 0.0
          %v963 = vsel %vm931, 1.0, 0.0
          %v964 = vsel %vm932, 1.0, 0.0
          %v965 = vsel %vm933, 1.0, 0.0
          %v966 = vpack.c.bf16 %v935, %v934
          %v967 = vpack.c.bf16 %v937, %v936
          %v968 = vpack.c.bf16 %v939, %v938
          %v969 = vpack.c.bf16 %v941, %v940
          %v970 = vpack.c.bf16 %v943, %v942
          %v971 = vpack.c.bf16 %v945, %v944
          %v972 = vpack.c.bf16 %v947, %v946
          %v973 = vpack.c.bf16 %v949, %v948
          %v974 = vpack.c.bf16 %v951, %v950
          %v975 = vpack.c.bf16 %v953, %v952
          %v976 = vpack.c.bf16 %v955, %v954
          %v977 = vpack.c.bf16 %v957, %v956
          %v978 = vpack.c.bf16 %v959, %v958
          %v979 = vpack.c.bf16 %v961, %v960
          %v980 = vpack.c.bf16 %v963, %v962
          %v981 = vpack.c.bf16 %v965, %v964
          %vm982 = vcmask 64512
          %v984 = vsel %vm982, %v790, 0
          %v987 = vsel %vm982, %v791, 0
          %v990 = vsel %vm982, %v792, 0
          %v993 = vsel %vm982, %v793, 0
          %v996 = vsel %vm982, %v794, 0
          %v999 = vsel %vm982, %v795, 0
          %v1002 = vsel %vm982, %v796, 0
          %v1005 = vsel %vm982, %v797, 0
          %v1008 = vsel %vm982, %v798, 0
          %v1011 = vsel %vm982, %v799, 0
          %v1014 = vsel %vm982, %v800, 0
          %v1017 = vsel %vm982, %v801, 0
          %v1020 = vsel %vm982, %v802, 0
          %v1023 = vsel %vm982, %v803, 0
          %v1026 = vsel %vm982, %v804, 0
          %v1029 = vsel %vm982, %v805, 0
          %vm1031 = vcmask 1043456
          %v1033 = vsel %vm1031, %v627, 0
          %1035 = vmatprep.subr.bf16.mxu0 0
          %1036 = vmatpush1.bf16.msra.mxu0 0
          %1037 = vmatprep.subr.bf16.mxu0 0
          %1038 = vmatpush1.bf16.msra.mxu0 0
          %1039 = vmatprep.subr.bf16.mxu0 0
          %1040 = vmatpush1.bf16.msra.mxu0 0
          %1041 = vmatprep.subr.bf16.mxu0 0
          %1042 = vmatpush1.bf16.msra.mxu0 0
          %1043 = vmatprep.subr.bf16.mxu0 0
          %1044 = vmatpush1.bf16.msra.mxu0 0
          %1045 = vmatprep.subr.bf16.mxu0 0
          %1046 = vmatpush1.bf16.msra.mxu0 0
          %1047 = vmatprep.subr.bf16.mxu0 0
          %1048 = vmatpush1.bf16.msra.mxu0 0
          %1049 = vmatprep.subr.bf16.mxu0 0
          %1050 = vmatpush1.bf16.msra.mxu0 %v1033
          %1051 = vmatprep.subr.bf16.mxu0 0
          %1052 = vmatpush2.bf16.msra.mxu0 0
          %1053 = vmatprep.subr.bf16.mxu0 0
          %1054 = vmatpush2.bf16.msra.mxu0 0
          %1055 = vmatprep.subr.bf16.mxu0 0
          %1056 = vmatpush2.bf16.msra.mxu0 0
          %1057 = vmatprep.subr.bf16.mxu0 0
          %1058 = vmatpush2.bf16.msra.mxu0 0
          %1059 = vmatprep.subr.bf16.mxu0 0
          %1060 = vmatpush2.bf16.msra.mxu0 0
          %1061 = vmatprep.subr.bf16.mxu0 0
          %1062 = vmatpush2.bf16.msra.mxu0 0
          %1063 = vmatprep.subr.bf16.mxu0 0
          %1064 = vmatpush2.bf16.msra.mxu0 0
          %1065 = vmatprep.subr.bf16.mxu0 0
          %1066 = vmatpush2.bf16.msra.mxu0 0
          %1067 = vmatprep.mubr.bf16.mxu0 0
          %1068 = vmatmul.mubr.bf16.gmra.mxu0 %v984
          %v1069 = vpop.f32.mrf.mxu0
          %v1070 = vadd.f32 0.0, %v1069
          %v1071 = vpop.f32.mrf.mxu0
          %v1072 = vpop.f32.mrf.mxu0
          %v1073 = vadd.f32 0.0, %v1072
          %v1074 = vpop.f32.mrf.mxu0
          %1075 = vmatprep.mubr.bf16.mxu0 0
          %1076 = vmatmul.mubr.bf16.gmra.mxu0 %v987
          %v1077 = vpop.f32.mrf.mxu0
          %v1078 = vadd.f32 0.0, %v1077
          %v1079 = vpop.f32.mrf.mxu0
          %v1080 = vpop.f32.mrf.mxu0
          %v1081 = vadd.f32 0.0, %v1080
          %v1082 = vpop.f32.mrf.mxu0
          %1083 = vmatprep.mubr.bf16.mxu0 0
          %1084 = vmatmul.mubr.bf16.gmra.mxu0 %v990
          %v1085 = vpop.f32.mrf.mxu0
          %v1086 = vadd.f32 0.0, %v1085
          %v1087 = vpop.f32.mrf.mxu0
          %v1088 = vpop.f32.mrf.mxu0
          %v1089 = vadd.f32 0.0, %v1088
          %v1090 = vpop.f32.mrf.mxu0
          %1091 = vmatprep.mubr.bf16.mxu0 0
          %1092 = vmatmul.mubr.bf16.gmra.mxu0 %v993
          %v1093 = vpop.f32.mrf.mxu0
          %v1094 = vadd.f32 0.0, %v1093
          %v1095 = vpop.f32.mrf.mxu0
          %v1096 = vpop.f32.mrf.mxu0
          %v1097 = vadd.f32 0.0, %v1096
          %v1098 = vpop.f32.mrf.mxu0
          %1099 = vmatprep.mubr.bf16.mxu0 0
          %1100 = vmatmul.mubr.bf16.gmra.mxu0 %v996
          %v1101 = vpop.f32.mrf.mxu0
          %v1102 = vadd.f32 0.0, %v1101
          %v1103 = vpop.f32.mrf.mxu0
          %v1104 = vpop.f32.mrf.mxu0
          %v1105 = vadd.f32 0.0, %v1104
          %v1106 = vpop.f32.mrf.mxu0
          %1107 = vmatprep.mubr.bf16.mxu0 0
          %1108 = vmatmul.mubr.bf16.gmra.mxu0 %v999
          %v1109 = vpop.f32.mrf.mxu0
          %v1110 = vadd.f32 0.0, %v1109
          %v1111 = vpop.f32.mrf.mxu0
          %v1112 = vpop.f32.mrf.mxu0
          %v1113 = vadd.f32 0.0, %v1112
          %v1114 = vpop.f32.mrf.mxu0
          %1115 = vmatprep.mubr.bf16.mxu0 0
          %1116 = vmatmul.mubr.bf16.gmra.mxu0 %v1002
          %v1117 = vpop.f32.mrf.mxu0
          %v1118 = vadd.f32 0.0, %v1117
          %v1119 = vpop.f32.mrf.mxu0
          %v1120 = vpop.f32.mrf.mxu0
          %v1121 = vadd.f32 0.0, %v1120
          %v1122 = vpop.f32.mrf.mxu0
          %1123 = vmatprep.mubr.bf16.mxu0 0
          %1124 = vmatmul.mubr.bf16.gmra.mxu0 %v1005
          %v1125 = vpop.f32.mrf.mxu0
          %v1126 = vadd.f32 0.0, %v1125
          %v1127 = vpop.f32.mrf.mxu0
          %v1128 = vpop.f32.mrf.mxu0
          %v1129 = vadd.f32 0.0, %v1128
          %v1130 = vpop.f32.mrf.mxu0
          %1131 = vmatprep.mubr.bf16.mxu0 0
          %1132 = vmatmul.mubr.bf16.gmra.mxu0 %v1008
          %v1133 = vpop.f32.mrf.mxu0
          %v1134 = vadd.f32 0.0, %v1133
          %v1135 = vpop.f32.mrf.mxu0
          %v1136 = vpop.f32.mrf.mxu0
          %v1137 = vadd.f32 0.0, %v1136
          %v1138 = vpop.f32.mrf.mxu0
          %1139 = vmatprep.mubr.bf16.mxu0 0
          %1140 = vmatmul.mubr.bf16.gmra.mxu0 %v1011
          %v1141 = vpop.f32.mrf.mxu0
          %v1142 = vadd.f32 0.0, %v1141
          %v1143 = vpop.f32.mrf.mxu0
          %v1144 = vpop.f32.mrf.mxu0
          %v1145 = vadd.f32 0.0, %v1144
          %v1146 = vpop.f32.mrf.mxu0
          %1147 = vmatprep.mubr.bf16.mxu0 0
          %1148 = vmatmul.mubr.bf16.gmra.mxu0 %v1014
          %v1149 = vpop.f32.mrf.mxu0
          %v1150 = vadd.f32 0.0, %v1149
          %v1151 = vpop.f32.mrf.mxu0
          %v1152 = vpop.f32.mrf.mxu0
          %v1153 = vadd.f32 0.0, %v1152
          %v1154 = vpop.f32.mrf.mxu0
          %1155 = vmatprep.mubr.bf16.mxu0 0
          %1156 = vmatmul.mubr.bf16.gmra.mxu0 %v1017
          %v1157 = vpop.f32.mrf.mxu0
          %v1158 = vadd.f32 0.0, %v1157
          %v1159 = vpop.f32.mrf.mxu0
          %v1160 = vpop.f32.mrf.mxu0
          %v1161 = vadd.f32 0.0, %v1160
          %v1162 = vpop.f32.mrf.mxu0
          %1163 = vmatprep.mubr.bf16.mxu0 0
          %1164 = vmatmul.mubr.bf16.gmra.mxu0 %v1020
          %v1165 = vpop.f32.mrf.mxu0
          %v1166 = vadd.f32 0.0, %v1165
          %v1167 = vpop.f32.mrf.mxu0
          %v1168 = vpop.f32.mrf.mxu0
          %v1169 = vadd.f32 0.0, %v1168
          %v1170 = vpop.f32.mrf.mxu0
          %1171 = vmatprep.mubr.bf16.mxu0 0
          %1172 = vmatmul.mubr.bf16.gmra.mxu0 %v1023
          %v1173 = vpop.f32.mrf.mxu0
          %v1174 = vadd.f32 0.0, %v1173
          %v1175 = vpop.f32.mrf.mxu0
          %v1176 = vpop.f32.mrf.mxu0
          %v1177 = vadd.f32 0.0, %v1176
          %v1178 = vpop.f32.mrf.mxu0
          %1179 = vmatprep.mubr.bf16.mxu0 0
          %1180 = vmatmul.mubr.bf16.gmra.mxu0 %v1026
          %v1181 = vpop.f32.mrf.mxu0
          %v1182 = vadd.f32 0.0, %v1181
          %v1183 = vpop.f32.mrf.mxu0
          %v1184 = vpop.f32.mrf.mxu0
          %v1185 = vadd.f32 0.0, %v1184
          %v1186 = vpop.f32.mrf.mxu0
          %1187 = vmatprep.mubr.bf16.mxu0 0
          %1188 = vmatmul.mubr.bf16.gmra.mxu0 %v1029
          %v1189 = vpop.f32.mrf.mxu0
          %v1190 = vadd.f32 0.0, %v1189
          %v1191 = vpop.f32.mrf.mxu0
          %v1192 = vpop.f32.mrf.mxu0
          %v1193 = vadd.f32 0.0, %v1192
          %v1194 = vpop.f32.mrf.mxu0
          %1195 = vdwg.mxu0
          %v1196 = vpack.c.bf16 %v1073, %v1070
          %v1197 = vpack.c.bf16 %v1081, %v1078
          %v1198 = vpack.c.bf16 %v1089, %v1086
          %v1199 = vpack.c.bf16 %v1097, %v1094
          %v1200 = vpack.c.bf16 %v1105, %v1102
          %v1201 = vpack.c.bf16 %v1113, %v1110
          %v1202 = vpack.c.bf16 %v1121, %v1118
          %v1203 = vpack.c.bf16 %v1129, %v1126
          %v1204 = vpack.c.bf16 %v1137, %v1134
          %v1205 = vpack.c.bf16 %v1145, %v1142
          %v1206 = vpack.c.bf16 %v1153, %v1150
          %v1207 = vpack.c.bf16 %v1161, %v1158
          %v1208 = vpack.c.bf16 %v1169, %v1166
          %v1209 = vpack.c.bf16 %v1177, %v1174
          %v1210 = vpack.c.bf16 %v1185, %v1182
          %v1211 = vpack.c.bf16 %v1193, %v1190
          %v1212 = vld [vmem:[%s3] sm:$0xf]
          %v1213 = vld [vmem:[%s3 + $0x4] sm:$0xf]
          %v1214 = vld [vmem:[%s3 + $0x8] sm:$0xf]
          %v1215 = vld [vmem:[%s3 + $0xc] sm:$0xf]
          %v1216 = vld [vmem:[%s4] sm:$0xf]
          %v1218 = vsel %vm982, %v966, 0
          %v1221 = vsel %vm982, %v967, 0
          %v1224 = vsel %vm982, %v968, 0
          %v1227 = vsel %vm982, %v969, 0
          %v1230 = vsel %vm982, %v970, 0
          %v1233 = vsel %vm982, %v971, 0
          %v1236 = vsel %vm982, %v972, 0
          %v1239 = vsel %vm982, %v973, 0
          %v1242 = vsel %vm982, %v974, 0
          %v1245 = vsel %vm982, %v975, 0
          %v1248 = vsel %vm982, %v976, 0
          %v1251 = vsel %vm982, %v977, 0
          %v1254 = vsel %vm982, %v978, 0
          %v1257 = vsel %vm982, %v979, 0
          %v1260 = vsel %vm982, %v980, 0
          %v1263 = vsel %vm982, %v981, 0
          %v1266 = vsel %vm1031, %v1216, 0
          %1268 = vmatprep.subr.bf16.mxu0 0
          %1269 = vmatpush1.bf16.msra.mxu0 0
          %1270 = vmatprep.subr.bf16.mxu0 0
          %1271 = vmatpush1.bf16.msra.mxu0 0
          %1272 = vmatprep.subr.bf16.mxu0 0
          %1273 = vmatpush1.bf16.msra.mxu0 0
          %1274 = vmatprep.subr.bf16.mxu0 0
          %1275 = vmatpush1.bf16.msra.mxu0 0
          %1276 = vmatprep.subr.bf16.mxu0 0
          %1277 = vmatpush1.bf16.msra.mxu0 0
          %1278 = vmatprep.subr.bf16.mxu0 0
          %1279 = vmatpush1.bf16.msra.mxu0 0
          %1280 = vmatprep.subr.bf16.mxu0 0
          %1281 = vmatpush1.bf16.msra.mxu0 0
          %1282 = vmatprep.subr.bf16.mxu0 0
          %1283 = vmatpush1.bf16.msra.mxu0 %v1266
          %1284 = vmatprep.subr.bf16.mxu0 0
          %1285 = vmatpush2.bf16.msra.mxu0 0
          %1286 = vmatprep.subr.bf16.mxu0 0
          %1287 = vmatpush2.bf16.msra.mxu0 0
          %1288 = vmatprep.subr.bf16.mxu0 0
          %1289 = vmatpush2.bf16.msra.mxu0 0
          %1290 = vmatprep.subr.bf16.mxu0 0
          %1291 = vmatpush2.bf16.msra.mxu0 0
          %1292 = vmatprep.subr.bf16.mxu0 0
          %1293 = vmatpush2.bf16.msra.mxu0 0
          %1294 = vmatprep.subr.bf16.mxu0 0
          %1295 = vmatpush2.bf16.msra.mxu0 0
          %1296 = vmatprep.subr.bf16.mxu0 0
          %1297 = vmatpush2.bf16.msra.mxu0 0
          %1298 = vmatprep.subr.bf16.mxu0 0
          %1299 = vmatpush2.bf16.msra.mxu0 0
          %1300 = vmatprep.mubr.bf16.mxu0 0
          %1301 = vmatmul.mubr.bf16.gmra.mxu0 %v1218
          %v1302 = vpop.f32.mrf.mxu0
          %v1303 = vadd.f32 0.0, %v1302
          %v1304 = vpop.f32.mrf.mxu0
          %v1305 = vpop.f32.mrf.mxu0
          %v1306 = vadd.f32 0.0, %v1305
          %v1307 = vpop.f32.mrf.mxu0
          %1308 = vmatprep.mubr.bf16.mxu0 0
          %1309 = vmatmul.mubr.bf16.gmra.mxu0 %v1221
          %v1310 = vpop.f32.mrf.mxu0
          %v1311 = vadd.f32 0.0, %v1310
          %v1312 = vpop.f32.mrf.mxu0
          %v1313 = vpop.f32.mrf.mxu0
          %v1314 = vadd.f32 0.0, %v1313
          %v1315 = vpop.f32.mrf.mxu0
          %1316 = vmatprep.mubr.bf16.mxu0 0
          %1317 = vmatmul.mubr.bf16.gmra.mxu0 %v1224
          %v1318 = vpop.f32.mrf.mxu0
          %v1319 = vadd.f32 0.0, %v1318
          %v1320 = vpop.f32.mrf.mxu0
          %v1321 = vpop.f32.mrf.mxu0
          %v1322 = vadd.f32 0.0, %v1321
          %v1323 = vpop.f32.mrf.mxu0
          %1324 = vmatprep.mubr.bf16.mxu0 0
          %1325 = vmatmul.mubr.bf16.gmra.mxu0 %v1227
          %v1326 = vpop.f32.mrf.mxu0
          %v1327 = vadd.f32 0.0, %v1326
          %v1328 = vpop.f32.mrf.mxu0
          %v1329 = vpop.f32.mrf.mxu0
          %v1330 = vadd.f32 0.0, %v1329
          %v1331 = vpop.f32.mrf.mxu0
          %1332 = vmatprep.mubr.bf16.mxu0 0
          %1333 = vmatmul.mubr.bf16.gmra.mxu0 %v1230
          %v1334 = vpop.f32.mrf.mxu0
          %v1335 = vadd.f32 0.0, %v1334
          %v1336 = vpop.f32.mrf.mxu0
          %v1337 = vpop.f32.mrf.mxu0
          %v1338 = vadd.f32 0.0, %v1337
          %v1339 = vpop.f32.mrf.mxu0
          %1340 = vmatprep.mubr.bf16.mxu0 0
          %1341 = vmatmul.mubr.bf16.gmra.mxu0 %v1233
          %v1342 = vpop.f32.mrf.mxu0
          %v1343 = vadd.f32 0.0, %v1342
          %v1344 = vpop.f32.mrf.mxu0
          %v1345 = vpop.f32.mrf.mxu0
          %v1346 = vadd.f32 0.0, %v1345
          %v1347 = vpop.f32.mrf.mxu0
          %1348 = vmatprep.mubr.bf16.mxu0 0
          %1349 = vmatmul.mubr.bf16.gmra.mxu0 %v1236
          %v1350 = vpop.f32.mrf.mxu0
          %v1351 = vadd.f32 0.0, %v1350
          %v1352 = vpop.f32.mrf.mxu0
          %v1353 = vpop.f32.mrf.mxu0
          %v1354 = vadd.f32 0.0, %v1353
          %v1355 = vpop.f32.mrf.mxu0
          %1356 = vmatprep.mubr.bf16.mxu0 0
          %1357 = vmatmul.mubr.bf16.gmra.mxu0 %v1239
          %v1358 = vpop.f32.mrf.mxu0
          %v1359 = vadd.f32 0.0, %v1358
          %v1360 = vpop.f32.mrf.mxu0
          %v1361 = vpop.f32.mrf.mxu0
          %v1362 = vadd.f32 0.0, %v1361
          %v1363 = vpop.f32.mrf.mxu0
          %1364 = vmatprep.mubr.bf16.mxu0 0
          %1365 = vmatmul.mubr.bf16.gmra.mxu0 %v1242
          %v1366 = vpop.f32.mrf.mxu0
          %v1367 = vadd.f32 0.0, %v1366
          %v1368 = vpop.f32.mrf.mxu0
          %v1369 = vpop.f32.mrf.mxu0
          %v1370 = vadd.f32 0.0, %v1369
          %v1371 = vpop.f32.mrf.mxu0
          %1372 = vmatprep.mubr.bf16.mxu0 0
          %1373 = vmatmul.mubr.bf16.gmra.mxu0 %v1245
          %v1374 = vpop.f32.mrf.mxu0
          %v1375 = vadd.f32 0.0, %v1374
          %v1376 = vpop.f32.mrf.mxu0
          %v1377 = vpop.f32.mrf.mxu0
          %v1378 = vadd.f32 0.0, %v1377
          %v1379 = vpop.f32.mrf.mxu0
          %1380 = vmatprep.mubr.bf16.mxu0 0
          %1381 = vmatmul.mubr.bf16.gmra.mxu0 %v1248
          %v1382 = vpop.f32.mrf.mxu0
          %v1383 = vadd.f32 0.0, %v1382
          %v1384 = vpop.f32.mrf.mxu0
          %v1385 = vpop.f32.mrf.mxu0
          %v1386 = vadd.f32 0.0, %v1385
          %v1387 = vpop.f32.mrf.mxu0
          %1388 = vmatprep.mubr.bf16.mxu0 0
          %1389 = vmatmul.mubr.bf16.gmra.mxu0 %v1251
          %v1390 = vpop.f32.mrf.mxu0
          %v1391 = vadd.f32 0.0, %v1390
          %v1392 = vpop.f32.mrf.mxu0
          %v1393 = vpop.f32.mrf.mxu0
          %v1394 = vadd.f32 0.0, %v1393
          %v1395 = vpop.f32.mrf.mxu0
          %1396 = vmatprep.mubr.bf16.mxu0 0
          %1397 = vmatmul.mubr.bf16.gmra.mxu0 %v1254
          %v1398 = vpop.f32.mrf.mxu0
          %v1399 = vadd.f32 0.0, %v1398
          %v1400 = vpop.f32.mrf.mxu0
          %v1401 = vpop.f32.mrf.mxu0
          %v1402 = vadd.f32 0.0, %v1401
          %v1403 = vpop.f32.mrf.mxu0
          %1404 = vmatprep.mubr.bf16.mxu0 0
          %1405 = vmatmul.mubr.bf16.gmra.mxu0 %v1257
          %v1406 = vpop.f32.mrf.mxu0
          %v1407 = vadd.f32 0.0, %v1406
          %v1408 = vpop.f32.mrf.mxu0
          %v1409 = vpop.f32.mrf.mxu0
          %v1410 = vadd.f32 0.0, %v1409
          %v1411 = vpop.f32.mrf.mxu0
          %1412 = vmatprep.mubr.bf16.mxu0 0
          %1413 = vmatmul.mubr.bf16.gmra.mxu0 %v1260
          %v1414 = vpop.f32.mrf.mxu0
          %v1415 = vadd.f32 0.0, %v1414
          %v1416 = vpop.f32.mrf.mxu0
          %v1417 = vpop.f32.mrf.mxu0
          %v1418 = vadd.f32 0.0, %v1417
          %v1419 = vpop.f32.mrf.mxu0
          %1420 = vmatprep.mubr.bf16.mxu0 0
          %1421 = vmatmul.mubr.bf16.gmra.mxu0 %v1263
          %v1422 = vpop.f32.mrf.mxu0
          %v1423 = vadd.f32 0.0, %v1422
          %v1424 = vpop.f32.mrf.mxu0
          %v1425 = vpop.f32.mrf.mxu0
          %v1426 = vadd.f32 0.0, %v1425
          %v1427 = vpop.f32.mrf.mxu0
          %1428 = vdwg.mxu0
          %v1433 = vunpack.c.l.b16 %v1212
          %v1434 = vunpack.c.l.b16 %v1213
          %v1435 = vunpack.c.l.b16 %v1214
          %v1436 = vunpack.c.l.b16 %v1215
          %v1437 = vpack.c.b16 %v1434, %v1433
          %v1438 = vpack.c.b16 %v1436, %v1435
          %vm1441 = vcmask 261120
          %v1443 = vsel %vm1441, %v1196, 0
          %v1446 = vsel %vm1441, %v1197, 0
          %v1449 = vsel %vm1441, %v1198, 0
          %v1452 = vsel %vm1441, %v1199, 0
          %v1455 = vsel %vm1441, %v1200, 0
          %v1458 = vsel %vm1441, %v1201, 0
          %v1461 = vsel %vm1441, %v1202, 0
          %v1464 = vsel %vm1441, %v1203, 0
          %v1467 = vsel %vm1441, %v1204, 0
          %v1470 = vsel %vm1441, %v1205, 0
          %v1473 = vsel %vm1441, %v1206, 0
          %v1476 = vsel %vm1441, %v1207, 0
          %v1479 = vsel %vm1441, %v1208, 0
          %v1482 = vsel %vm1441, %v1209, 0
          %v1485 = vsel %vm1441, %v1210, 0
          %v1488 = vsel %vm1441, %v1211, 0
          %1490 = vmatprep.subr.bf16.mxu0 0
          %1491 = vmatpush1.bf16.msra.mxu0 0
          %1492 = vmatprep.subr.bf16.mxu0 0
          %1493 = vmatpush1.bf16.msra.mxu0 0
          %1494 = vmatprep.subr.bf16.mxu0 0
          %1495 = vmatpush1.bf16.msra.mxu0 0
          %1496 = vmatprep.subr.bf16.mxu0 0
          %1497 = vmatpush1.bf16.msra.mxu0 0
          %1498 = vmatprep.subr.bf16.mxu0 0
          %1499 = vmatpush1.bf16.msra.mxu0 0
          %1500 = vmatprep.subr.bf16.mxu0 0
          %1501 = vmatpush1.bf16.msra.mxu0 0
          %1502 = vmatprep.subr.bf16.mxu0 0
          %1503 = vmatpush1.bf16.msra.mxu0 %v1438
          %1504 = vmatprep.subr.bf16.mxu0 0
          %1505 = vmatpush1.bf16.msra.mxu0 %v1437
          %1506 = vmatprep.subr.bf16.mxu0 0
          %1507 = vmatpush2.bf16.msra.mxu0 0
          %1508 = vmatprep.subr.bf16.mxu0 0
          %1509 = vmatpush2.bf16.msra.mxu0 0
          %1510 = vmatprep.subr.bf16.mxu0 0
          %1511 = vmatpush2.bf16.msra.mxu0 0
          %1512 = vmatprep.subr.bf16.mxu0 0
          %1513 = vmatpush2.bf16.msra.mxu0 0
          %1514 = vmatprep.subr.bf16.mxu0 0
          %1515 = vmatpush2.bf16.msra.mxu0 0
          %1516 = vmatprep.subr.bf16.mxu0 0
          %1517 = vmatpush2.bf16.msra.mxu0 0
          %1518 = vmatprep.subr.bf16.mxu0 0
          %1519 = vmatpush2.bf16.msra.mxu0 0
          %1520 = vmatprep.subr.bf16.mxu0 0
          %1521 = vmatpush2.bf16.msra.mxu0 0
          %1522 = vmatprep.mubr.bf16.mxu0 0
          %1523 = vmatmul.mubr.bf16.gmra.mxu0 %v1443
          %v1524 = vpop.f32.mrf.mxu0
          %v1525 = vadd.f32 %v1303, %v1524
          %v1526 = vpop.f32.mrf.mxu0
          %v1527 = vpop.f32.mrf.mxu0
          %v1528 = vadd.f32 %v1306, %v1527
          %v1529 = vpop.f32.mrf.mxu0
          %1530 = vmatprep.mubr.bf16.mxu0 0
          %1531 = vmatmul.mubr.bf16.gmra.mxu0 %v1446
          %v1532 = vpop.f32.mrf.mxu0
          %v1533 = vadd.f32 %v1311, %v1532
          %v1534 = vpop.f32.mrf.mxu0
          %v1535 = vpop.f32.mrf.mxu0
          %v1536 = vadd.f32 %v1314, %v1535
          %v1537 = vpop.f32.mrf.mxu0
          %1538 = vmatprep.mubr.bf16.mxu0 0
          %1539 = vmatmul.mubr.bf16.gmra.mxu0 %v1449
          %v1540 = vpop.f32.mrf.mxu0
          %v1541 = vadd.f32 %v1319, %v1540
          %v1542 = vpop.f32.mrf.mxu0
          %v1543 = vpop.f32.mrf.mxu0
          %v1544 = vadd.f32 %v1322, %v1543
          %v1545 = vpop.f32.mrf.mxu0
          %1546 = vmatprep.mubr.bf16.mxu0 0
          %1547 = vmatmul.mubr.bf16.gmra.mxu0 %v1452
          %v1548 = vpop.f32.mrf.mxu0
          %v1549 = vadd.f32 %v1327, %v1548
          %v1550 = vpop.f32.mrf.mxu0
          %v1551 = vpop.f32.mrf.mxu0
          %v1552 = vadd.f32 %v1330, %v1551
          %v1553 = vpop.f32.mrf.mxu0
          %1554 = vmatprep.mubr.bf16.mxu0 0
          %1555 = vmatmul.mubr.bf16.gmra.mxu0 %v1455
          %v1556 = vpop.f32.mrf.mxu0
          %v1557 = vadd.f32 %v1335, %v1556
          %v1558 = vpop.f32.mrf.mxu0
          %v1559 = vpop.f32.mrf.mxu0
          %v1560 = vadd.f32 %v1338, %v1559
          %v1561 = vpop.f32.mrf.mxu0
          %1562 = vmatprep.mubr.bf16.mxu0 0
          %1563 = vmatmul.mubr.bf16.gmra.mxu0 %v1458
          %v1564 = vpop.f32.mrf.mxu0
          %v1565 = vadd.f32 %v1343, %v1564
          %v1566 = vpop.f32.mrf.mxu0
          %v1567 = vpop.f32.mrf.mxu0
          %v1568 = vadd.f32 %v1346, %v1567
          %v1569 = vpop.f32.mrf.mxu0
          %1570 = vmatprep.mubr.bf16.mxu0 0
          %1571 = vmatmul.mubr.bf16.gmra.mxu0 %v1461
          %v1572 = vpop.f32.mrf.mxu0
          %v1573 = vadd.f32 %v1351, %v1572
          %v1574 = vpop.f32.mrf.mxu0
          %v1575 = vpop.f32.mrf.mxu0
          %v1576 = vadd.f32 %v1354, %v1575
          %v1577 = vpop.f32.mrf.mxu0
          %1578 = vmatprep.mubr.bf16.mxu0 0
          %1579 = vmatmul.mubr.bf16.gmra.mxu0 %v1464
          %v1580 = vpop.f32.mrf.mxu0
          %v1581 = vadd.f32 %v1359, %v1580
          %v1582 = vpop.f32.mrf.mxu0
          %v1583 = vpop.f32.mrf.mxu0
          %v1584 = vadd.f32 %v1362, %v1583
          %v1585 = vpop.f32.mrf.mxu0
          %1586 = vmatprep.mubr.bf16.mxu0 0
          %1587 = vmatmul.mubr.bf16.gmra.mxu0 %v1467
          %v1588 = vpop.f32.mrf.mxu0
          %v1589 = vadd.f32 %v1367, %v1588
          %v1590 = vpop.f32.mrf.mxu0
          %v1591 = vpop.f32.mrf.mxu0
          %v1592 = vadd.f32 %v1370, %v1591
          %v1593 = vpop.f32.mrf.mxu0
          %1594 = vmatprep.mubr.bf16.mxu0 0
          %1595 = vmatmul.mubr.bf16.gmra.mxu0 %v1470
          %v1596 = vpop.f32.mrf.mxu0
          %v1597 = vadd.f32 %v1375, %v1596
          %v1598 = vpop.f32.mrf.mxu0
          %v1599 = vpop.f32.mrf.mxu0
          %v1600 = vadd.f32 %v1378, %v1599
          %v1601 = vpop.f32.mrf.mxu0
          %1602 = vmatprep.mubr.bf16.mxu0 0
          %1603 = vmatmul.mubr.bf16.gmra.mxu0 %v1473
          %v1604 = vpop.f32.mrf.mxu0
          %v1605 = vadd.f32 %v1383, %v1604
          %v1606 = vpop.f32.mrf.mxu0
          %v1607 = vpop.f32.mrf.mxu0
          %v1608 = vadd.f32 %v1386, %v1607
          %v1609 = vpop.f32.mrf.mxu0
          %1610 = vmatprep.mubr.bf16.mxu0 0
          %1611 = vmatmul.mubr.bf16.gmra.mxu0 %v1476
          %v1612 = vpop.f32.mrf.mxu0
          %v1613 = vadd.f32 %v1391, %v1612
          %v1614 = vpop.f32.mrf.mxu0
          %v1615 = vpop.f32.mrf.mxu0
          %v1616 = vadd.f32 %v1394, %v1615
          %v1617 = vpop.f32.mrf.mxu0
          %1618 = vmatprep.mubr.bf16.mxu0 0
          %1619 = vmatmul.mubr.bf16.gmra.mxu0 %v1479
          %v1620 = vpop.f32.mrf.mxu0
          %v1621 = vadd.f32 %v1399, %v1620
          %v1622 = vpop.f32.mrf.mxu0
          %v1623 = vpop.f32.mrf.mxu0
          %v1624 = vadd.f32 %v1402, %v1623
          %v1625 = vpop.f32.mrf.mxu0
          %1626 = vmatprep.mubr.bf16.mxu0 0
          %1627 = vmatmul.mubr.bf16.gmra.mxu0 %v1482
          %v1628 = vpop.f32.mrf.mxu0
          %v1629 = vadd.f32 %v1407, %v1628
          %v1630 = vpop.f32.mrf.mxu0
          %v1631 = vpop.f32.mrf.mxu0
          %v1632 = vadd.f32 %v1410, %v1631
          %v1633 = vpop.f32.mrf.mxu0
          %1634 = vmatprep.mubr.bf16.mxu0 0
          %1635 = vmatmul.mubr.bf16.gmra.mxu0 %v1485
          %v1636 = vpop.f32.mrf.mxu0
          %v1637 = vadd.f32 %v1415, %v1636
          %v1638 = vpop.f32.mrf.mxu0
          %v1639 = vpop.f32.mrf.mxu0
          %v1640 = vadd.f32 %v1418, %v1639
          %v1641 = vpop.f32.mrf.mxu0
          %1642 = vmatprep.mubr.bf16.mxu0 0
          %1643 = vmatmul.mubr.bf16.gmra.mxu0 %v1488
          %v1644 = vpop.f32.mrf.mxu0
          %v1645 = vadd.f32 %v1423, %v1644
          %v1646 = vpop.f32.mrf.mxu0
          %v1647 = vpop.f32.mrf.mxu0
          %v1648 = vadd.f32 %v1426, %v1647
          %v1649 = vpop.f32.mrf.mxu0
          %1650 = vdwg.mxu0
          %v1651 = vld [vmem:[%s5] sm:$0x1]
          %v1653 = vlaneseq
          %v1654 = vshrl.u32 %v1653, 7
          %v1655 = vsub.s32 0, %v1654
          %v1656 = vrot.slane %v1651, %v1655
          %v1658 = vadd.f32 %v1525, %v1656
          %v1659 = vadd.f32 %v1528, %v1656
          %v1660 = vadd.f32 %v1533, %v1656
          %v1661 = vadd.f32 %v1536, %v1656
          %v1662 = vadd.f32 %v1541, %v1656
          %v1663 = vadd.f32 %v1544, %v1656
          %v1664 = vadd.f32 %v1549, %v1656
          %v1665 = vadd.f32 %v1552, %v1656
          %v1666 = vadd.f32 %v1557, %v1656
          %v1667 = vadd.f32 %v1560, %v1656
          %v1668 = vadd.f32 %v1565, %v1656
          %v1669 = vadd.f32 %v1568, %v1656
          %v1670 = vadd.f32 %v1573, %v1656
          %v1671 = vadd.f32 %v1576, %v1656
          %v1672 = vadd.f32 %v1581, %v1656
          %v1673 = vadd.f32 %v1584, %v1656
          %v1674 = vadd.f32 %v1589, %v1656
          %v1675 = vadd.f32 %v1592, %v1656
          %v1676 = vadd.f32 %v1597, %v1656
          %v1677 = vadd.f32 %v1600, %v1656
          %v1678 = vadd.f32 %v1605, %v1656
          %v1679 = vadd.f32 %v1608, %v1656
          %v1680 = vadd.f32 %v1613, %v1656
          %v1681 = vadd.f32 %v1616, %v1656
          %v1682 = vadd.f32 %v1621, %v1656
          %v1683 = vadd.f32 %v1624, %v1656
          %v1684 = vadd.f32 %v1629, %v1656
          %v1685 = vadd.f32 %v1632, %v1656
          %v1686 = vadd.f32 %v1637, %v1656
          %v1687 = vadd.f32 %v1640, %v1656
          %v1688 = vadd.f32 %v1645, %v1656
          %v1689 = vadd.f32 %v1648, %v1656
          %v1690 = vmax.f32 %v1658, 0.0
          %v1691 = vmax.f32 %v1659, 0.0
          %v1692 = vmax.f32 %v1660, 0.0
          %v1693 = vmax.f32 %v1661, 0.0
          %v1694 = vmax.f32 %v1662, 0.0
          %v1695 = vmax.f32 %v1663, 0.0
          %v1696 = vmax.f32 %v1664, 0.0
          %v1697 = vmax.f32 %v1665, 0.0
          %v1698 = vmax.f32 %v1666, 0.0
          %v1699 = vmax.f32 %v1667, 0.0
          %v1700 = vmax.f32 %v1668, 0.0
          %v1701 = vmax.f32 %v1669, 0.0
          %v1702 = vmax.f32 %v1670, 0.0
          %v1703 = vmax.f32 %v1671, 0.0
          %v1704 = vmax.f32 %v1672, 0.0
          %v1705 = vmax.f32 %v1673, 0.0
          %v1706 = vmax.f32 %v1674, 0.0
          %v1707 = vmax.f32 %v1675, 0.0
          %v1708 = vmax.f32 %v1676, 0.0
          %v1709 = vmax.f32 %v1677, 0.0
          %v1710 = vmax.f32 %v1678, 0.0
          %v1711 = vmax.f32 %v1679, 0.0
          %v1712 = vmax.f32 %v1680, 0.0
          %v1713 = vmax.f32 %v1681, 0.0
          %v1714 = vmax.f32 %v1682, 0.0
          %v1715 = vmax.f32 %v1683, 0.0
          %v1716 = vmax.f32 %v1684, 0.0
          %v1717 = vmax.f32 %v1685, 0.0
          %v1718 = vmax.f32 %v1686, 0.0
          %v1719 = vmax.f32 %v1687, 0.0
          %v1720 = vmax.f32 %v1688, 0.0
          %v1721 = vmax.f32 %v1689, 0.0
          %v1722 = vpack.c.bf16 %v1691, %v1690
          %v1723 = vpack.c.bf16 %v1693, %v1692
          %v1724 = vpack.c.bf16 %v1695, %v1694
          %v1725 = vpack.c.bf16 %v1697, %v1696
          %v1726 = vpack.c.bf16 %v1699, %v1698
          %v1727 = vpack.c.bf16 %v1701, %v1700
          %v1728 = vpack.c.bf16 %v1703, %v1702
          %v1729 = vpack.c.bf16 %v1705, %v1704
          %v1730 = vpack.c.bf16 %v1707, %v1706
          %v1731 = vpack.c.bf16 %v1709, %v1708
          %v1732 = vpack.c.bf16 %v1711, %v1710
          %v1733 = vpack.c.bf16 %v1713, %v1712
          %v1734 = vpack.c.bf16 %v1715, %v1714
          %v1735 = vpack.c.bf16 %v1717, %v1716
          %v1736 = vpack.c.bf16 %v1719, %v1718
          %v1737 = vpack.c.bf16 %v1721, %v1720
          %v1738 = vld [vmem:[%s6] sm:$0xf]
          %v1739 = vld [vmem:[%s6 + $0x4] sm:$0xf]
          %v1740 = vld [vmem:[%s6 + $0x8] sm:$0xf]
          %v1741 = vld [vmem:[%s6 + $0xc] sm:$0xf]
          %v1742 = vld [vmem:[%s7] sm:$0x1]
          %v1744 = vlaneseq
          %v1745 = vshrl.u32 %v1744, 7
          %v1746 = vsub.s32 0, %v1745
          %v1747 = vrot.slane %v1742, %v1746
          %v1753 = vunpack.c.l.b16 %v1738
          %v1754 = vunpack.c.l.b16 %v1739
          %v1755 = vunpack.c.l.b16 %v1740
          %v1756 = vunpack.c.l.b16 %v1741
          %v1757 = vpack.c.b16 %v1754, %v1753
          %v1758 = vpack.c.b16 %v1756, %v1755
          %v1762 = vsel %vm1441, %v1722, 0
          %v1765 = vsel %vm1441, %v1723, 0
          %v1768 = vsel %vm1441, %v1724, 0
          %v1771 = vsel %vm1441, %v1725, 0
          %v1774 = vsel %vm1441, %v1726, 0
          %v1777 = vsel %vm1441, %v1727, 0
          %v1780 = vsel %vm1441, %v1728, 0
          %v1783 = vsel %vm1441, %v1729, 0
          %v1786 = vsel %vm1441, %v1730, 0
          %v1789 = vsel %vm1441, %v1731, 0
          %v1792 = vsel %vm1441, %v1732, 0
          %v1795 = vsel %vm1441, %v1733, 0
          %v1798 = vsel %vm1441, %v1734, 0
          %v1801 = vsel %vm1441, %v1735, 0
          %v1804 = vsel %vm1441, %v1736, 0
          %v1807 = vsel %vm1441, %v1737, 0
          %1809 = vmatprep.subr.bf16.mxu0 0
          %1810 = vmatpush1.bf16.msra.mxu0 0
          %1811 = vmatprep.subr.bf16.mxu0 0
          %1812 = vmatpush1.bf16.msra.mxu0 0
          %1813 = vmatprep.subr.bf16.mxu0 0
          %1814 = vmatpush1.bf16.msra.mxu0 0
          %1815 = vmatprep.subr.bf16.mxu0 0
          %1816 = vmatpush1.bf16.msra.mxu0 0
          %1817 = vmatprep.subr.bf16.mxu0 0
          %1818 = vmatpush1.bf16.msra.mxu0 0
          %1819 = vmatprep.subr.bf16.mxu0 0
          %1820 = vmatpush1.bf16.msra.mxu0 0
          %1821 = vmatprep.subr.bf16.mxu0 0
          %1822 = vmatpush1.bf16.msra.mxu0 %v1758
          %1823 = vmatprep.subr.bf16.mxu0 0
          %1824 = vmatpush1.bf16.msra.mxu0 %v1757
          %1825 = vmatprep.subr.bf16.mxu0 0
          %1826 = vmatpush2.bf16.msra.mxu0 0
          %1827 = vmatprep.subr.bf16.mxu0 0
          %1828 = vmatpush2.bf16.msra.mxu0 0
          %1829 = vmatprep.subr.bf16.mxu0 0
          %1830 = vmatpush2.bf16.msra.mxu0 0
          %1831 = vmatprep.subr.bf16.mxu0 0
          %1832 = vmatpush2.bf16.msra.mxu0 0
          %1833 = vmatprep.subr.bf16.mxu0 0
          %1834 = vmatpush2.bf16.msra.mxu0 0
          %1835 = vmatprep.subr.bf16.mxu0 0
          %1836 = vmatpush2.bf16.msra.mxu0 0
          %1837 = vmatprep.subr.bf16.mxu0 0
          %1838 = vmatpush2.bf16.msra.mxu0 0
          %1839 = vmatprep.subr.bf16.mxu0 0
          %1840 = vmatpush2.bf16.msra.mxu0 0
          %1841 = vmatprep.mubr.bf16.mxu0 0
          %1842 = vmatmul.mubr.bf16.gmra.mxu0 %v1762
          %v1843 = vpop.f32.mrf.mxu0
          %v1844 = vadd.f32 %v1747, %v1843
          %v1845 = vpop.f32.mrf.mxu0
          %v1846 = vpop.f32.mrf.mxu0
          %v1847 = vadd.f32 %v1747, %v1846
          %v1848 = vpop.f32.mrf.mxu0
          %1849 = vmatprep.mubr.bf16.mxu0 0
          %1850 = vmatmul.mubr.bf16.gmra.mxu0 %v1765
          %v1851 = vpop.f32.mrf.mxu0
          %v1852 = vadd.f32 %v1747, %v1851
          %v1853 = vpop.f32.mrf.mxu0
          %v1854 = vpop.f32.mrf.mxu0
          %v1855 = vadd.f32 %v1747, %v1854
          %v1856 = vpop.f32.mrf.mxu0
          %1857 = vmatprep.mubr.bf16.mxu0 0
          %1858 = vmatmul.mubr.bf16.gmra.mxu0 %v1768
          %v1859 = vpop.f32.mrf.mxu0
          %v1860 = vadd.f32 %v1747, %v1859
          %v1861 = vpop.f32.mrf.mxu0
          %v1862 = vpop.f32.mrf.mxu0
          %v1863 = vadd.f32 %v1747, %v1862
          %v1864 = vpop.f32.mrf.mxu0
          %1865 = vmatprep.mubr.bf16.mxu0 0
          %1866 = vmatmul.mubr.bf16.gmra.mxu0 %v1771
          %v1867 = vpop.f32.mrf.mxu0
          %v1868 = vadd.f32 %v1747, %v1867
          %v1869 = vpop.f32.mrf.mxu0
          %v1870 = vpop.f32.mrf.mxu0
          %v1871 = vadd.f32 %v1747, %v1870
          %v1872 = vpop.f32.mrf.mxu0
          %1873 = vmatprep.mubr.bf16.mxu0 0
          %1874 = vmatmul.mubr.bf16.gmra.mxu0 %v1774
          %v1875 = vpop.f32.mrf.mxu0
          %v1876 = vadd.f32 %v1747, %v1875
          %v1877 = vpop.f32.mrf.mxu0
          %v1878 = vpop.f32.mrf.mxu0
          %v1879 = vadd.f32 %v1747, %v1878
          %v1880 = vpop.f32.mrf.mxu0
          %1881 = vmatprep.mubr.bf16.mxu0 0
          %1882 = vmatmul.mubr.bf16.gmra.mxu0 %v1777
          %v1883 = vpop.f32.mrf.mxu0
          %v1884 = vadd.f32 %v1747, %v1883
          %v1885 = vpop.f32.mrf.mxu0
          %v1886 = vpop.f32.mrf.mxu0
          %v1887 = vadd.f32 %v1747, %v1886
          %v1888 = vpop.f32.mrf.mxu0
          %1889 = vmatprep.mubr.bf16.mxu0 0
          %1890 = vmatmul.mubr.bf16.gmra.mxu0 %v1780
          %v1891 = vpop.f32.mrf.mxu0
          %v1892 = vadd.f32 %v1747, %v1891
          %v1893 = vpop.f32.mrf.mxu0
          %v1894 = vpop.f32.mrf.mxu0
          %v1895 = vadd.f32 %v1747, %v1894
          %v1896 = vpop.f32.mrf.mxu0
          %1897 = vmatprep.mubr.bf16.mxu0 0
          %1898 = vmatmul.mubr.bf16.gmra.mxu0 %v1783
          %v1899 = vpop.f32.mrf.mxu0
          %v1900 = vadd.f32 %v1747, %v1899
          %v1901 = vpop.f32.mrf.mxu0
          %v1902 = vpop.f32.mrf.mxu0
          %v1903 = vadd.f32 %v1747, %v1902
          %v1904 = vpop.f32.mrf.mxu0
          %1905 = vmatprep.mubr.bf16.mxu0 0
          %1906 = vmatmul.mubr.bf16.gmra.mxu0 %v1786
          %v1907 = vpop.f32.mrf.mxu0
          %v1908 = vadd.f32 %v1747, %v1907
          %v1909 = vpop.f32.mrf.mxu0
          %v1910 = vpop.f32.mrf.mxu0
          %v1911 = vadd.f32 %v1747, %v1910
          %v1912 = vpop.f32.mrf.mxu0
          %1913 = vmatprep.mubr.bf16.mxu0 0
          %1914 = vmatmul.mubr.bf16.gmra.mxu0 %v1789
          %v1915 = vpop.f32.mrf.mxu0
          %v1916 = vadd.f32 %v1747, %v1915
          %v1917 = vpop.f32.mrf.mxu0
          %v1918 = vpop.f32.mrf.mxu0
          %v1919 = vadd.f32 %v1747, %v1918
          %v1920 = vpop.f32.mrf.mxu0
          %1921 = vmatprep.mubr.bf16.mxu0 0
          %1922 = vmatmul.mubr.bf16.gmra.mxu0 %v1792
          %v1923 = vpop.f32.mrf.mxu0
          %v1924 = vadd.f32 %v1747, %v1923
          %v1925 = vpop.f32.mrf.mxu0
          %v1926 = vpop.f32.mrf.mxu0
          %v1927 = vadd.f32 %v1747, %v1926
          %v1928 = vpop.f32.mrf.mxu0
          %1929 = vmatprep.mubr.bf16.mxu0 0
          %1930 = vmatmul.mubr.bf16.gmra.mxu0 %v1795
          %v1931 = vpop.f32.mrf.mxu0
          %v1932 = vadd.f32 %v1747, %v1931
          %v1933 = vpop.f32.mrf.mxu0
          %v1934 = vpop.f32.mrf.mxu0
          %v1935 = vadd.f32 %v1747, %v1934
          %v1936 = vpop.f32.mrf.mxu0
          %1937 = vmatprep.mubr.bf16.mxu0 0
          %1938 = vmatmul.mubr.bf16.gmra.mxu0 %v1798
          %v1939 = vpop.f32.mrf.mxu0
          %v1940 = vadd.f32 %v1747, %v1939
          %v1941 = vpop.f32.mrf.mxu0
          %v1942 = vpop.f32.mrf.mxu0
          %v1943 = vadd.f32 %v1747, %v1942
          %v1944 = vpop.f32.mrf.mxu0
          %1945 = vmatprep.mubr.bf16.mxu0 0
          %1946 = vmatmul.mubr.bf16.gmra.mxu0 %v1801
          %v1947 = vpop.f32.mrf.mxu0
          %v1948 = vadd.f32 %v1747, %v1947
          %v1949 = vpop.f32.mrf.mxu0
          %v1950 = vpop.f32.mrf.mxu0
          %v1951 = vadd.f32 %v1747, %v1950
          %v1952 = vpop.f32.mrf.mxu0
          %1953 = vmatprep.mubr.bf16.mxu0 0
          %1954 = vmatmul.mubr.bf16.gmra.mxu0 %v1804
          %v1955 = vpop.f32.mrf.mxu0
          %v1956 = vadd.f32 %v1747, %v1955
          %v1957 = vpop.f32.mrf.mxu0
          %v1958 = vpop.f32.mrf.mxu0
          %v1959 = vadd.f32 %v1747, %v1958
          %v1960 = vpop.f32.mrf.mxu0
          %1961 = vmatprep.mubr.bf16.mxu0 0
          %1962 = vmatmul.mubr.bf16.gmra.mxu0 %v1807
          %v1963 = vpop.f32.mrf.mxu0
          %v1964 = vadd.f32 %v1747, %v1963
          %v1965 = vpop.f32.mrf.mxu0
          %v1966 = vpop.f32.mrf.mxu0
          %v1967 = vadd.f32 %v1747, %v1966
          %v1968 = vpop.f32.mrf.mxu0
          %1969 = vdwg.mxu0
          %v1970 = vmax.f32 %v1844, 0.0
          %v1971 = vmax.f32 %v1847, 0.0
          %v1972 = vmax.f32 %v1852, 0.0
          %v1973 = vmax.f32 %v1855, 0.0
          %v1974 = vmax.f32 %v1860, 0.0
          %v1975 = vmax.f32 %v1863, 0.0
          %v1976 = vmax.f32 %v1868, 0.0
          %v1977 = vmax.f32 %v1871, 0.0
          %v1978 = vmax.f32 %v1876, 0.0
          %v1979 = vmax.f32 %v1879, 0.0
          %v1980 = vmax.f32 %v1884, 0.0
          %v1981 = vmax.f32 %v1887, 0.0
          %v1982 = vmax.f32 %v1892, 0.0
          %v1983 = vmax.f32 %v1895, 0.0
          %v1984 = vmax.f32 %v1900, 0.0
          %v1985 = vmax.f32 %v1903, 0.0
          %v1986 = vmax.f32 %v1908, 0.0
          %v1987 = vmax.f32 %v1911, 0.0
          %v1988 = vmax.f32 %v1916, 0.0
          %v1989 = vmax.f32 %v1919, 0.0
          %v1990 = vmax.f32 %v1924, 0.0
          %v1991 = vmax.f32 %v1927, 0.0
          %v1992 = vmax.f32 %v1932, 0.0
          %v1993 = vmax.f32 %v1935, 0.0
          %v1994 = vmax.f32 %v1940, 0.0
          %v1995 = vmax.f32 %v1943, 0.0
          %v1996 = vmax.f32 %v1948, 0.0
          %v1997 = vmax.f32 %v1951, 0.0
          %v1998 = vmax.f32 %v1956, 0.0
          %v1999 = vmax.f32 %v1959, 0.0
          %v2000 = vmax.f32 %v1964, 0.0
          %v2001 = vmax.f32 %v1967, 0.0
          %2002 = vset.pattern.permute.xlu0 1
          %2003 = vperm.xlu0 %2002, %v595
          %v2004 = vpop.permute.xlu0 %2003
          %2005 = vset.pattern.permute.xlu0 1
          %2006 = vperm.xlu0 %2005, %v596
          %v2007 = vpop.permute.xlu0 %2006
          %2008 = vset.pattern.permute.xlu0 1
          %2009 = vperm.xlu0 %2008, %v597
          %v2010 = vpop.permute.xlu0 %2009
          %2011 = vset.pattern.permute.xlu0 1
          %2012 = vperm.xlu0 %2011, %v598
          %v2013 = vpop.permute.xlu0 %2012
          %2014 = vset.pattern.permute.xlu0 1
          %2015 = vperm.xlu0 %2014, %v599
          %v2016 = vpop.permute.xlu0 %2015
          %2017 = vset.pattern.permute.xlu0 1
          %2018 = vperm.xlu0 %2017, %v600
          %v2019 = vpop.permute.xlu0 %2018
          %2020 = vset.pattern.permute.xlu0 1
          %2021 = vperm.xlu0 %2020, %v601
          %v2022 = vpop.permute.xlu0 %2021
          %2023 = vset.pattern.permute.xlu0 1
          %2024 = vperm.xlu0 %2023, %v602
          %v2025 = vpop.permute.xlu0 %2024
          %2026 = vset.pattern.permute.xlu0 1
          %2027 = vperm.xlu0 %2026, %v603
          %v2028 = vpop.permute.xlu0 %2027
          %2029 = vset.pattern.permute.xlu0 1
          %2030 = vperm.xlu0 %2029, %v604
          %v2031 = vpop.permute.xlu0 %2030
          %2032 = vset.pattern.permute.xlu0 1
          %2033 = vperm.xlu0 %2032, %v605
          %v2034 = vpop.permute.xlu0 %2033
          %2035 = vset.pattern.permute.xlu0 1
          %2036 = vperm.xlu0 %2035, %v606
          %v2037 = vpop.permute.xlu0 %2036
          %2038 = vset.pattern.permute.xlu0 1
          %2039 = vperm.xlu0 %2038, %v607
          %v2040 = vpop.permute.xlu0 %2039
          %2041 = vset.pattern.permute.xlu0 1
          %2042 = vperm.xlu0 %2041, %v608
          %v2043 = vpop.permute.xlu0 %2042
          %2044 = vset.pattern.permute.xlu0 1
          %2045 = vperm.xlu0 %2044, %v609
          %v2046 = vpop.permute.xlu0 %2045
          %2047 = vset.pattern.permute.xlu0 1
          %2048 = vperm.xlu0 %2047, %v610
          %v2049 = vpop.permute.xlu0 %2048
          %2050 = vset.pattern.permute.xlu0 1
          %2051 = vperm.xlu0 %2050, %v611
          %v2052 = vpop.permute.xlu0 %2051
          %2053 = vset.pattern.permute.xlu0 1
          %2054 = vperm.xlu0 %2053, %v612
          %v2055 = vpop.permute.xlu0 %2054
          %2056 = vset.pattern.permute.xlu0 1
          %2057 = vperm.xlu0 %2056, %v613
          %v2058 = vpop.permute.xlu0 %2057
          %2059 = vset.pattern.permute.xlu0 1
          %2060 = vperm.xlu0 %2059, %v614
          %v2061 = vpop.permute.xlu0 %2060
          %2062 = vset.pattern.permute.xlu0 1
          %2063 = vperm.xlu0 %2062, %v615
          %v2064 = vpop.permute.xlu0 %2063
          %2065 = vset.pattern.permute.xlu0 1
          %2066 = vperm.xlu0 %2065, %v616
          %v2067 = vpop.permute.xlu0 %2066
          %2068 = vset.pattern.permute.xlu0 1
          %2069 = vperm.xlu0 %2068, %v617
          %v2070 = vpop.permute.xlu0 %2069
          %2071 = vset.pattern.permute.xlu0 1
          %2072 = vperm.xlu0 %2071, %v618
          %v2073 = vpop.permute.xlu0 %2072
          %2074 = vset.pattern.permute.xlu0 1
          %2075 = vperm.xlu0 %2074, %v619
          %v2076 = vpop.permute.xlu0 %2075
          %2077 = vset.pattern.permute.xlu0 1
          %2078 = vperm.xlu0 %2077, %v620
          %v2079 = vpop.permute.xlu0 %2078
          %2080 = vset.pattern.permute.xlu0 1
          %2081 = vperm.xlu0 %2080, %v621
          %v2082 = vpop.permute.xlu0 %2081
          %2083 = vset.pattern.permute.xlu0 1
          %2084 = vperm.xlu0 %2083, %v622
          %v2085 = vpop.permute.xlu0 %2084
          %2086 = vset.pattern.permute.xlu0 1
          %2087 = vperm.xlu0 %2086, %v623
          %v2088 = vpop.permute.xlu0 %2087
          %2089 = vset.pattern.permute.xlu0 1
          %2090 = vperm.xlu0 %2089, %v624
          %v2091 = vpop.permute.xlu0 %2090
          %2092 = vset.pattern.permute.xlu0 1
          %2093 = vperm.xlu0 %2092, %v625
          %v2094 = vpop.permute.xlu0 %2093
          %2095 = vset.pattern.permute.xlu0 1
          %2096 = vperm.xlu0 %2095, %v626
          %v2097 = vpop.permute.xlu0 %2096
          %vm2098 = vcmp.eq.s32.totalorder %v629, %v2004
          %vm2099 = vcmp.eq.s32.totalorder %v629, %v2007
          %vm2100 = vcmp.eq.s32.totalorder %v629, %v2010
          %vm2101 = vcmp.eq.s32.totalorder %v629, %v2013
          %vm2102 = vcmp.eq.s32.totalorder %v629, %v2016
          %vm2103 = vcmp.eq.s32.totalorder %v629, %v2019
          %vm2104 = vcmp.eq.s32.totalorder %v629, %v2022
          %vm2105 = vcmp.eq.s32.totalorder %v629, %v2025
          %vm2106 = vcmp.eq.s32.totalorder %v629, %v2028
          %vm2107 = vcmp.eq.s32.totalorder %v629, %v2031
          %vm2108 = vcmp.eq.s32.totalorder %v629, %v2034
          %vm2109 = vcmp.eq.s32.totalorder %v629, %v2037
          %vm2110 = vcmp.eq.s32.totalorder %v629, %v2040
          %vm2111 = vcmp.eq.s32.totalorder %v629, %v2043
          %vm2112 = vcmp.eq.s32.totalorder %v629, %v2046
          %vm2113 = vcmp.eq.s32.totalorder %v629, %v2049
          %vm2114 = vcmp.eq.s32.totalorder %v629, %v2052
          %vm2115 = vcmp.eq.s32.totalorder %v629, %v2055
          %vm2116 = vcmp.eq.s32.totalorder %v629, %v2058
          %vm2117 = vcmp.eq.s32.totalorder %v629, %v2061
          %vm2118 = vcmp.eq.s32.totalorder %v629, %v2064
          %vm2119 = vcmp.eq.s32.totalorder %v629, %v2067
          %vm2120 = vcmp.eq.s32.totalorder %v629, %v2070
          %vm2121 = vcmp.eq.s32.totalorder %v629, %v2073
          %vm2122 = vcmp.eq.s32.totalorder %v629, %v2076
          %vm2123 = vcmp.eq.s32.totalorder %v629, %v2079
          %vm2124 = vcmp.eq.s32.totalorder %v629, %v2082
          %vm2125 = vcmp.eq.s32.totalorder %v629, %v2085
          %vm2126 = vcmp.eq.s32.totalorder %v629, %v2088
          %vm2127 = vcmp.eq.s32.totalorder %v629, %v2091
          %vm2128 = vcmp.eq.s32.totalorder %v629, %v2094
          %vm2129 = vcmp.eq.s32.totalorder %v629, %v2097
          %v2130 = vsel %vm2098, 1.0, 0.0
          %v2131 = vsel %vm2099, 1.0, 0.0
          %v2132 = vsel %vm2100, 1.0, 0.0
          %v2133 = vsel %vm2101, 1.0, 0.0
          %v2134 = vsel %vm2102, 1.0, 0.0
          %v2135 = vsel %vm2103, 1.0, 0.0
          %v2136 = vsel %vm2104, 1.0, 0.0
          %v2137 = vsel %vm2105, 1.0, 0.0
          %v2138 = vsel %vm2106, 1.0, 0.0
          %v2139 = vsel %vm2107, 1.0, 0.0
          %v2140 = vsel %vm2108, 1.0, 0.0
          %v2141 = vsel %vm2109, 1.0, 0.0
          %v2142 = vsel %vm2110, 1.0, 0.0
          %v2143 = vsel %vm2111, 1.0, 0.0
          %v2144 = vsel %vm2112, 1.0, 0.0
          %v2145 = vsel %vm2113, 1.0, 0.0
          %v2146 = vsel %vm2114, 1.0, 0.0
          %v2147 = vsel %vm2115, 1.0, 0.0
          %v2148 = vsel %vm2116, 1.0, 0.0
          %v2149 = vsel %vm2117, 1.0, 0.0
          %v2150 = vsel %vm2118, 1.0, 0.0
          %v2151 = vsel %vm2119, 1.0, 0.0
          %v2152 = vsel %vm2120, 1.0, 0.0
          %v2153 = vsel %vm2121, 1.0, 0.0
          %v2154 = vsel %vm2122, 1.0, 0.0
          %v2155 = vsel %vm2123, 1.0, 0.0
          %v2156 = vsel %vm2124, 1.0, 0.0
          %v2157 = vsel %vm2125, 1.0, 0.0
          %v2158 = vsel %vm2126, 1.0, 0.0
          %v2159 = vsel %vm2127, 1.0, 0.0
          %v2160 = vsel %vm2128, 1.0, 0.0
          %v2161 = vsel %vm2129, 1.0, 0.0
          %v2162 = vpack.c.bf16 %v2131, %v2130
          %v2163 = vpack.c.bf16 %v2133, %v2132
          %v2164 = vpack.c.bf16 %v2135, %v2134
          %v2165 = vpack.c.bf16 %v2137, %v2136
          %v2166 = vpack.c.bf16 %v2139, %v2138
          %v2167 = vpack.c.bf16 %v2141, %v2140
          %v2168 = vpack.c.bf16 %v2143, %v2142
          %v2169 = vpack.c.bf16 %v2145, %v2144
          %v2170 = vpack.c.bf16 %v2147, %v2146
          %v2171 = vpack.c.bf16 %v2149, %v2148
          %v2172 = vpack.c.bf16 %v2151, %v2150
          %v2173 = vpack.c.bf16 %v2153, %v2152
          %v2174 = vpack.c.bf16 %v2155, %v2154
          %v2175 = vpack.c.bf16 %v2157, %v2156
          %v2176 = vpack.c.bf16 %v2159, %v2158
          %v2177 = vpack.c.bf16 %v2161, %v2160
          %2178 = vset.pattern.permute.xlu0 3
          %2179 = vperm.xlu0 %2178, %v595
          %v2180 = vpop.permute.xlu0 %2179
          %2181 = vset.pattern.permute.xlu0 3
          %2182 = vperm.xlu0 %2181, %v596
          %v2183 = vpop.permute.xlu0 %2182
          %2184 = vset.pattern.permute.xlu0 3
          %2185 = vperm.xlu0 %2184, %v597
          %v2186 = vpop.permute.xlu0 %2185
          %2187 = vset.pattern.permute.xlu0 3
          %2188 = vperm.xlu0 %2187, %v598
          %v2189 = vpop.permute.xlu0 %2188
          %2190 = vset.pattern.permute.xlu0 3
          %2191 = vperm.xlu0 %2190, %v599
          %v2192 = vpop.permute.xlu0 %2191
          %2193 = vset.pattern.permute.xlu0 3
          %2194 = vperm.xlu0 %2193, %v600
          %v2195 = vpop.permute.xlu0 %2194
          %2196 = vset.pattern.permute.xlu0 3
          %2197 = vperm.xlu0 %2196, %v601
          %v2198 = vpop.permute.xlu0 %2197
          %2199 = vset.pattern.permute.xlu0 3
          %2200 = vperm.xlu0 %2199, %v602
          %v2201 = vpop.permute.xlu0 %2200
          %2202 = vset.pattern.permute.xlu0 3
          %2203 = vperm.xlu0 %2202, %v603
          %v2204 = vpop.permute.xlu0 %2203
          %2205 = vset.pattern.permute.xlu0 3
          %2206 = vperm.xlu0 %2205, %v604
          %v2207 = vpop.permute.xlu0 %2206
          %2208 = vset.pattern.permute.xlu0 3
          %2209 = vperm.xlu0 %2208, %v605
          %v2210 = vpop.permute.xlu0 %2209
          %2211 = vset.pattern.permute.xlu0 3
          %2212 = vperm.xlu0 %2211, %v606
          %v2213 = vpop.permute.xlu0 %2212
          %2214 = vset.pattern.permute.xlu0 3
          %2215 = vperm.xlu0 %2214, %v607
          %v2216 = vpop.permute.xlu0 %2215
          %2217 = vset.pattern.permute.xlu0 3
          %2218 = vperm.xlu0 %2217, %v608
          %v2219 = vpop.permute.xlu0 %2218
          %2220 = vset.pattern.permute.xlu0 3
          %2221 = vperm.xlu0 %2220, %v609
          %v2222 = vpop.permute.xlu0 %2221
          %2223 = vset.pattern.permute.xlu0 3
          %2224 = vperm.xlu0 %2223, %v610
          %v2225 = vpop.permute.xlu0 %2224
          %2226 = vset.pattern.permute.xlu0 3
          %2227 = vperm.xlu0 %2226, %v611
          %v2228 = vpop.permute.xlu0 %2227
          %2229 = vset.pattern.permute.xlu0 3
          %2230 = vperm.xlu0 %2229, %v612
          %v2231 = vpop.permute.xlu0 %2230
          %2232 = vset.pattern.permute.xlu0 3
          %2233 = vperm.xlu0 %2232, %v613
          %v2234 = vpop.permute.xlu0 %2233
          %2235 = vset.pattern.permute.xlu0 3
          %2236 = vperm.xlu0 %2235, %v614
          %v2237 = vpop.permute.xlu0 %2236
          %2238 = vset.pattern.permute.xlu0 3
          %2239 = vperm.xlu0 %2238, %v615
          %v2240 = vpop.permute.xlu0 %2239
          %2241 = vset.pattern.permute.xlu0 3
          %2242 = vperm.xlu0 %2241, %v616
          %v2243 = vpop.permute.xlu0 %2242
          %2244 = vset.pattern.permute.xlu0 3
          %2245 = vperm.xlu0 %2244, %v617
          %v2246 = vpop.permute.xlu0 %2245
          %2247 = vset.pattern.permute.xlu0 3
          %2248 = vperm.xlu0 %2247, %v618
          %v2249 = vpop.permute.xlu0 %2248
          %2250 = vset.pattern.permute.xlu0 3
          %2251 = vperm.xlu0 %2250, %v619
          %v2252 = vpop.permute.xlu0 %2251
          %2253 = vset.pattern.permute.xlu0 3
          %2254 = vperm.xlu0 %2253, %v620
          %v2255 = vpop.permute.xlu0 %2254
          %2256 = vset.pattern.permute.xlu0 3
          %2257 = vperm.xlu0 %2256, %v621
          %v2258 = vpop.permute.xlu0 %2257
          %2259 = vset.pattern.permute.xlu0 3
          %2260 = vperm.xlu0 %2259, %v622
          %v2261 = vpop.permute.xlu0 %2260
          %2262 = vset.pattern.permute.xlu0 3
          %2263 = vperm.xlu0 %2262, %v623
          %v2264 = vpop.permute.xlu0 %2263
          %2265 = vset.pattern.permute.xlu0 3
          %2266 = vperm.xlu0 %2265, %v624
          %v2267 = vpop.permute.xlu0 %2266
          %2268 = vset.pattern.permute.xlu0 3
          %2269 = vperm.xlu0 %2268, %v625
          %v2270 = vpop.permute.xlu0 %2269
          %2271 = vset.pattern.permute.xlu0 3
          %2272 = vperm.xlu0 %2271, %v626
          %v2273 = vpop.permute.xlu0 %2272
          %vm2274 = vcmp.eq.s32.totalorder %v629, %v2180
          %vm2275 = vcmp.eq.s32.totalorder %v629, %v2183
          %vm2276 = vcmp.eq.s32.totalorder %v629, %v2186
          %vm2277 = vcmp.eq.s32.totalorder %v629, %v2189
          %vm2278 = vcmp.eq.s32.totalorder %v629, %v2192
          %vm2279 = vcmp.eq.s32.totalorder %v629, %v2195
          %vm2280 = vcmp.eq.s32.totalorder %v629, %v2198
          %vm2281 = vcmp.eq.s32.totalorder %v629, %v2201
          %vm2282 = vcmp.eq.s32.totalorder %v629, %v2204
          %vm2283 = vcmp.eq.s32.totalorder %v629, %v2207
          %vm2284 = vcmp.eq.s32.totalorder %v629, %v2210
          %vm2285 = vcmp.eq.s32.totalorder %v629, %v2213
          %vm2286 = vcmp.eq.s32.totalorder %v629, %v2216
          %vm2287 = vcmp.eq.s32.totalorder %v629, %v2219
          %vm2288 = vcmp.eq.s32.totalorder %v629, %v2222
          %vm2289 = vcmp.eq.s32.totalorder %v629, %v2225
          %vm2290 = vcmp.eq.s32.totalorder %v629, %v2228
          %vm2291 = vcmp.eq.s32.totalorder %v629, %v2231
          %vm2292 = vcmp.eq.s32.totalorder %v629, %v2234
          %vm2293 = vcmp.eq.s32.totalorder %v629, %v2237
          %vm2294 = vcmp.eq.s32.totalorder %v629, %v2240
          %vm2295 = vcmp.eq.s32.totalorder %v629, %v2243
          %vm2296 = vcmp.eq.s32.totalorder %v629, %v2246
          %vm2297 = vcmp.eq.s32.totalorder %v629, %v2249
          %vm2298 = vcmp.eq.s32.totalorder %v629, %v2252
          %vm2299 = vcmp.eq.s32.totalorder %v629, %v2255
          %vm2300 = vcmp.eq.s32.totalorder %v629, %v2258
          %vm2301 = vcmp.eq.s32.totalorder %v629, %v2261
          %vm2302 = vcmp.eq.s32.totalorder %v629, %v2264
          %vm2303 = vcmp.eq.s32.totalorder %v629, %v2267
          %vm2304 = vcmp.eq.s32.totalorder %v629, %v2270
          %vm2305 = vcmp.eq.s32.totalorder %v629, %v2273
          %v2306 = vsel %vm2274, 1.0, 0.0
          %v2307 = vsel %vm2275, 1.0, 0.0
          %v2308 = vsel %vm2276, 1.0, 0.0
          %v2309 = vsel %vm2277, 1.0, 0.0
          %v2310 = vsel %vm2278, 1.0, 0.0
          %v2311 = vsel %vm2279, 1.0, 0.0
          %v2312 = vsel %vm2280, 1.0, 0.0
          %v2313 = vsel %vm2281, 1.0, 0.0
          %v2314 = vsel %vm2282, 1.0, 0.0
          %v2315 = vsel %vm2283, 1.0, 0.0
          %v2316 = vsel %vm2284, 1.0, 0.0
          %v2317 = vsel %vm2285, 1.0, 0.0
          %v2318 = vsel %vm2286, 1.0, 0.0
          %v2319 = vsel %vm2287, 1.0, 0.0
          %v2320 = vsel %vm2288, 1.0, 0.0
          %v2321 = vsel %vm2289, 1.0, 0.0
          %v2322 = vsel %vm2290, 1.0, 0.0
          %v2323 = vsel %vm2291, 1.0, 0.0
          %v2324 = vsel %vm2292, 1.0, 0.0
          %v2325 = vsel %vm2293, 1.0, 0.0
          %v2326 = vsel %vm2294, 1.0, 0.0
          %v2327 = vsel %vm2295, 1.0, 0.0
          %v2328 = vsel %vm2296, 1.0, 0.0
          %v2329 = vsel %vm2297, 1.0, 0.0
          %v2330 = vsel %vm2298, 1.0, 0.0
          %v2331 = vsel %vm2299, 1.0, 0.0
          %v2332 = vsel %vm2300, 1.0, 0.0
          %v2333 = vsel %vm2301, 1.0, 0.0
          %v2334 = vsel %vm2302, 1.0, 0.0
          %v2335 = vsel %vm2303, 1.0, 0.0
          %v2336 = vsel %vm2304, 1.0, 0.0
          %v2337 = vsel %vm2305, 1.0, 0.0
          %v2338 = vpack.c.bf16 %v2307, %v2306
          %v2339 = vpack.c.bf16 %v2309, %v2308
          %v2340 = vpack.c.bf16 %v2311, %v2310
          %v2341 = vpack.c.bf16 %v2313, %v2312
          %v2342 = vpack.c.bf16 %v2315, %v2314
          %v2343 = vpack.c.bf16 %v2317, %v2316
          %v2344 = vpack.c.bf16 %v2319, %v2318
          %v2345 = vpack.c.bf16 %v2321, %v2320
          %v2346 = vpack.c.bf16 %v2323, %v2322
          %v2347 = vpack.c.bf16 %v2325, %v2324
          %v2348 = vpack.c.bf16 %v2327, %v2326
          %v2349 = vpack.c.bf16 %v2329, %v2328
          %v2350 = vpack.c.bf16 %v2331, %v2330
          %v2351 = vpack.c.bf16 %v2333, %v2332
          %v2352 = vpack.c.bf16 %v2335, %v2334
          %v2353 = vpack.c.bf16 %v2337, %v2336
          %v2355 = vsel %vm982, %v2162, 0
          %v2358 = vsel %vm982, %v2163, 0
          %v2361 = vsel %vm982, %v2164, 0
          %v2364 = vsel %vm982, %v2165, 0
          %v2367 = vsel %vm982, %v2166, 0
          %v2370 = vsel %vm982, %v2167, 0
          %v2373 = vsel %vm982, %v2168, 0
          %v2376 = vsel %vm982, %v2169, 0
          %v2379 = vsel %vm982, %v2170, 0
          %v2382 = vsel %vm982, %v2171, 0
          %v2385 = vsel %vm982, %v2172, 0
          %v2388 = vsel %vm982, %v2173, 0
          %v2391 = vsel %vm982, %v2174, 0
          %v2394 = vsel %vm982, %v2175, 0
          %v2397 = vsel %vm982, %v2176, 0
          %v2400 = vsel %vm982, %v2177, 0
          %2402 = vmatprep.subr.bf16.mxu0 0
          %2403 = vmatpush1.bf16.msra.mxu0 0
          %2404 = vmatprep.subr.bf16.mxu0 0
          %2405 = vmatpush1.bf16.msra.mxu0 0
          %2406 = vmatprep.subr.bf16.mxu0 0
          %2407 = vmatpush1.bf16.msra.mxu0 0
          %2408 = vmatprep.subr.bf16.mxu0 0
          %2409 = vmatpush1.bf16.msra.mxu0 0
          %2410 = vmatprep.subr.bf16.mxu0 0
          %2411 = vmatpush1.bf16.msra.mxu0 0
          %2412 = vmatprep.subr.bf16.mxu0 0
          %2413 = vmatpush1.bf16.msra.mxu0 0
          %2414 = vmatprep.subr.bf16.mxu0 0
          %2415 = vmatpush1.bf16.msra.mxu0 0
          %2416 = vmatprep.subr.bf16.mxu0 0
          %2417 = vmatpush1.bf16.msra.mxu0 %v1033
          %2418 = vmatprep.subr.bf16.mxu0 0
          %2419 = vmatpush2.bf16.msra.mxu0 0
          %2420 = vmatprep.subr.bf16.mxu0 0
          %2421 = vmatpush2.bf16.msra.mxu0 0
          %2422 = vmatprep.subr.bf16.mxu0 0
          %2423 = vmatpush2.bf16.msra.mxu0 0
          %2424 = vmatprep.subr.bf16.mxu0 0
          %2425 = vmatpush2.bf16.msra.mxu0 0
          %2426 = vmatprep.subr.bf16.mxu0 0
          %2427 = vmatpush2.bf16.msra.mxu0 0
          %2428 = vmatprep.subr.bf16.mxu0 0
          %2429 = vmatpush2.bf16.msra.mxu0 0
          %2430 = vmatprep.subr.bf16.mxu0 0
          %2431 = vmatpush2.bf16.msra.mxu0 0
          %2432 = vmatprep.subr.bf16.mxu0 0
          %2433 = vmatpush2.bf16.msra.mxu0 0
          %2434 = vmatprep.mubr.bf16.mxu0 0
          %2435 = vmatmul.mubr.bf16.gmra.mxu0 %v2355
          %v2436 = vpop.f32.mrf.mxu0
          %v2437 = vadd.f32 0.0, %v2436
          %v2438 = vpop.f32.mrf.mxu0
          %v2439 = vpop.f32.mrf.mxu0
          %v2440 = vadd.f32 0.0, %v2439
          %v2441 = vpop.f32.mrf.mxu0
          %2442 = vmatprep.mubr.bf16.mxu0 0
          %2443 = vmatmul.mubr.bf16.gmra.mxu0 %v2358
          %v2444 = vpop.f32.mrf.mxu0
          %v2445 = vadd.f32 0.0, %v2444
          %v2446 = vpop.f32.mrf.mxu0
          %v2447 = vpop.f32.mrf.mxu0
          %v2448 = vadd.f32 0.0, %v2447
          %v2449 = vpop.f32.mrf.mxu0
          %2450 = vmatprep.mubr.bf16.mxu0 0
          %2451 = vmatmul.mubr.bf16.gmra.mxu0 %v2361
          %v2452 = vpop.f32.mrf.mxu0
          %v2453 = vadd.f32 0.0, %v2452
          %v2454 = vpop.f32.mrf.mxu0
          %v2455 = vpop.f32.mrf.mxu0
          %v2456 = vadd.f32 0.0, %v2455
          %v2457 = vpop.f32.mrf.mxu0
          %2458 = vmatprep.mubr.bf16.mxu0 0
          %2459 = vmatmul.mubr.bf16.gmra.mxu0 %v2364
          %v2460 = vpop.f32.mrf.mxu0
          %v2461 = vadd.f32 0.0, %v2460
          %v2462 = vpop.f32.mrf.mxu0
          %v2463 = vpop.f32.mrf.mxu0
          %v2464 = vadd.f32 0.0, %v2463
          %v2465 = vpop.f32.mrf.mxu0
          %2466 = vmatprep.mubr.bf16.mxu0 0
          %2467 = vmatmul.mubr.bf16.gmra.mxu0 %v2367
          %v2468 = vpop.f32.mrf.mxu0
          %v2469 = vadd.f32 0.0, %v2468
          %v2470 = vpop.f32.mrf.mxu0
          %v2471 = vpop.f32.mrf.mxu0
          %v2472 = vadd.f32 0.0, %v2471
          %v2473 = vpop.f32.mrf.mxu0
          %2474 = vmatprep.mubr.bf16.mxu0 0
          %2475 = vmatmul.mubr.bf16.gmra.mxu0 %v2370
          %v2476 = vpop.f32.mrf.mxu0
          %v2477 = vadd.f32 0.0, %v2476
          %v2478 = vpop.f32.mrf.mxu0
          %v2479 = vpop.f32.mrf.mxu0
          %v2480 = vadd.f32 0.0, %v2479
          %v2481 = vpop.f32.mrf.mxu0
          %2482 = vmatprep.mubr.bf16.mxu0 0
          %2483 = vmatmul.mubr.bf16.gmra.mxu0 %v2373
          %v2484 = vpop.f32.mrf.mxu0
          %v2485 = vadd.f32 0.0, %v2484
          %v2486 = vpop.f32.mrf.mxu0
          %v2487 = vpop.f32.mrf.mxu0
          %v2488 = vadd.f32 0.0, %v2487
          %v2489 = vpop.f32.mrf.mxu0
          %2490 = vmatprep.mubr.bf16.mxu0 0
          %2491 = vmatmul.mubr.bf16.gmra.mxu0 %v2376
          %v2492 = vpop.f32.mrf.mxu0
          %v2493 = vadd.f32 0.0, %v2492
          %v2494 = vpop.f32.mrf.mxu0
          %v2495 = vpop.f32.mrf.mxu0
          %v2496 = vadd.f32 0.0, %v2495
          %v2497 = vpop.f32.mrf.mxu0
          %2498 = vmatprep.mubr.bf16.mxu0 0
          %2499 = vmatmul.mubr.bf16.gmra.mxu0 %v2379
          %v2500 = vpop.f32.mrf.mxu0
          %v2501 = vadd.f32 0.0, %v2500
          %v2502 = vpop.f32.mrf.mxu0
          %v2503 = vpop.f32.mrf.mxu0
          %v2504 = vadd.f32 0.0, %v2503
          %v2505 = vpop.f32.mrf.mxu0
          %2506 = vmatprep.mubr.bf16.mxu0 0
          %2507 = vmatmul.mubr.bf16.gmra.mxu0 %v2382
          %v2508 = vpop.f32.mrf.mxu0
          %v2509 = vadd.f32 0.0, %v2508
          %v2510 = vpop.f32.mrf.mxu0
          %v2511 = vpop.f32.mrf.mxu0
          %v2512 = vadd.f32 0.0, %v2511
          %v2513 = vpop.f32.mrf.mxu0
          %2514 = vmatprep.mubr.bf16.mxu0 0
          %2515 = vmatmul.mubr.bf16.gmra.mxu0 %v2385
          %v2516 = vpop.f32.mrf.mxu0
          %v2517 = vadd.f32 0.0, %v2516
          %v2518 = vpop.f32.mrf.mxu0
          %v2519 = vpop.f32.mrf.mxu0
          %v2520 = vadd.f32 0.0, %v2519
          %v2521 = vpop.f32.mrf.mxu0
          %2522 = vmatprep.mubr.bf16.mxu0 0
          %2523 = vmatmul.mubr.bf16.gmra.mxu0 %v2388
          %v2524 = vpop.f32.mrf.mxu0
          %v2525 = vadd.f32 0.0, %v2524
          %v2526 = vpop.f32.mrf.mxu0
          %v2527 = vpop.f32.mrf.mxu0
          %v2528 = vadd.f32 0.0, %v2527
          %v2529 = vpop.f32.mrf.mxu0
          %2530 = vmatprep.mubr.bf16.mxu0 0
          %2531 = vmatmul.mubr.bf16.gmra.mxu0 %v2391
          %v2532 = vpop.f32.mrf.mxu0
          %v2533 = vadd.f32 0.0, %v2532
          %v2534 = vpop.f32.mrf.mxu0
          %v2535 = vpop.f32.mrf.mxu0
          %v2536 = vadd.f32 0.0, %v2535
          %v2537 = vpop.f32.mrf.mxu0
          %2538 = vmatprep.mubr.bf16.mxu0 0
          %2539 = vmatmul.mubr.bf16.gmra.mxu0 %v2394
          %v2540 = vpop.f32.mrf.mxu0
          %v2541 = vadd.f32 0.0, %v2540
          %v2542 = vpop.f32.mrf.mxu0
          %v2543 = vpop.f32.mrf.mxu0
          %v2544 = vadd.f32 0.0, %v2543
          %v2545 = vpop.f32.mrf.mxu0
          %2546 = vmatprep.mubr.bf16.mxu0 0
          %2547 = vmatmul.mubr.bf16.gmra.mxu0 %v2397
          %v2548 = vpop.f32.mrf.mxu0
          %v2549 = vadd.f32 0.0, %v2548
          %v2550 = vpop.f32.mrf.mxu0
          %v2551 = vpop.f32.mrf.mxu0
          %v2552 = vadd.f32 0.0, %v2551
          %v2553 = vpop.f32.mrf.mxu0
          %2554 = vmatprep.mubr.bf16.mxu0 0
          %2555 = vmatmul.mubr.bf16.gmra.mxu0 %v2400
          %v2556 = vpop.f32.mrf.mxu0
          %v2557 = vadd.f32 0.0, %v2556
          %v2558 = vpop.f32.mrf.mxu0
          %v2559 = vpop.f32.mrf.mxu0
          %v2560 = vadd.f32 0.0, %v2559
          %v2561 = vpop.f32.mrf.mxu0
          %2562 = vdwg.mxu0
          %v2563 = vpack.c.bf16 %v2440, %v2437
          %v2564 = vpack.c.bf16 %v2448, %v2445
          %v2565 = vpack.c.bf16 %v2456, %v2453
          %v2566 = vpack.c.bf16 %v2464, %v2461
          %v2567 = vpack.c.bf16 %v2472, %v2469
          %v2568 = vpack.c.bf16 %v2480, %v2477
          %v2569 = vpack.c.bf16 %v2488, %v2485
          %v2570 = vpack.c.bf16 %v2496, %v2493
          %v2571 = vpack.c.bf16 %v2504, %v2501
          %v2572 = vpack.c.bf16 %v2512, %v2509
          %v2573 = vpack.c.bf16 %v2520, %v2517
          %v2574 = vpack.c.bf16 %v2528, %v2525
          %v2575 = vpack.c.bf16 %v2536, %v2533
          %v2576 = vpack.c.bf16 %v2544, %v2541
          %v2577 = vpack.c.bf16 %v2552, %v2549
          %v2578 = vpack.c.bf16 %v2560, %v2557
          %v2579 = vld [vmem:[%s8] sm:$0xf]
          %v2580 = vld [vmem:[%s8 + $0x4] sm:$0xf]
          %v2581 = vld [vmem:[%s8 + $0x8] sm:$0xf]
          %v2582 = vld [vmem:[%s8 + $0xc] sm:$0xf]
          %v2583 = vld [vmem:[%s9] sm:$0xf]
          %v2585 = vsel %vm982, %v2338, 0
          %v2588 = vsel %vm982, %v2339, 0
          %v2591 = vsel %vm982, %v2340, 0
          %v2594 = vsel %vm982, %v2341, 0
          %v2597 = vsel %vm982, %v2342, 0
          %v2600 = vsel %vm982, %v2343, 0
          %v2603 = vsel %vm982, %v2344, 0
          %v2606 = vsel %vm982, %v2345, 0
          %v2609 = vsel %vm982, %v2346, 0
          %v2612 = vsel %vm982, %v2347, 0
          %v2615 = vsel %vm982, %v2348, 0
          %v2618 = vsel %vm982, %v2349, 0
          %v2621 = vsel %vm982, %v2350, 0
          %v2624 = vsel %vm982, %v2351, 0
          %v2627 = vsel %vm982, %v2352, 0
          %v2630 = vsel %vm982, %v2353, 0
          %v2633 = vsel %vm1031, %v2583, 0
          %2635 = vmatprep.subr.bf16.mxu0 0
          %2636 = vmatpush1.bf16.msra.mxu0 0
          %2637 = vmatprep.subr.bf16.mxu0 0
          %2638 = vmatpush1.bf16.msra.mxu0 0
          %2639 = vmatprep.subr.bf16.mxu0 0
          %2640 = vmatpush1.bf16.msra.mxu0 0
          %2641 = vmatprep.subr.bf16.mxu0 0
          %2642 = vmatpush1.bf16.msra.mxu0 0
          %2643 = vmatprep.subr.bf16.mxu0 0
          %2644 = vmatpush1.bf16.msra.mxu0 0
          %2645 = vmatprep.subr.bf16.mxu0 0
          %2646 = vmatpush1.bf16.msra.mxu0 0
          %2647 = vmatprep.subr.bf16.mxu0 0
          %2648 = vmatpush1.bf16.msra.mxu0 0
          %2649 = vmatprep.subr.bf16.mxu0 0
          %2650 = vmatpush1.bf16.msra.mxu0 %v2633
          %2651 = vmatprep.subr.bf16.mxu0 0
          %2652 = vmatpush2.bf16.msra.mxu0 0
          %2653 = vmatprep.subr.bf16.mxu0 0
          %2654 = vmatpush2.bf16.msra.mxu0 0
          %2655 = vmatprep.subr.bf16.mxu0 0
          %2656 = vmatpush2.bf16.msra.mxu0 0
          %2657 = vmatprep.subr.bf16.mxu0 0
          %2658 = vmatpush2.bf16.msra.mxu0 0
          %2659 = vmatprep.subr.bf16.mxu0 0
          %2660 = vmatpush2.bf16.msra.mxu0 0
          %2661 = vmatprep.subr.bf16.mxu0 0
          %2662 = vmatpush2.bf16.msra.mxu0 0
          %2663 = vmatprep.subr.bf16.mxu0 0
          %2664 = vmatpush2.bf16.msra.mxu0 0
          %2665 = vmatprep.subr.bf16.mxu0 0
          %2666 = vmatpush2.bf16.msra.mxu0 0
          %2667 = vmatprep.mubr.bf16.mxu0 0
          %2668 = vmatmul.mubr.bf16.gmra.mxu0 %v2585
          %v2669 = vpop.f32.mrf.mxu0
          %v2670 = vadd.f32 0.0, %v2669
          %v2671 = vpop.f32.mrf.mxu0
          %v2672 = vpop.f32.mrf.mxu0
          %v2673 = vadd.f32 0.0, %v2672
          %v2674 = vpop.f32.mrf.mxu0
          %2675 = vmatprep.mubr.bf16.mxu0 0
          %2676 = vmatmul.mubr.bf16.gmra.mxu0 %v2588
          %v2677 = vpop.f32.mrf.mxu0
          %v2678 = vadd.f32 0.0, %v2677
          %v2679 = vpop.f32.mrf.mxu0
          %v2680 = vpop.f32.mrf.mxu0
          %v2681 = vadd.f32 0.0, %v2680
          %v2682 = vpop.f32.mrf.mxu0
          %2683 = vmatprep.mubr.bf16.mxu0 0
          %2684 = vmatmul.mubr.bf16.gmra.mxu0 %v2591
          %v2685 = vpop.f32.mrf.mxu0
          %v2686 = vadd.f32 0.0, %v2685
          %v2687 = vpop.f32.mrf.mxu0
          %v2688 = vpop.f32.mrf.mxu0
          %v2689 = vadd.f32 0.0, %v2688
          %v2690 = vpop.f32.mrf.mxu0
          %2691 = vmatprep.mubr.bf16.mxu0 0
          %2692 = vmatmul.mubr.bf16.gmra.mxu0 %v2594
          %v2693 = vpop.f32.mrf.mxu0
          %v2694 = vadd.f32 0.0, %v2693
          %v2695 = vpop.f32.mrf.mxu0
          %v2696 = vpop.f32.mrf.mxu0
          %v2697 = vadd.f32 0.0, %v2696
          %v2698 = vpop.f32.mrf.mxu0
          %2699 = vmatprep.mubr.bf16.mxu0 0
          %2700 = vmatmul.mubr.bf16.gmra.mxu0 %v2597
          %v2701 = vpop.f32.mrf.mxu0
          %v2702 = vadd.f32 0.0, %v2701
          %v2703 = vpop.f32.mrf.mxu0
          %v2704 = vpop.f32.mrf.mxu0
          %v2705 = vadd.f32 0.0, %v2704
          %v2706 = vpop.f32.mrf.mxu0
          %2707 = vmatprep.mubr.bf16.mxu0 0
          %2708 = vmatmul.mubr.bf16.gmra.mxu0 %v2600
          %v2709 = vpop.f32.mrf.mxu0
          %v2710 = vadd.f32 0.0, %v2709
          %v2711 = vpop.f32.mrf.mxu0
          %v2712 = vpop.f32.mrf.mxu0
          %v2713 = vadd.f32 0.0, %v2712
          %v2714 = vpop.f32.mrf.mxu0
          %2715 = vmatprep.mubr.bf16.mxu0 0
          %2716 = vmatmul.mubr.bf16.gmra.mxu0 %v2603
          %v2717 = vpop.f32.mrf.mxu0
          %v2718 = vadd.f32 0.0, %v2717
          %v2719 = vpop.f32.mrf.mxu0
          %v2720 = vpop.f32.mrf.mxu0
          %v2721 = vadd.f32 0.0, %v2720
          %v2722 = vpop.f32.mrf.mxu0
          %2723 = vmatprep.mubr.bf16.mxu0 0
          %2724 = vmatmul.mubr.bf16.gmra.mxu0 %v2606
          %v2725 = vpop.f32.mrf.mxu0
          %v2726 = vadd.f32 0.0, %v2725
          %v2727 = vpop.f32.mrf.mxu0
          %v2728 = vpop.f32.mrf.mxu0
          %v2729 = vadd.f32 0.0, %v2728
          %v2730 = vpop.f32.mrf.mxu0
          %2731 = vmatprep.mubr.bf16.mxu0 0
          %2732 = vmatmul.mubr.bf16.gmra.mxu0 %v2609
          %v2733 = vpop.f32.mrf.mxu0
          %v2734 = vadd.f32 0.0, %v2733
          %v2735 = vpop.f32.mrf.mxu0
          %v2736 = vpop.f32.mrf.mxu0
          %v2737 = vadd.f32 0.0, %v2736
          %v2738 = vpop.f32.mrf.mxu0
          %2739 = vmatprep.mubr.bf16.mxu0 0
          %2740 = vmatmul.mubr.bf16.gmra.mxu0 %v2612
          %v2741 = vpop.f32.mrf.mxu0
          %v2742 = vadd.f32 0.0, %v2741
          %v2743 = vpop.f32.mrf.mxu0
          %v2744 = vpop.f32.mrf.mxu0
          %v2745 = vadd.f32 0.0, %v2744
          %v2746 = vpop.f32.mrf.mxu0
          %2747 = vmatprep.mubr.bf16.mxu0 0
          %2748 = vmatmul.mubr.bf16.gmra.mxu0 %v2615
          %v2749 = vpop.f32.mrf.mxu0
          %v2750 = vadd.f32 0.0, %v2749
          %v2751 = vpop.f32.mrf.mxu0
          %v2752 = vpop.f32.mrf.mxu0
          %v2753 = vadd.f32 0.0, %v2752
          %v2754 = vpop.f32.mrf.mxu0
          %2755 = vmatprep.mubr.bf16.mxu0 0
          %2756 = vmatmul.mubr.bf16.gmra.mxu0 %v2618
          %v2757 = vpop.f32.mrf.mxu0
          %v2758 = vadd.f32 0.0, %v2757
          %v2759 = vpop.f32.mrf.mxu0
          %v2760 = vpop.f32.mrf.mxu0
          %v2761 = vadd.f32 0.0, %v2760
          %v2762 = vpop.f32.mrf.mxu0
          %2763 = vmatprep.mubr.bf16.mxu0 0
          %2764 = vmatmul.mubr.bf16.gmra.mxu0 %v2621
          %v2765 = vpop.f32.mrf.mxu0
          %v2766 = vadd.f32 0.0, %v2765
          %v2767 = vpop.f32.mrf.mxu0
          %v2768 = vpop.f32.mrf.mxu0
          %v2769 = vadd.f32 0.0, %v2768
          %v2770 = vpop.f32.mrf.mxu0
          %2771 = vmatprep.mubr.bf16.mxu0 0
          %2772 = vmatmul.mubr.bf16.gmra.mxu0 %v2624
          %v2773 = vpop.f32.mrf.mxu0
          %v2774 = vadd.f32 0.0, %v2773
          %v2775 = vpop.f32.mrf.mxu0
          %v2776 = vpop.f32.mrf.mxu0
          %v2777 = vadd.f32 0.0, %v2776
          %v2778 = vpop.f32.mrf.mxu0
          %2779 = vmatprep.mubr.bf16.mxu0 0
          %2780 = vmatmul.mubr.bf16.gmra.mxu0 %v2627
          %v2781 = vpop.f32.mrf.mxu0
          %v2782 = vadd.f32 0.0, %v2781
          %v2783 = vpop.f32.mrf.mxu0
          %v2784 = vpop.f32.mrf.mxu0
          %v2785 = vadd.f32 0.0, %v2784
          %v2786 = vpop.f32.mrf.mxu0
          %2787 = vmatprep.mubr.bf16.mxu0 0
          %2788 = vmatmul.mubr.bf16.gmra.mxu0 %v2630
          %v2789 = vpop.f32.mrf.mxu0
          %v2790 = vadd.f32 0.0, %v2789
          %v2791 = vpop.f32.mrf.mxu0
          %v2792 = vpop.f32.mrf.mxu0
          %v2793 = vadd.f32 0.0, %v2792
          %v2794 = vpop.f32.mrf.mxu0
          %2795 = vdwg.mxu0
          %v2800 = vunpack.c.l.b16 %v2579
          %v2801 = vunpack.c.l.b16 %v2580
          %v2802 = vunpack.c.l.b16 %v2581
          %v2803 = vunpack.c.l.b16 %v2582
          %v2804 = vpack.c.b16 %v2801, %v2800
          %v2805 = vpack.c.b16 %v2803, %v2802
          %v2809 = vsel %vm1441, %v2563, 0
          %v2812 = vsel %vm1441, %v2564, 0
          %v2815 = vsel %vm1441, %v2565, 0
          %v2818 = vsel %vm1441, %v2566, 0
          %v2821 = vsel %vm1441, %v2567, 0
          %v2824 = vsel %vm1441, %v2568, 0
          %v2827 = vsel %vm1441, %v2569, 0
          %v2830 = vsel %vm1441, %v2570, 0
          %v2833 = vsel %vm1441, %v2571, 0
          %v2836 = vsel %vm1441, %v2572, 0
          %v2839 = vsel %vm1441, %v2573, 0
          %v2842 = vsel %vm1441, %v2574, 0
          %v2845 = vsel %vm1441, %v2575, 0
          %v2848 = vsel %vm1441, %v2576, 0
          %v2851 = vsel %vm1441, %v2577, 0
          %v2854 = vsel %vm1441, %v2578, 0
          %2856 = vmatprep.subr.bf16.mxu0 0
          %2857 = vmatpush1.bf16.msra.mxu0 0
          %2858 = vmatprep.subr.bf16.mxu0 0
          %2859 = vmatpush1.bf16.msra.mxu0 0
          %2860 = vmatprep.subr.bf16.mxu0 0
          %2861 = vmatpush1.bf16.msra.mxu0 0
          %2862 = vmatprep.subr.bf16.mxu0 0
          %2863 = vmatpush1.bf16.msra.mxu0 0
          %2864 = vmatprep.subr.bf16.mxu0 0
          %2865 = vmatpush1.bf16.msra.mxu0 0
          %2866 = vmatprep.subr.bf16.mxu0 0
          %2867 = vmatpush1.bf16.msra.mxu0 0
          %2868 = vmatprep.subr.bf16.mxu0 0
          %2869 = vmatpush1.bf16.msra.mxu0 %v2805
          %2870 = vmatprep.subr.bf16.mxu0 0
          %2871 = vmatpush1.bf16.msra.mxu0 %v2804
          %2872 = vmatprep.subr.bf16.mxu0 0
          %2873 = vmatpush2.bf16.msra.mxu0 0
          %2874 = vmatprep.subr.bf16.mxu0 0
          %2875 = vmatpush2.bf16.msra.mxu0 0
          %2876 = vmatprep.subr.bf16.mxu0 0
          %2877 = vmatpush2.bf16.msra.mxu0 0
          %2878 = vmatprep.subr.bf16.mxu0 0
          %2879 = vmatpush2.bf16.msra.mxu0 0
          %2880 = vmatprep.subr.bf16.mxu0 0
          %2881 = vmatpush2.bf16.msra.mxu0 0
          %2882 = vmatprep.subr.bf16.mxu0 0
          %2883 = vmatpush2.bf16.msra.mxu0 0
          %2884 = vmatprep.subr.bf16.mxu0 0
          %2885 = vmatpush2.bf16.msra.mxu0 0
          %2886 = vmatprep.subr.bf16.mxu0 0
          %2887 = vmatpush2.bf16.msra.mxu0 0
          %2888 = vmatprep.mubr.bf16.mxu0 0
          %2889 = vmatmul.mubr.bf16.gmra.mxu0 %v2809
          %v2890 = vpop.f32.mrf.mxu0
          %v2891 = vadd.f32 %v2670, %v2890
          %v2892 = vpop.f32.mrf.mxu0
          %v2893 = vpop.f32.mrf.mxu0
          %v2894 = vadd.f32 %v2673, %v2893
          %v2895 = vpop.f32.mrf.mxu0
          %2896 = vmatprep.mubr.bf16.mxu0 0
          %2897 = vmatmul.mubr.bf16.gmra.mxu0 %v2812
          %v2898 = vpop.f32.mrf.mxu0
          %v2899 = vadd.f32 %v2678, %v2898
          %v2900 = vpop.f32.mrf.mxu0
          %v2901 = vpop.f32.mrf.mxu0
          %v2902 = vadd.f32 %v2681, %v2901
          %v2903 = vpop.f32.mrf.mxu0
          %2904 = vmatprep.mubr.bf16.mxu0 0
          %2905 = vmatmul.mubr.bf16.gmra.mxu0 %v2815
          %v2906 = vpop.f32.mrf.mxu0
          %v2907 = vadd.f32 %v2686, %v2906
          %v2908 = vpop.f32.mrf.mxu0
          %v2909 = vpop.f32.mrf.mxu0
          %v2910 = vadd.f32 %v2689, %v2909
          %v2911 = vpop.f32.mrf.mxu0
          %2912 = vmatprep.mubr.bf16.mxu0 0
          %2913 = vmatmul.mubr.bf16.gmra.mxu0 %v2818
          %v2914 = vpop.f32.mrf.mxu0
          %v2915 = vadd.f32 %v2694, %v2914
          %v2916 = vpop.f32.mrf.mxu0
          %v2917 = vpop.f32.mrf.mxu0
          %v2918 = vadd.f32 %v2697, %v2917
          %v2919 = vpop.f32.mrf.mxu0
          %2920 = vmatprep.mubr.bf16.mxu0 0
          %2921 = vmatmul.mubr.bf16.gmra.mxu0 %v2821
          %v2922 = vpop.f32.mrf.mxu0
          %v2923 = vadd.f32 %v2702, %v2922
          %v2924 = vpop.f32.mrf.mxu0
          %v2925 = vpop.f32.mrf.mxu0
          %v2926 = vadd.f32 %v2705, %v2925
          %v2927 = vpop.f32.mrf.mxu0
          %2928 = vmatprep.mubr.bf16.mxu0 0
          %2929 = vmatmul.mubr.bf16.gmra.mxu0 %v2824
          %v2930 = vpop.f32.mrf.mxu0
          %v2931 = vadd.f32 %v2710, %v2930
          %v2932 = vpop.f32.mrf.mxu0
          %v2933 = vpop.f32.mrf.mxu0
          %v2934 = vadd.f32 %v2713, %v2933
          %v2935 = vpop.f32.mrf.mxu0
          %2936 = vmatprep.mubr.bf16.mxu0 0
          %2937 = vmatmul.mubr.bf16.gmra.mxu0 %v2827
          %v2938 = vpop.f32.mrf.mxu0
          %v2939 = vadd.f32 %v2718, %v2938
          %v2940 = vpop.f32.mrf.mxu0
          %v2941 = vpop.f32.mrf.mxu0
          %v2942 = vadd.f32 %v2721, %v2941
          %v2943 = vpop.f32.mrf.mxu0
          %2944 = vmatprep.mubr.bf16.mxu0 0
          %2945 = vmatmul.mubr.bf16.gmra.mxu0 %v2830
          %v2946 = vpop.f32.mrf.mxu0
          %v2947 = vadd.f32 %v2726, %v2946
          %v2948 = vpop.f32.mrf.mxu0
          %v2949 = vpop.f32.mrf.mxu0
          %v2950 = vadd.f32 %v2729, %v2949
          %v2951 = vpop.f32.mrf.mxu0
          %2952 = vmatprep.mubr.bf16.mxu0 0
          %2953 = vmatmul.mubr.bf16.gmra.mxu0 %v2833
          %v2954 = vpop.f32.mrf.mxu0
          %v2955 = vadd.f32 %v2734, %v2954
          %v2956 = vpop.f32.mrf.mxu0
          %v2957 = vpop.f32.mrf.mxu0
          %v2958 = vadd.f32 %v2737, %v2957
          %v2959 = vpop.f32.mrf.mxu0
          %2960 = vmatprep.mubr.bf16.mxu0 0
          %2961 = vmatmul.mubr.bf16.gmra.mxu0 %v2836
          %v2962 = vpop.f32.mrf.mxu0
          %v2963 = vadd.f32 %v2742, %v2962
          %v2964 = vpop.f32.mrf.mxu0
          %v2965 = vpop.f32.mrf.mxu0
          %v2966 = vadd.f32 %v2745, %v2965
          %v2967 = vpop.f32.mrf.mxu0
          %2968 = vmatprep.mubr.bf16.mxu0 0
          %2969 = vmatmul.mubr.bf16.gmra.mxu0 %v2839
          %v2970 = vpop.f32.mrf.mxu0
          %v2971 = vadd.f32 %v2750, %v2970
          %v2972 = vpop.f32.mrf.mxu0
          %v2973 = vpop.f32.mrf.mxu0
          %v2974 = vadd.f32 %v2753, %v2973
          %v2975 = vpop.f32.mrf.mxu0
          %2976 = vmatprep.mubr.bf16.mxu0 0
          %2977 = vmatmul.mubr.bf16.gmra.mxu0 %v2842
          %v2978 = vpop.f32.mrf.mxu0
          %v2979 = vadd.f32 %v2758, %v2978
          %v2980 = vpop.f32.mrf.mxu0
          %v2981 = vpop.f32.mrf.mxu0
          %v2982 = vadd.f32 %v2761, %v2981
          %v2983 = vpop.f32.mrf.mxu0
          %2984 = vmatprep.mubr.bf16.mxu0 0
          %2985 = vmatmul.mubr.bf16.gmra.mxu0 %v2845
          %v2986 = vpop.f32.mrf.mxu0
          %v2987 = vadd.f32 %v2766, %v2986
          %v2988 = vpop.f32.mrf.mxu0
          %v2989 = vpop.f32.mrf.mxu0
          %v2990 = vadd.f32 %v2769, %v2989
          %v2991 = vpop.f32.mrf.mxu0
          %2992 = vmatprep.mubr.bf16.mxu0 0
          %2993 = vmatmul.mubr.bf16.gmra.mxu0 %v2848
          %v2994 = vpop.f32.mrf.mxu0
          %v2995 = vadd.f32 %v2774, %v2994
          %v2996 = vpop.f32.mrf.mxu0
          %v2997 = vpop.f32.mrf.mxu0
          %v2998 = vadd.f32 %v2777, %v2997
          %v2999 = vpop.f32.mrf.mxu0
          %3000 = vmatprep.mubr.bf16.mxu0 0
          %3001 = vmatmul.mubr.bf16.gmra.mxu0 %v2851
          %v3002 = vpop.f32.mrf.mxu0
          %v3003 = vadd.f32 %v2782, %v3002
          %v3004 = vpop.f32.mrf.mxu0
          %v3005 = vpop.f32.mrf.mxu0
          %v3006 = vadd.f32 %v2785, %v3005
          %v3007 = vpop.f32.mrf.mxu0
          %3008 = vmatprep.mubr.bf16.mxu0 0
          %3009 = vmatmul.mubr.bf16.gmra.mxu0 %v2854
          %v3010 = vpop.f32.mrf.mxu0
          %v3011 = vadd.f32 %v2790, %v3010
          %v3012 = vpop.f32.mrf.mxu0
          %v3013 = vpop.f32.mrf.mxu0
          %v3014 = vadd.f32 %v2793, %v3013
          %v3015 = vpop.f32.mrf.mxu0
          %3016 = vdwg.mxu0
          %v3017 = vld [vmem:[%s10] sm:$0x1]
          %v3019 = vlaneseq
          %v3020 = vshrl.u32 %v3019, 7
          %v3021 = vsub.s32 0, %v3020
          %v3022 = vrot.slane %v3017, %v3021
          %v3024 = vadd.f32 %v2891, %v3022
          %v3025 = vadd.f32 %v2894, %v3022
          %v3026 = vadd.f32 %v2899, %v3022
          %v3027 = vadd.f32 %v2902, %v3022
          %v3028 = vadd.f32 %v2907, %v3022
          %v3029 = vadd.f32 %v2910, %v3022
          %v3030 = vadd.f32 %v2915, %v3022
          %v3031 = vadd.f32 %v2918, %v3022
          %v3032 = vadd.f32 %v2923, %v3022
          %v3033 = vadd.f32 %v2926, %v3022
          %v3034 = vadd.f32 %v2931, %v3022
          %v3035 = vadd.f32 %v2934, %v3022
          %v3036 = vadd.f32 %v2939, %v3022
          %v3037 = vadd.f32 %v2942, %v3022
          %v3038 = vadd.f32 %v2947, %v3022
          %v3039 = vadd.f32 %v2950, %v3022
          %v3040 = vadd.f32 %v2955, %v3022
          %v3041 = vadd.f32 %v2958, %v3022
          %v3042 = vadd.f32 %v2963, %v3022
          %v3043 = vadd.f32 %v2966, %v3022
          %v3044 = vadd.f32 %v2971, %v3022
          %v3045 = vadd.f32 %v2974, %v3022
          %v3046 = vadd.f32 %v2979, %v3022
          %v3047 = vadd.f32 %v2982, %v3022
          %v3048 = vadd.f32 %v2987, %v3022
          %v3049 = vadd.f32 %v2990, %v3022
          %v3050 = vadd.f32 %v2995, %v3022
          %v3051 = vadd.f32 %v2998, %v3022
          %v3052 = vadd.f32 %v3003, %v3022
          %v3053 = vadd.f32 %v3006, %v3022
          %v3054 = vadd.f32 %v3011, %v3022
          %v3055 = vadd.f32 %v3014, %v3022
          %v3056 = vmax.f32 %v3024, 0.0
          %v3057 = vmax.f32 %v3025, 0.0
          %v3058 = vmax.f32 %v3026, 0.0
          %v3059 = vmax.f32 %v3027, 0.0
          %v3060 = vmax.f32 %v3028, 0.0
          %v3061 = vmax.f32 %v3029, 0.0
          %v3062 = vmax.f32 %v3030, 0.0
          %v3063 = vmax.f32 %v3031, 0.0
          %v3064 = vmax.f32 %v3032, 0.0
          %v3065 = vmax.f32 %v3033, 0.0
          %v3066 = vmax.f32 %v3034, 0.0
          %v3067 = vmax.f32 %v3035, 0.0
          %v3068 = vmax.f32 %v3036, 0.0
          %v3069 = vmax.f32 %v3037, 0.0
          %v3070 = vmax.f32 %v3038, 0.0
          %v3071 = vmax.f32 %v3039, 0.0
          %v3072 = vmax.f32 %v3040, 0.0
          %v3073 = vmax.f32 %v3041, 0.0
          %v3074 = vmax.f32 %v3042, 0.0
          %v3075 = vmax.f32 %v3043, 0.0
          %v3076 = vmax.f32 %v3044, 0.0
          %v3077 = vmax.f32 %v3045, 0.0
          %v3078 = vmax.f32 %v3046, 0.0
          %v3079 = vmax.f32 %v3047, 0.0
          %v3080 = vmax.f32 %v3048, 0.0
          %v3081 = vmax.f32 %v3049, 0.0
          %v3082 = vmax.f32 %v3050, 0.0
          %v3083 = vmax.f32 %v3051, 0.0
          %v3084 = vmax.f32 %v3052, 0.0
          %v3085 = vmax.f32 %v3053, 0.0
          %v3086 = vmax.f32 %v3054, 0.0
          %v3087 = vmax.f32 %v3055, 0.0
          %v3088 = vpack.c.bf16 %v3057, %v3056
          %v3089 = vpack.c.bf16 %v3059, %v3058
          %v3090 = vpack.c.bf16 %v3061, %v3060
          %v3091 = vpack.c.bf16 %v3063, %v3062
          %v3092 = vpack.c.bf16 %v3065, %v3064
          %v3093 = vpack.c.bf16 %v3067, %v3066
          %v3094 = vpack.c.bf16 %v3069, %v3068
          %v3095 = vpack.c.bf16 %v3071, %v3070
          %v3096 = vpack.c.bf16 %v3073, %v3072
          %v3097 = vpack.c.bf16 %v3075, %v3074
          %v3098 = vpack.c.bf16 %v3077, %v3076
          %v3099 = vpack.c.bf16 %v3079, %v3078
          %v3100 = vpack.c.bf16 %v3081, %v3080
          %v3101 = vpack.c.bf16 %v3083, %v3082
          %v3102 = vpack.c.bf16 %v3085, %v3084
          %v3103 = vpack.c.bf16 %v3087, %v3086
          %v3104 = vld [vmem:[%s11] sm:$0xf]
          %v3105 = vld [vmem:[%s11 + $0x4] sm:$0xf]
          %v3106 = vld [vmem:[%s11 + $0x8] sm:$0xf]
          %v3107 = vld [vmem:[%s11 + $0xc] sm:$0xf]
          %v3108 = vld [vmem:[%s12] sm:$0x1]
          %v3110 = vlaneseq
          %v3111 = vshrl.u32 %v3110, 7
          %v3112 = vsub.s32 0, %v3111
          %v3113 = vrot.slane %v3108, %v3112
          %v3119 = vunpack.c.l.b16 %v3104
          %v3120 = vunpack.c.l.b16 %v3105
          %v3121 = vunpack.c.l.b16 %v3106
          %v3122 = vunpack.c.l.b16 %v3107
          %v3123 = vpack.c.b16 %v3120, %v3119
          %v3124 = vpack.c.b16 %v3122, %v3121
          %v3128 = vsel %vm1441, %v3088, 0
          %v3131 = vsel %vm1441, %v3089, 0
          %v3134 = vsel %vm1441, %v3090, 0
          %v3137 = vsel %vm1441, %v3091, 0
          %v3140 = vsel %vm1441, %v3092, 0
          %v3143 = vsel %vm1441, %v3093, 0
          %v3146 = vsel %vm1441, %v3094, 0
          %v3149 = vsel %vm1441, %v3095, 0
          %v3152 = vsel %vm1441, %v3096, 0
          %v3155 = vsel %vm1441, %v3097, 0
          %v3158 = vsel %vm1441, %v3098, 0
          %v3161 = vsel %vm1441, %v3099, 0
          %v3164 = vsel %vm1441, %v3100, 0
          %v3167 = vsel %vm1441, %v3101, 0
          %v3170 = vsel %vm1441, %v3102, 0
          %v3173 = vsel %vm1441, %v3103, 0
          %3175 = vmatprep.subr.bf16.mxu0 0
          %3176 = vmatpush1.bf16.msra.mxu0 0
          %3177 = vmatprep.subr.bf16.mxu0 0
          %3178 = vmatpush1.bf16.msra.mxu0 0
          %3179 = vmatprep.subr.bf16.mxu0 0
          %3180 = vmatpush1.bf16.msra.mxu0 0
          %3181 = vmatprep.subr.bf16.mxu0 0
          %3182 = vmatpush1.bf16.msra.mxu0 0
          %3183 = vmatprep.subr.bf16.mxu0 0
          %3184 = vmatpush1.bf16.msra.mxu0 0
          %3185 = vmatprep.subr.bf16.mxu0 0
          %3186 = vmatpush1.bf16.msra.mxu0 0
          %3187 = vmatprep.subr.bf16.mxu0 0
          %3188 = vmatpush1.bf16.msra.mxu0 %v3124
          %3189 = vmatprep.subr.bf16.mxu0 0
          %3190 = vmatpush1.bf16.msra.mxu0 %v3123
          %3191 = vmatprep.subr.bf16.mxu0 0
          %3192 = vmatpush2.bf16.msra.mxu0 0
          %3193 = vmatprep.subr.bf16.mxu0 0
          %3194 = vmatpush2.bf16.msra.mxu0 0
          %3195 = vmatprep.subr.bf16.mxu0 0
          %3196 = vmatpush2.bf16.msra.mxu0 0
          %3197 = vmatprep.subr.bf16.mxu0 0
          %3198 = vmatpush2.bf16.msra.mxu0 0
          %3199 = vmatprep.subr.bf16.mxu0 0
          %3200 = vmatpush2.bf16.msra.mxu0 0
          %3201 = vmatprep.subr.bf16.mxu0 0
          %3202 = vmatpush2.bf16.msra.mxu0 0
          %3203 = vmatprep.subr.bf16.mxu0 0
          %3204 = vmatpush2.bf16.msra.mxu0 0
          %3205 = vmatprep.subr.bf16.mxu0 0
          %3206 = vmatpush2.bf16.msra.mxu0 0
          %3207 = vmatprep.mubr.bf16.mxu0 0
          %3208 = vmatmul.mubr.bf16.gmra.mxu0 %v3128
          %v3209 = vpop.f32.mrf.mxu0
          %v3210 = vadd.f32 %v3113, %v3209
          %v3211 = vpop.f32.mrf.mxu0
          %v3212 = vpop.f32.mrf.mxu0
          %v3213 = vadd.f32 %v3113, %v3212
          %v3214 = vpop.f32.mrf.mxu0
          %3215 = vmatprep.mubr.bf16.mxu0 0
          %3216 = vmatmul.mubr.bf16.gmra.mxu0 %v3131
          %v3217 = vpop.f32.mrf.mxu0
          %v3218 = vadd.f32 %v3113, %v3217
          %v3219 = vpop.f32.mrf.mxu0
          %v3220 = vpop.f32.mrf.mxu0
          %v3221 = vadd.f32 %v3113, %v3220
          %v3222 = vpop.f32.mrf.mxu0
          %3223 = vmatprep.mubr.bf16.mxu0 0
          %3224 = vmatmul.mubr.bf16.gmra.mxu0 %v3134
          %v3225 = vpop.f32.mrf.mxu0
          %v3226 = vadd.f32 %v3113, %v3225
          %v3227 = vpop.f32.mrf.mxu0
          %v3228 = vpop.f32.mrf.mxu0
          %v3229 = vadd.f32 %v3113, %v3228
          %v3230 = vpop.f32.mrf.mxu0
          %3231 = vmatprep.mubr.bf16.mxu0 0
          %3232 = vmatmul.mubr.bf16.gmra.mxu0 %v3137
          %v3233 = vpop.f32.mrf.mxu0
          %v3234 = vadd.f32 %v3113, %v3233
          %v3235 = vpop.f32.mrf.mxu0
          %v3236 = vpop.f32.mrf.mxu0
          %v3237 = vadd.f32 %v3113, %v3236
          %v3238 = vpop.f32.mrf.mxu0
          %3239 = vmatprep.mubr.bf16.mxu0 0
          %3240 = vmatmul.mubr.bf16.gmra.mxu0 %v3140
          %v3241 = vpop.f32.mrf.mxu0
          %v3242 = vadd.f32 %v3113, %v3241
          %v3243 = vpop.f32.mrf.mxu0
          %v3244 = vpop.f32.mrf.mxu0
          %v3245 = vadd.f32 %v3113, %v3244
          %v3246 = vpop.f32.mrf.mxu0
          %3247 = vmatprep.mubr.bf16.mxu0 0
          %3248 = vmatmul.mubr.bf16.gmra.mxu0 %v3143
          %v3249 = vpop.f32.mrf.mxu0
          %v3250 = vadd.f32 %v3113, %v3249
          %v3251 = vpop.f32.mrf.mxu0
          %v3252 = vpop.f32.mrf.mxu0
          %v3253 = vadd.f32 %v3113, %v3252
          %v3254 = vpop.f32.mrf.mxu0
          %3255 = vmatprep.mubr.bf16.mxu0 0
          %3256 = vmatmul.mubr.bf16.gmra.mxu0 %v3146
          %v3257 = vpop.f32.mrf.mxu0
          %v3258 = vadd.f32 %v3113, %v3257
          %v3259 = vpop.f32.mrf.mxu0
          %v3260 = vpop.f32.mrf.mxu0
          %v3261 = vadd.f32 %v3113, %v3260
          %v3262 = vpop.f32.mrf.mxu0
          %3263 = vmatprep.mubr.bf16.mxu0 0
          %3264 = vmatmul.mubr.bf16.gmra.mxu0 %v3149
          %v3265 = vpop.f32.mrf.mxu0
          %v3266 = vadd.f32 %v3113, %v3265
          %v3267 = vpop.f32.mrf.mxu0
          %v3268 = vpop.f32.mrf.mxu0
          %v3269 = vadd.f32 %v3113, %v3268
          %v3270 = vpop.f32.mrf.mxu0
          %3271 = vmatprep.mubr.bf16.mxu0 0
          %3272 = vmatmul.mubr.bf16.gmra.mxu0 %v3152
          %v3273 = vpop.f32.mrf.mxu0
          %v3274 = vadd.f32 %v3113, %v3273
          %v3275 = vpop.f32.mrf.mxu0
          %v3276 = vpop.f32.mrf.mxu0
          %v3277 = vadd.f32 %v3113, %v3276
          %v3278 = vpop.f32.mrf.mxu0
          %3279 = vmatprep.mubr.bf16.mxu0 0
          %3280 = vmatmul.mubr.bf16.gmra.mxu0 %v3155
          %v3281 = vpop.f32.mrf.mxu0
          %v3282 = vadd.f32 %v3113, %v3281
          %v3283 = vpop.f32.mrf.mxu0
          %v3284 = vpop.f32.mrf.mxu0
          %v3285 = vadd.f32 %v3113, %v3284
          %v3286 = vpop.f32.mrf.mxu0
          %3287 = vmatprep.mubr.bf16.mxu0 0
          %3288 = vmatmul.mubr.bf16.gmra.mxu0 %v3158
          %v3289 = vpop.f32.mrf.mxu0
          %v3290 = vadd.f32 %v3113, %v3289
          %v3291 = vpop.f32.mrf.mxu0
          %v3292 = vpop.f32.mrf.mxu0
          %v3293 = vadd.f32 %v3113, %v3292
          %v3294 = vpop.f32.mrf.mxu0
          %3295 = vmatprep.mubr.bf16.mxu0 0
          %3296 = vmatmul.mubr.bf16.gmra.mxu0 %v3161
          %v3297 = vpop.f32.mrf.mxu0
          %v3298 = vadd.f32 %v3113, %v3297
          %v3299 = vpop.f32.mrf.mxu0
          %v3300 = vpop.f32.mrf.mxu0
          %v3301 = vadd.f32 %v3113, %v3300
          %v3302 = vpop.f32.mrf.mxu0
          %3303 = vmatprep.mubr.bf16.mxu0 0
          %3304 = vmatmul.mubr.bf16.gmra.mxu0 %v3164
          %v3305 = vpop.f32.mrf.mxu0
          %v3306 = vadd.f32 %v3113, %v3305
          %v3307 = vpop.f32.mrf.mxu0
          %v3308 = vpop.f32.mrf.mxu0
          %v3309 = vadd.f32 %v3113, %v3308
          %v3310 = vpop.f32.mrf.mxu0
          %3311 = vmatprep.mubr.bf16.mxu0 0
          %3312 = vmatmul.mubr.bf16.gmra.mxu0 %v3167
          %v3313 = vpop.f32.mrf.mxu0
          %v3314 = vadd.f32 %v3113, %v3313
          %v3315 = vpop.f32.mrf.mxu0
          %v3316 = vpop.f32.mrf.mxu0
          %v3317 = vadd.f32 %v3113, %v3316
          %v3318 = vpop.f32.mrf.mxu0
          %3319 = vmatprep.mubr.bf16.mxu0 0
          %3320 = vmatmul.mubr.bf16.gmra.mxu0 %v3170
          %v3321 = vpop.f32.mrf.mxu0
          %v3322 = vadd.f32 %v3113, %v3321
          %v3323 = vpop.f32.mrf.mxu0
          %v3324 = vpop.f32.mrf.mxu0
          %v3325 = vadd.f32 %v3113, %v3324
          %v3326 = vpop.f32.mrf.mxu0
          %3327 = vmatprep.mubr.bf16.mxu0 0
          %3328 = vmatmul.mubr.bf16.gmra.mxu0 %v3173
          %v3329 = vpop.f32.mrf.mxu0
          %v3330 = vadd.f32 %v3113, %v3329
          %v3331 = vpop.f32.mrf.mxu0
          %v3332 = vpop.f32.mrf.mxu0
          %v3333 = vadd.f32 %v3113, %v3332
          %v3334 = vpop.f32.mrf.mxu0
          %3335 = vdwg.mxu0
          %v3336 = vmax.f32 %v3210, 0.0
          %v3337 = vmax.f32 %v3213, 0.0
          %v3338 = vmax.f32 %v3218, 0.0
          %v3339 = vmax.f32 %v3221, 0.0
          %v3340 = vmax.f32 %v3226, 0.0
          %v3341 = vmax.f32 %v3229, 0.0
          %v3342 = vmax.f32 %v3234, 0.0
          %v3343 = vmax.f32 %v3237, 0.0
          %v3344 = vmax.f32 %v3242, 0.0
          %v3345 = vmax.f32 %v3245, 0.0
          %v3346 = vmax.f32 %v3250, 0.0
          %v3347 = vmax.f32 %v3253, 0.0
          %v3348 = vmax.f32 %v3258, 0.0
          %v3349 = vmax.f32 %v3261, 0.0
          %v3350 = vmax.f32 %v3266, 0.0
          %v3351 = vmax.f32 %v3269, 0.0
          %v3352 = vmax.f32 %v3274, 0.0
          %v3353 = vmax.f32 %v3277, 0.0
          %v3354 = vmax.f32 %v3282, 0.0
          %v3355 = vmax.f32 %v3285, 0.0
          %v3356 = vmax.f32 %v3290, 0.0
          %v3357 = vmax.f32 %v3293, 0.0
          %v3358 = vmax.f32 %v3298, 0.0
          %v3359 = vmax.f32 %v3301, 0.0
          %v3360 = vmax.f32 %v3306, 0.0
          %v3361 = vmax.f32 %v3309, 0.0
          %v3362 = vmax.f32 %v3314, 0.0
          %v3363 = vmax.f32 %v3317, 0.0
          %v3364 = vmax.f32 %v3322, 0.0
          %v3365 = vmax.f32 %v3325, 0.0
          %v3366 = vmax.f32 %v3330, 0.0
          %v3367 = vmax.f32 %v3333, 0.0
          %v3368 = vpack.c.bf16 %v1971, %v1970
          %v3369 = vpack.c.bf16 %v1973, %v1972
          %v3370 = vpack.c.bf16 %v1975, %v1974
          %v3371 = vpack.c.bf16 %v1977, %v1976
          %v3372 = vpack.c.bf16 %v1979, %v1978
          %v3373 = vpack.c.bf16 %v1981, %v1980
          %v3374 = vpack.c.bf16 %v1983, %v1982
          %v3375 = vpack.c.bf16 %v1985, %v1984
          %v3376 = vpack.c.bf16 %v1987, %v1986
          %v3377 = vpack.c.bf16 %v1989, %v1988
          %v3378 = vpack.c.bf16 %v1991, %v1990
          %v3379 = vpack.c.bf16 %v1993, %v1992
          %v3380 = vpack.c.bf16 %v1995, %v1994
          %v3381 = vpack.c.bf16 %v1997, %v1996
          %v3382 = vpack.c.bf16 %v1999, %v1998
          %v3383 = vpack.c.bf16 %v2001, %v2000
          %v3384 = vld [vmem:[%s13] sm:$0xf]
          %v3385 = vld [vmem:[%s13 + $0x4] sm:$0xf]
          %v3388 = vunpack.c.l.b16 %v3384
          %v3389 = vunpack.c.l.b16 %v3385
          %v3390 = vpack.c.b16 %v3389, %v3388
          %vm3392 = vcmask 130048
          %v3394 = vsel %vm3392, %v3368, 0
          %v3397 = vsel %vm3392, %v3369, 0
          %v3400 = vsel %vm3392, %v3370, 0
          %v3403 = vsel %vm3392, %v3371, 0
          %v3406 = vsel %vm3392, %v3372, 0
          %v3409 = vsel %vm3392, %v3373, 0
          %v3412 = vsel %vm3392, %v3374, 0
          %v3415 = vsel %vm3392, %v3375, 0
          %v3418 = vsel %vm3392, %v3376, 0
          %v3421 = vsel %vm3392, %v3377, 0
          %v3424 = vsel %vm3392, %v3378, 0
          %v3427 = vsel %vm3392, %v3379, 0
          %v3430 = vsel %vm3392, %v3380, 0
          %v3433 = vsel %vm3392, %v3381, 0
          %v3436 = vsel %vm3392, %v3382, 0
          %v3439 = vsel %vm3392, %v3383, 0
          %3441 = vmatprep.subr.bf16.mxu0 0
          %3442 = vmatpush1.bf16.msra.mxu0 0
          %3443 = vmatprep.subr.bf16.mxu0 0
          %3444 = vmatpush1.bf16.msra.mxu0 0
          %3445 = vmatprep.subr.bf16.mxu0 0
          %3446 = vmatpush1.bf16.msra.mxu0 0
          %3447 = vmatprep.subr.bf16.mxu0 0
          %3448 = vmatpush1.bf16.msra.mxu0 0
          %3449 = vmatprep.subr.bf16.mxu0 0
          %3450 = vmatpush1.bf16.msra.mxu0 0
          %3451 = vmatprep.subr.bf16.mxu0 0
          %3452 = vmatpush1.bf16.msra.mxu0 0
          %3453 = vmatprep.subr.bf16.mxu0 0
          %3454 = vmatpush1.bf16.msra.mxu0 0
          %3455 = vmatprep.subr.bf16.mxu0 0
          %3456 = vmatpush1.bf16.msra.mxu0 %v3390
          %3457 = vmatprep.subr.bf16.mxu0 0
          %3458 = vmatpush2.bf16.msra.mxu0 0
          %3459 = vmatprep.subr.bf16.mxu0 0
          %3460 = vmatpush2.bf16.msra.mxu0 0
          %3461 = vmatprep.subr.bf16.mxu0 0
          %3462 = vmatpush2.bf16.msra.mxu0 0
          %3463 = vmatprep.subr.bf16.mxu0 0
          %3464 = vmatpush2.bf16.msra.mxu0 0
          %3465 = vmatprep.subr.bf16.mxu0 0
          %3466 = vmatpush2.bf16.msra.mxu0 0
          %3467 = vmatprep.subr.bf16.mxu0 0
          %3468 = vmatpush2.bf16.msra.mxu0 0
          %3469 = vmatprep.subr.bf16.mxu0 0
          %3470 = vmatpush2.bf16.msra.mxu0 0
          %3471 = vmatprep.subr.bf16.mxu0 0
          %3472 = vmatpush2.bf16.msra.mxu0 0
          %3473 = vmatprep.mubr.bf16.mxu0 0
          %3474 = vmatmul.mubr.bf16.gmra.mxu0 %v3394
          %v3475 = vpop.f32.mrf.mxu0
          %v3476 = vadd.f32 0.0, %v3475
          %v3477 = vpop.f32.mrf.mxu0
          %v3478 = vpop.f32.mrf.mxu0
          %v3479 = vadd.f32 0.0, %v3478
          %v3480 = vpop.f32.mrf.mxu0
          %3481 = vmatprep.mubr.bf16.mxu0 0
          %3482 = vmatmul.mubr.bf16.gmra.mxu0 %v3397
          %v3483 = vpop.f32.mrf.mxu0
          %v3484 = vadd.f32 0.0, %v3483
          %v3485 = vpop.f32.mrf.mxu0
          %v3486 = vpop.f32.mrf.mxu0
          %v3487 = vadd.f32 0.0, %v3486
          %v3488 = vpop.f32.mrf.mxu0
          %3489 = vmatprep.mubr.bf16.mxu0 0
          %3490 = vmatmul.mubr.bf16.gmra.mxu0 %v3400
          %v3491 = vpop.f32.mrf.mxu0
          %v3492 = vadd.f32 0.0, %v3491
          %v3493 = vpop.f32.mrf.mxu0
          %v3494 = vpop.f32.mrf.mxu0
          %v3495 = vadd.f32 0.0, %v3494
          %v3496 = vpop.f32.mrf.mxu0
          %3497 = vmatprep.mubr.bf16.mxu0 0
          %3498 = vmatmul.mubr.bf16.gmra.mxu0 %v3403
          %v3499 = vpop.f32.mrf.mxu0
          %v3500 = vadd.f32 0.0, %v3499
          %v3501 = vpop.f32.mrf.mxu0
          %v3502 = vpop.f32.mrf.mxu0
          %v3503 = vadd.f32 0.0, %v3502
          %v3504 = vpop.f32.mrf.mxu0
          %3505 = vmatprep.mubr.bf16.mxu0 0
          %3506 = vmatmul.mubr.bf16.gmra.mxu0 %v3406
          %v3507 = vpop.f32.mrf.mxu0
          %v3508 = vadd.f32 0.0, %v3507
          %v3509 = vpop.f32.mrf.mxu0
          %v3510 = vpop.f32.mrf.mxu0
          %v3511 = vadd.f32 0.0, %v3510
          %v3512 = vpop.f32.mrf.mxu0
          %3513 = vmatprep.mubr.bf16.mxu0 0
          %3514 = vmatmul.mubr.bf16.gmra.mxu0 %v3409
          %v3515 = vpop.f32.mrf.mxu0
          %v3516 = vadd.f32 0.0, %v3515
          %v3517 = vpop.f32.mrf.mxu0
          %v3518 = vpop.f32.mrf.mxu0
          %v3519 = vadd.f32 0.0, %v3518
          %v3520 = vpop.f32.mrf.mxu0
          %3521 = vmatprep.mubr.bf16.mxu0 0
          %3522 = vmatmul.mubr.bf16.gmra.mxu0 %v3412
          %v3523 = vpop.f32.mrf.mxu0
          %v3524 = vadd.f32 0.0, %v3523
          %v3525 = vpop.f32.mrf.mxu0
          %v3526 = vpop.f32.mrf.mxu0
          %v3527 = vadd.f32 0.0, %v3526
          %v3528 = vpop.f32.mrf.mxu0
          %3529 = vmatprep.mubr.bf16.mxu0 0
          %3530 = vmatmul.mubr.bf16.gmra.mxu0 %v3415
          %v3531 = vpop.f32.mrf.mxu0
          %v3532 = vadd.f32 0.0, %v3531
          %v3533 = vpop.f32.mrf.mxu0
          %v3534 = vpop.f32.mrf.mxu0
          %v3535 = vadd.f32 0.0, %v3534
          %v3536 = vpop.f32.mrf.mxu0
          %3537 = vmatprep.mubr.bf16.mxu0 0
          %3538 = vmatmul.mubr.bf16.gmra.mxu0 %v3418
          %v3539 = vpop.f32.mrf.mxu0
          %v3540 = vadd.f32 0.0, %v3539
          %v3541 = vpop.f32.mrf.mxu0
          %v3542 = vpop.f32.mrf.mxu0
          %v3543 = vadd.f32 0.0, %v3542
          %v3544 = vpop.f32.mrf.mxu0
          %3545 = vmatprep.mubr.bf16.mxu0 0
          %3546 = vmatmul.mubr.bf16.gmra.mxu0 %v3421
          %v3547 = vpop.f32.mrf.mxu0
          %v3548 = vadd.f32 0.0, %v3547
          %v3549 = vpop.f32.mrf.mxu0
          %v3550 = vpop.f32.mrf.mxu0
          %v3551 = vadd.f32 0.0, %v3550
          %v3552 = vpop.f32.mrf.mxu0
          %3553 = vmatprep.mubr.bf16.mxu0 0
          %3554 = vmatmul.mubr.bf16.gmra.mxu0 %v3424
          %v3555 = vpop.f32.mrf.mxu0
          %v3556 = vadd.f32 0.0, %v3555
          %v3557 = vpop.f32.mrf.mxu0
          %v3558 = vpop.f32.mrf.mxu0
          %v3559 = vadd.f32 0.0, %v3558
          %v3560 = vpop.f32.mrf.mxu0
          %3561 = vmatprep.mubr.bf16.mxu0 0
          %3562 = vmatmul.mubr.bf16.gmra.mxu0 %v3427
          %v3563 = vpop.f32.mrf.mxu0
          %v3564 = vadd.f32 0.0, %v3563
          %v3565 = vpop.f32.mrf.mxu0
          %v3566 = vpop.f32.mrf.mxu0
          %v3567 = vadd.f32 0.0, %v3566
          %v3568 = vpop.f32.mrf.mxu0
          %3569 = vmatprep.mubr.bf16.mxu0 0
          %3570 = vmatmul.mubr.bf16.gmra.mxu0 %v3430
          %v3571 = vpop.f32.mrf.mxu0
          %v3572 = vadd.f32 0.0, %v3571
          %v3573 = vpop.f32.mrf.mxu0
          %v3574 = vpop.f32.mrf.mxu0
          %v3575 = vadd.f32 0.0, %v3574
          %v3576 = vpop.f32.mrf.mxu0
          %3577 = vmatprep.mubr.bf16.mxu0 0
          %3578 = vmatmul.mubr.bf16.gmra.mxu0 %v3433
          %v3579 = vpop.f32.mrf.mxu0
          %v3580 = vadd.f32 0.0, %v3579
          %v3581 = vpop.f32.mrf.mxu0
          %v3582 = vpop.f32.mrf.mxu0
          %v3583 = vadd.f32 0.0, %v3582
          %v3584 = vpop.f32.mrf.mxu0
          %3585 = vmatprep.mubr.bf16.mxu0 0
          %3586 = vmatmul.mubr.bf16.gmra.mxu0 %v3436
          %v3587 = vpop.f32.mrf.mxu0
          %v3588 = vadd.f32 0.0, %v3587
          %v3589 = vpop.f32.mrf.mxu0
          %v3590 = vpop.f32.mrf.mxu0
          %v3591 = vadd.f32 0.0, %v3590
          %v3592 = vpop.f32.mrf.mxu0
          %3593 = vmatprep.mubr.bf16.mxu0 0
          %3594 = vmatmul.mubr.bf16.gmra.mxu0 %v3439
          %v3595 = vpop.f32.mrf.mxu0
          %v3596 = vadd.f32 0.0, %v3595
          %v3597 = vpop.f32.mrf.mxu0
          %v3598 = vpop.f32.mrf.mxu0
          %v3599 = vadd.f32 0.0, %v3598
          %v3600 = vpop.f32.mrf.mxu0
          %3601 = vdwg.mxu0
          %v3602 = vld [vmem:[%s15] sm:$0x1]
          %v3603 = vld [vmem:[%s14] sm:$0x1]
          %v3604 = vlaneseq
          %v3605 = vshrl.u32 %v3604, 7
          %v3606 = vsub.s32 0, %v3605
          %v3607 = vrot.slane %v3603, %v3606
          %v3608 = vmul.f32 %v3336, %v3607
          %v3609 = vmul.f32 %v3337, %v3607
          %v3610 = vmul.f32 %v3338, %v3607
          %v3611 = vmul.f32 %v3339, %v3607
          %v3612 = vmul.f32 %v3340, %v3607
          %v3613 = vmul.f32 %v3341, %v3607
          %v3614 = vmul.f32 %v3342, %v3607
          %v3615 = vmul.f32 %v3343, %v3607
          %v3616 = vmul.f32 %v3344, %v3607
          %v3617 = vmul.f32 %v3345, %v3607
          %v3618 = vmul.f32 %v3346, %v3607
          %v3619 = vmul.f32 %v3347, %v3607
          %v3620 = vmul.f32 %v3348, %v3607
          %v3621 = vmul.f32 %v3349, %v3607
          %v3622 = vmul.f32 %v3350, %v3607
          %v3623 = vmul.f32 %v3351, %v3607
          %v3624 = vmul.f32 %v3352, %v3607
          %v3625 = vmul.f32 %v3353, %v3607
          %v3626 = vmul.f32 %v3354, %v3607
          %v3627 = vmul.f32 %v3355, %v3607
          %v3628 = vmul.f32 %v3356, %v3607
          %v3629 = vmul.f32 %v3357, %v3607
          %v3630 = vmul.f32 %v3358, %v3607
          %v3631 = vmul.f32 %v3359, %v3607
          %v3632 = vmul.f32 %v3360, %v3607
          %v3633 = vmul.f32 %v3361, %v3607
          %v3634 = vmul.f32 %v3362, %v3607
          %v3635 = vmul.f32 %v3363, %v3607
          %v3636 = vmul.f32 %v3364, %v3607
          %v3637 = vmul.f32 %v3365, %v3607
          %v3638 = vmul.f32 %v3366, %v3607
          %v3639 = vmul.f32 %v3367, %v3607
          %v3640 = vsel %vm3392, %v3608, 0.0
          %3641 = vadd.xlane.f32.xlu0 %v3640
          %v3642 = vpop.xlane.xlu0 %3641
          %v3643 = vsel %vm3392, %v3609, 0.0
          %3644 = vadd.xlane.f32.xlu0 %v3643
          %v3645 = vpop.xlane.xlu0 %3644
          %v3646 = vsel %vm3392, %v3610, 0.0
          %3647 = vadd.xlane.f32.xlu0 %v3646
          %v3648 = vpop.xlane.xlu0 %3647
          %v3649 = vsel %vm3392, %v3611, 0.0
          %3650 = vadd.xlane.f32.xlu0 %v3649
          %v3651 = vpop.xlane.xlu0 %3650
          %v3652 = vsel %vm3392, %v3612, 0.0
          %3653 = vadd.xlane.f32.xlu0 %v3652
          %v3654 = vpop.xlane.xlu0 %3653
          %v3655 = vsel %vm3392, %v3613, 0.0
          %3656 = vadd.xlane.f32.xlu0 %v3655
          %v3657 = vpop.xlane.xlu0 %3656
          %v3658 = vsel %vm3392, %v3614, 0.0
          %3659 = vadd.xlane.f32.xlu0 %v3658
          %v3660 = vpop.xlane.xlu0 %3659
          %v3661 = vsel %vm3392, %v3615, 0.0
          %3662 = vadd.xlane.f32.xlu0 %v3661
          %v3663 = vpop.xlane.xlu0 %3662
          %v3664 = vsel %vm3392, %v3616, 0.0
          %3665 = vadd.xlane.f32.xlu0 %v3664
          %v3666 = vpop.xlane.xlu0 %3665
          %v3667 = vsel %vm3392, %v3617, 0.0
          %3668 = vadd.xlane.f32.xlu0 %v3667
          %v3669 = vpop.xlane.xlu0 %3668
          %v3670 = vsel %vm3392, %v3618, 0.0
          %3671 = vadd.xlane.f32.xlu0 %v3670
          %v3672 = vpop.xlane.xlu0 %3671
          %v3673 = vsel %vm3392, %v3619, 0.0
          %3674 = vadd.xlane.f32.xlu0 %v3673
          %v3675 = vpop.xlane.xlu0 %3674
          %v3676 = vsel %vm3392, %v3620, 0.0
          %3677 = vadd.xlane.f32.xlu0 %v3676
          %v3678 = vpop.xlane.xlu0 %3677
          %v3679 = vsel %vm3392, %v3621, 0.0
          %3680 = vadd.xlane.f32.xlu0 %v3679
          %v3681 = vpop.xlane.xlu0 %3680
          %v3682 = vsel %vm3392, %v3622, 0.0
          %3683 = vadd.xlane.f32.xlu0 %v3682
          %v3684 = vpop.xlane.xlu0 %3683
          %v3685 = vsel %vm3392, %v3623, 0.0
          %3686 = vadd.xlane.f32.xlu0 %v3685
          %v3687 = vpop.xlane.xlu0 %3686
          %v3688 = vsel %vm3392, %v3624, 0.0
          %3689 = vadd.xlane.f32.xlu0 %v3688
          %v3690 = vpop.xlane.xlu0 %3689
          %v3691 = vsel %vm3392, %v3625, 0.0
          %3692 = vadd.xlane.f32.xlu0 %v3691
          %v3693 = vpop.xlane.xlu0 %3692
          %v3694 = vsel %vm3392, %v3626, 0.0
          %3695 = vadd.xlane.f32.xlu0 %v3694
          %v3696 = vpop.xlane.xlu0 %3695
          %v3697 = vsel %vm3392, %v3627, 0.0
          %3698 = vadd.xlane.f32.xlu0 %v3697
          %v3699 = vpop.xlane.xlu0 %3698
          %v3700 = vsel %vm3392, %v3628, 0.0
          %3701 = vadd.xlane.f32.xlu0 %v3700
          %v3702 = vpop.xlane.xlu0 %3701
          %v3703 = vsel %vm3392, %v3629, 0.0
          %3704 = vadd.xlane.f32.xlu0 %v3703
          %v3705 = vpop.xlane.xlu0 %3704
          %v3706 = vsel %vm3392, %v3630, 0.0
          %3707 = vadd.xlane.f32.xlu0 %v3706
          %v3708 = vpop.xlane.xlu0 %3707
          %v3709 = vsel %vm3392, %v3631, 0.0
          %3710 = vadd.xlane.f32.xlu0 %v3709
          %v3711 = vpop.xlane.xlu0 %3710
          %v3712 = vsel %vm3392, %v3632, 0.0
          %3713 = vadd.xlane.f32.xlu0 %v3712
          %v3714 = vpop.xlane.xlu0 %3713
          %v3715 = vsel %vm3392, %v3633, 0.0
          %3716 = vadd.xlane.f32.xlu0 %v3715
          %v3717 = vpop.xlane.xlu0 %3716
          %v3718 = vsel %vm3392, %v3634, 0.0
          %3719 = vadd.xlane.f32.xlu0 %v3718
          %v3720 = vpop.xlane.xlu0 %3719
          %v3721 = vsel %vm3392, %v3635, 0.0
          %3722 = vadd.xlane.f32.xlu0 %v3721
          %v3723 = vpop.xlane.xlu0 %3722
          %v3724 = vsel %vm3392, %v3636, 0.0
          %3725 = vadd.xlane.f32.xlu0 %v3724
          %v3726 = vpop.xlane.xlu0 %3725
          %v3727 = vsel %vm3392, %v3637, 0.0
          %3728 = vadd.xlane.f32.xlu0 %v3727
          %v3729 = vpop.xlane.xlu0 %3728
          %v3730 = vsel %vm3392, %v3638, 0.0
          %3731 = vadd.xlane.f32.xlu0 %v3730
          %v3732 = vpop.xlane.xlu0 %3731
          %v3733 = vsel %vm3392, %v3639, 0.0
          %3734 = vadd.xlane.f32.xlu0 %v3733
          %v3735 = vpop.xlane.xlu0 %3734
          %v3736 = vld [vmem:[%s14 + $0x1] sm:$0x1]
          %v3737 = vlaneseq
          %v3738 = vshrl.u32 %v3737, 7
          %v3739 = vsub.s32 0, %v3738
          %v3740 = vrot.slane %v3736, %v3739
          %v3741 = vmul.f32 %v3336, %v3740
          %v3742 = vmul.f32 %v3337, %v3740
          %v3743 = vmul.f32 %v3338, %v3740
          %v3744 = vmul.f32 %v3339, %v3740
          %v3745 = vmul.f32 %v3340, %v3740
          %v3746 = vmul.f32 %v3341, %v3740
          %v3747 = vmul.f32 %v3342, %v3740
          %v3748 = vmul.f32 %v3343, %v3740
          %v3749 = vmul.f32 %v3344, %v3740
          %v3750 = vmul.f32 %v3345, %v3740
          %v3751 = vmul.f32 %v3346, %v3740
          %v3752 = vmul.f32 %v3347, %v3740
          %v3753 = vmul.f32 %v3348, %v3740
          %v3754 = vmul.f32 %v3349, %v3740
          %v3755 = vmul.f32 %v3350, %v3740
          %v3756 = vmul.f32 %v3351, %v3740
          %v3757 = vmul.f32 %v3352, %v3740
          %v3758 = vmul.f32 %v3353, %v3740
          %v3759 = vmul.f32 %v3354, %v3740
          %v3760 = vmul.f32 %v3355, %v3740
          %v3761 = vmul.f32 %v3356, %v3740
          %v3762 = vmul.f32 %v3357, %v3740
          %v3763 = vmul.f32 %v3358, %v3740
          %v3764 = vmul.f32 %v3359, %v3740
          %v3765 = vmul.f32 %v3360, %v3740
          %v3766 = vmul.f32 %v3361, %v3740
          %v3767 = vmul.f32 %v3362, %v3740
          %v3768 = vmul.f32 %v3363, %v3740
          %v3769 = vmul.f32 %v3364, %v3740
          %v3770 = vmul.f32 %v3365, %v3740
          %v3771 = vmul.f32 %v3366, %v3740
          %v3772 = vmul.f32 %v3367, %v3740
          %v3773 = vsel %vm3392, %v3741, 0.0
          %3774 = vadd.xlane.f32.xlu0 %v3773
          %v3775 = vpop.xlane.xlu0 %3774
          %v3776 = vsel %vm3392, %v3742, 0.0
          %3777 = vadd.xlane.f32.xlu0 %v3776
          %v3778 = vpop.xlane.xlu0 %3777
          %v3779 = vsel %vm3392, %v3743, 0.0
          %3780 = vadd.xlane.f32.xlu0 %v3779
          %v3781 = vpop.xlane.xlu0 %3780
          %v3782 = vsel %vm3392, %v3744, 0.0
          %3783 = vadd.xlane.f32.xlu0 %v3782
          %v3784 = vpop.xlane.xlu0 %3783
          %v3785 = vsel %vm3392, %v3745, 0.0
          %3786 = vadd.xlane.f32.xlu0 %v3785
          %v3787 = vpop.xlane.xlu0 %3786
          %v3788 = vsel %vm3392, %v3746, 0.0
          %3789 = vadd.xlane.f32.xlu0 %v3788
          %v3790 = vpop.xlane.xlu0 %3789
          %v3791 = vsel %vm3392, %v3747, 0.0
          %3792 = vadd.xlane.f32.xlu0 %v3791
          %v3793 = vpop.xlane.xlu0 %3792
          %v3794 = vsel %vm3392, %v3748, 0.0
          %3795 = vadd.xlane.f32.xlu0 %v3794
          %v3796 = vpop.xlane.xlu0 %3795
          %v3797 = vsel %vm3392, %v3749, 0.0
          %3798 = vadd.xlane.f32.xlu0 %v3797
          %v3799 = vpop.xlane.xlu0 %3798
          %v3800 = vsel %vm3392, %v3750, 0.0
          %3801 = vadd.xlane.f32.xlu0 %v3800
          %v3802 = vpop.xlane.xlu0 %3801
          %v3803 = vsel %vm3392, %v3751, 0.0
          %3804 = vadd.xlane.f32.xlu0 %v3803
          %v3805 = vpop.xlane.xlu0 %3804
          %v3806 = vsel %vm3392, %v3752, 0.0
          %3807 = vadd.xlane.f32.xlu0 %v3806
          %v3808 = vpop.xlane.xlu0 %3807
          %v3809 = vsel %vm3392, %v3753, 0.0
          %3810 = vadd.xlane.f32.xlu0 %v3809
          %v3811 = vpop.xlane.xlu0 %3810
          %v3812 = vsel %vm3392, %v3754, 0.0
          %3813 = vadd.xlane.f32.xlu0 %v3812
          %v3814 = vpop.xlane.xlu0 %3813
          %v3815 = vsel %vm3392, %v3755, 0.0
          %3816 = vadd.xlane.f32.xlu0 %v3815
          %v3817 = vpop.xlane.xlu0 %3816
          %v3818 = vsel %vm3392, %v3756, 0.0
          %3819 = vadd.xlane.f32.xlu0 %v3818
          %v3820 = vpop.xlane.xlu0 %3819
          %v3821 = vsel %vm3392, %v3757, 0.0
          %3822 = vadd.xlane.f32.xlu0 %v3821
          %v3823 = vpop.xlane.xlu0 %3822
          %v3824 = vsel %vm3392, %v3758, 0.0
          %3825 = vadd.xlane.f32.xlu0 %v3824
          %v3826 = vpop.xlane.xlu0 %3825
          %v3827 = vsel %vm3392, %v3759, 0.0
          %3828 = vadd.xlane.f32.xlu0 %v3827
          %v3829 = vpop.xlane.xlu0 %3828
          %v3830 = vsel %vm3392, %v3760, 0.0
          %3831 = vadd.xlane.f32.xlu0 %v3830
          %v3832 = vpop.xlane.xlu0 %3831
          %v3833 = vsel %vm3392, %v3761, 0.0
          %3834 = vadd.xlane.f32.xlu0 %v3833
          %v3835 = vpop.xlane.xlu0 %3834
          %v3836 = vsel %vm3392, %v3762, 0.0
          %3837 = vadd.xlane.f32.xlu0 %v3836
          %v3838 = vpop.xlane.xlu0 %3837
          %v3839 = vsel %vm3392, %v3763, 0.0
          %3840 = vadd.xlane.f32.xlu0 %v3839
          %v3841 = vpop.xlane.xlu0 %3840
          %v3842 = vsel %vm3392, %v3764, 0.0
          %3843 = vadd.xlane.f32.xlu0 %v3842
          %v3844 = vpop.xlane.xlu0 %3843
          %v3845 = vsel %vm3392, %v3765, 0.0
          %3846 = vadd.xlane.f32.xlu0 %v3845
          %v3847 = vpop.xlane.xlu0 %3846
          %v3848 = vsel %vm3392, %v3766, 0.0
          %3849 = vadd.xlane.f32.xlu0 %v3848
          %v3850 = vpop.xlane.xlu0 %3849
          %v3851 = vsel %vm3392, %v3767, 0.0
          %3852 = vadd.xlane.f32.xlu0 %v3851
          %v3853 = vpop.xlane.xlu0 %3852
          %v3854 = vsel %vm3392, %v3768, 0.0
          %3855 = vadd.xlane.f32.xlu0 %v3854
          %v3856 = vpop.xlane.xlu0 %3855
          %v3857 = vsel %vm3392, %v3769, 0.0
          %3858 = vadd.xlane.f32.xlu0 %v3857
          %v3859 = vpop.xlane.xlu0 %3858
          %v3860 = vsel %vm3392, %v3770, 0.0
          %3861 = vadd.xlane.f32.xlu0 %v3860
          %v3862 = vpop.xlane.xlu0 %3861
          %v3863 = vsel %vm3392, %v3771, 0.0
          %3864 = vadd.xlane.f32.xlu0 %v3863
          %v3865 = vpop.xlane.xlu0 %3864
          %v3866 = vsel %vm3392, %v3772, 0.0
          %3867 = vadd.xlane.f32.xlu0 %v3866
          %v3868 = vpop.xlane.xlu0 %3867
          %v3869 = vmul.f32 %v3476, %v3336
          %v3870 = vmul.f32 %v3479, %v3337
          %v3871 = vmul.f32 %v3484, %v3338
          %v3872 = vmul.f32 %v3487, %v3339
          %v3873 = vmul.f32 %v3492, %v3340
          %v3874 = vmul.f32 %v3495, %v3341
          %v3875 = vmul.f32 %v3500, %v3342
          %v3876 = vmul.f32 %v3503, %v3343
          %v3877 = vmul.f32 %v3508, %v3344
          %v3878 = vmul.f32 %v3511, %v3345
          %v3879 = vmul.f32 %v3516, %v3346
          %v3880 = vmul.f32 %v3519, %v3347
          %v3881 = vmul.f32 %v3524, %v3348
          %v3882 = vmul.f32 %v3527, %v3349
          %v3883 = vmul.f32 %v3532, %v3350
          %v3884 = vmul.f32 %v3535, %v3351
          %v3885 = vmul.f32 %v3540, %v3352
          %v3886 = vmul.f32 %v3543, %v3353
          %v3887 = vmul.f32 %v3548, %v3354
          %v3888 = vmul.f32 %v3551, %v3355
          %v3889 = vmul.f32 %v3556, %v3356
          %v3890 = vmul.f32 %v3559, %v3357
          %v3891 = vmul.f32 %v3564, %v3358
          %v3892 = vmul.f32 %v3567, %v3359
          %v3893 = vmul.f32 %v3572, %v3360
          %v3894 = vmul.f32 %v3575, %v3361
          %v3895 = vmul.f32 %v3580, %v3362
          %v3896 = vmul.f32 %v3583, %v3363
          %v3897 = vmul.f32 %v3588, %v3364
          %v3898 = vmul.f32 %v3591, %v3365
          %v3899 = vmul.f32 %v3596, %v3366
          %v3900 = vmul.f32 %v3599, %v3367
          %v3901 = vsel %vm3392, %v3869, 0.0
          %3902 = vadd.xlane.f32.xlu0 %v3901
          %v3903 = vpop.xlane.xlu0 %3902
          %v3904 = vsel %vm3392, %v3870, 0.0
          %3905 = vadd.xlane.f32.xlu0 %v3904
          %v3906 = vpop.xlane.xlu0 %3905
          %v3907 = vsel %vm3392, %v3871, 0.0
          %3908 = vadd.xlane.f32.xlu0 %v3907
          %v3909 = vpop.xlane.xlu0 %3908
          %v3910 = vsel %vm3392, %v3872, 0.0
          %3911 = vadd.xlane.f32.xlu0 %v3910
          %v3912 = vpop.xlane.xlu0 %3911
          %v3913 = vsel %vm3392, %v3873, 0.0
          %3914 = vadd.xlane.f32.xlu0 %v3913
          %v3915 = vpop.xlane.xlu0 %3914
          %v3916 = vsel %vm3392, %v3874, 0.0
          %3917 = vadd.xlane.f32.xlu0 %v3916
          %v3918 = vpop.xlane.xlu0 %3917
          %v3919 = vsel %vm3392, %v3875, 0.0
          %3920 = vadd.xlane.f32.xlu0 %v3919
          %v3921 = vpop.xlane.xlu0 %3920
          %v3922 = vsel %vm3392, %v3876, 0.0
          %3923 = vadd.xlane.f32.xlu0 %v3922
          %v3924 = vpop.xlane.xlu0 %3923
          %v3925 = vsel %vm3392, %v3877, 0.0
          %3926 = vadd.xlane.f32.xlu0 %v3925
          %v3927 = vpop.xlane.xlu0 %3926
          %v3928 = vsel %vm3392, %v3878, 0.0
          %3929 = vadd.xlane.f32.xlu0 %v3928
          %v3930 = vpop.xlane.xlu0 %3929
          %v3931 = vsel %vm3392, %v3879, 0.0
          %3932 = vadd.xlane.f32.xlu0 %v3931
          %v3933 = vpop.xlane.xlu0 %3932
          %v3934 = vsel %vm3392, %v3880, 0.0
          %3935 = vadd.xlane.f32.xlu0 %v3934
          %v3936 = vpop.xlane.xlu0 %3935
          %v3937 = vsel %vm3392, %v3881, 0.0
          %3938 = vadd.xlane.f32.xlu0 %v3937
          %v3939 = vpop.xlane.xlu0 %3938
          %v3940 = vsel %vm3392, %v3882, 0.0
          %3941 = vadd.xlane.f32.xlu0 %v3940
          %v3942 = vpop.xlane.xlu0 %3941
          %v3943 = vsel %vm3392, %v3883, 0.0
          %3944 = vadd.xlane.f32.xlu0 %v3943
          %v3945 = vpop.xlane.xlu0 %3944
          %v3946 = vsel %vm3392, %v3884, 0.0
          %3947 = vadd.xlane.f32.xlu0 %v3946
          %v3948 = vpop.xlane.xlu0 %3947
          %v3949 = vsel %vm3392, %v3885, 0.0
          %3950 = vadd.xlane.f32.xlu0 %v3949
          %v3951 = vpop.xlane.xlu0 %3950
          %v3952 = vsel %vm3392, %v3886, 0.0
          %3953 = vadd.xlane.f32.xlu0 %v3952
          %v3954 = vpop.xlane.xlu0 %3953
          %v3955 = vsel %vm3392, %v3887, 0.0
          %3956 = vadd.xlane.f32.xlu0 %v3955
          %v3957 = vpop.xlane.xlu0 %3956
          %v3958 = vsel %vm3392, %v3888, 0.0
          %3959 = vadd.xlane.f32.xlu0 %v3958
          %v3960 = vpop.xlane.xlu0 %3959
          %v3961 = vsel %vm3392, %v3889, 0.0
          %3962 = vadd.xlane.f32.xlu0 %v3961
          %v3963 = vpop.xlane.xlu0 %3962
          %v3964 = vsel %vm3392, %v3890, 0.0
          %3965 = vadd.xlane.f32.xlu0 %v3964
          %v3966 = vpop.xlane.xlu0 %3965
          %v3967 = vsel %vm3392, %v3891, 0.0
          %3968 = vadd.xlane.f32.xlu0 %v3967
          %v3969 = vpop.xlane.xlu0 %3968
          %v3970 = vsel %vm3392, %v3892, 0.0
          %3971 = vadd.xlane.f32.xlu0 %v3970
          %v3972 = vpop.xlane.xlu0 %3971
          %v3973 = vsel %vm3392, %v3893, 0.0
          %3974 = vadd.xlane.f32.xlu0 %v3973
          %v3975 = vpop.xlane.xlu0 %3974
          %v3976 = vsel %vm3392, %v3894, 0.0
          %3977 = vadd.xlane.f32.xlu0 %v3976
          %v3978 = vpop.xlane.xlu0 %3977
          %v3979 = vsel %vm3392, %v3895, 0.0
          %3980 = vadd.xlane.f32.xlu0 %v3979
          %v3981 = vpop.xlane.xlu0 %3980
          %v3982 = vsel %vm3392, %v3896, 0.0
          %3983 = vadd.xlane.f32.xlu0 %v3982
          %v3984 = vpop.xlane.xlu0 %3983
          %v3985 = vsel %vm3392, %v3897, 0.0
          %3986 = vadd.xlane.f32.xlu0 %v3985
          %v3987 = vpop.xlane.xlu0 %3986
          %v3988 = vsel %vm3392, %v3898, 0.0
          %3989 = vadd.xlane.f32.xlu0 %v3988
          %v3990 = vpop.xlane.xlu0 %3989
          %v3991 = vsel %vm3392, %v3899, 0.0
          %3992 = vadd.xlane.f32.xlu0 %v3991
          %v3993 = vpop.xlane.xlu0 %3992
          %v3994 = vsel %vm3392, %v3900, 0.0
          %3995 = vadd.xlane.f32.xlu0 %v3994
          %v3996 = vpop.xlane.xlu0 %3995
          %v3997 = vadd.f32 %v3903, %v3476
          %v3998 = vadd.f32 %v3906, %v3479
          %v3999 = vadd.f32 %v3909, %v3484
          %v4000 = vadd.f32 %v3912, %v3487
          %v4001 = vadd.f32 %v3915, %v3492
          %v4002 = vadd.f32 %v3918, %v3495
          %v4003 = vadd.f32 %v3921, %v3500
          %v4004 = vadd.f32 %v3924, %v3503
          %v4005 = vadd.f32 %v3927, %v3508
          %v4006 = vadd.f32 %v3930, %v3511
          %v4007 = vadd.f32 %v3933, %v3516
          %v4008 = vadd.f32 %v3936, %v3519
          %v4009 = vadd.f32 %v3939, %v3524
          %v4010 = vadd.f32 %v3942, %v3527
          %v4011 = vadd.f32 %v3945, %v3532
          %v4012 = vadd.f32 %v3948, %v3535
          %v4013 = vadd.f32 %v3951, %v3540
          %v4014 = vadd.f32 %v3954, %v3543
          %v4015 = vadd.f32 %v3957, %v3548
          %v4016 = vadd.f32 %v3960, %v3551
          %v4017 = vadd.f32 %v3963, %v3556
          %v4018 = vadd.f32 %v3966, %v3559
          %v4019 = vadd.f32 %v3969, %v3564
          %v4020 = vadd.f32 %v3972, %v3567
          %v4021 = vadd.f32 %v3975, %v3572
          %v4022 = vadd.f32 %v3978, %v3575
          %v4023 = vadd.f32 %v3981, %v3580
          %v4024 = vadd.f32 %v3984, %v3583
          %v4025 = vadd.f32 %v3987, %v3588
          %v4026 = vadd.f32 %v3990, %v3591
          %v4027 = vadd.f32 %v3993, %v3596
          %v4028 = vadd.f32 %v3996, %v3599
          %v4029 = vadd.f32 %v3997, %v3642
          %v4030 = vadd.f32 %v3998, %v3645
          %v4031 = vadd.f32 %v3999, %v3648
          %v4032 = vadd.f32 %v4000, %v3651
          %v4033 = vadd.f32 %v4001, %v3654
          %v4034 = vadd.f32 %v4002, %v3657
          %v4035 = vadd.f32 %v4003, %v3660
          %v4036 = vadd.f32 %v4004, %v3663
          %v4037 = vadd.f32 %v4005, %v3666
          %v4038 = vadd.f32 %v4006, %v3669
          %v4039 = vadd.f32 %v4007, %v3672
          %v4040 = vadd.f32 %v4008, %v3675
          %v4041 = vadd.f32 %v4009, %v3678
          %v4042 = vadd.f32 %v4010, %v3681
          %v4043 = vadd.f32 %v4011, %v3684
          %v4044 = vadd.f32 %v4012, %v3687
          %v4045 = vadd.f32 %v4013, %v3690
          %v4046 = vadd.f32 %v4014, %v3693
          %v4047 = vadd.f32 %v4015, %v3696
          %v4048 = vadd.f32 %v4016, %v3699
          %v4049 = vadd.f32 %v4017, %v3702
          %v4050 = vadd.f32 %v4018, %v3705
          %v4051 = vadd.f32 %v4019, %v3708
          %v4052 = vadd.f32 %v4020, %v3711
          %v4053 = vadd.f32 %v4021, %v3714
          %v4054 = vadd.f32 %v4022, %v3717
          %v4055 = vadd.f32 %v4023, %v3720
          %v4056 = vadd.f32 %v4024, %v3723
          %v4057 = vadd.f32 %v4025, %v3726
          %v4058 = vadd.f32 %v4026, %v3729
          %v4059 = vadd.f32 %v4027, %v3732
          %v4060 = vadd.f32 %v4028, %v3735
          %v4062 = vlaneseq
          %v4063 = vshrl.u32 %v4062, 7
          %v4064 = vsub.s32 0, %v4063
          %v4065 = vrot.slane %v3602, %v4064
          %4066 = vrot.lane.b32.xlu0 %v4065, 32
          %v4067 = vpop.permute.xlu0 %4066
          %v4069 = vadd.f32 %v4029, %v4067
          %v4070 = vadd.f32 %v4030, %v4067
          %v4071 = vadd.f32 %v4031, %v4067
          %v4072 = vadd.f32 %v4032, %v4067
          %v4073 = vadd.f32 %v4033, %v4067
          %v4074 = vadd.f32 %v4034, %v4067
          %v4075 = vadd.f32 %v4035, %v4067
          %v4076 = vadd.f32 %v4036, %v4067
          %v4077 = vadd.f32 %v4037, %v4067
          %v4078 = vadd.f32 %v4038, %v4067
          %v4079 = vadd.f32 %v4039, %v4067
          %v4080 = vadd.f32 %v4040, %v4067
          %v4081 = vadd.f32 %v4041, %v4067
          %v4082 = vadd.f32 %v4042, %v4067
          %v4083 = vadd.f32 %v4043, %v4067
          %v4084 = vadd.f32 %v4044, %v4067
          %v4085 = vadd.f32 %v4045, %v4067
          %v4086 = vadd.f32 %v4046, %v4067
          %v4087 = vadd.f32 %v4047, %v4067
          %v4088 = vadd.f32 %v4048, %v4067
          %v4089 = vadd.f32 %v4049, %v4067
          %v4090 = vadd.f32 %v4050, %v4067
          %v4091 = vadd.f32 %v4051, %v4067
          %v4092 = vadd.f32 %v4052, %v4067
          %v4093 = vadd.f32 %v4053, %v4067
          %v4094 = vadd.f32 %v4054, %v4067
          %v4095 = vadd.f32 %v4055, %v4067
          %v4096 = vadd.f32 %v4056, %v4067
          %v4097 = vadd.f32 %v4057, %v4067
          %v4098 = vadd.f32 %v4058, %v4067
          %v4099 = vadd.f32 %v4059, %v4067
          %v4100 = vadd.f32 %v4060, %v4067
          %4133 = vrot.lane.b32.xlu0 %v3336, 16
          %v4134 = vpop.permute.xlu0 %4133
          %4135 = vrot.lane.b32.xlu0 %v3337, 16
          %v4136 = vpop.permute.xlu0 %4135
          %4137 = vrot.lane.b32.xlu0 %v3338, 16
          %v4138 = vpop.permute.xlu0 %4137
          %4139 = vrot.lane.b32.xlu0 %v3339, 16
          %v4140 = vpop.permute.xlu0 %4139
          %4141 = vrot.lane.b32.xlu0 %v3340, 16
          %v4142 = vpop.permute.xlu0 %4141
          %4143 = vrot.lane.b32.xlu0 %v3341, 16
          %v4144 = vpop.permute.xlu0 %4143
          %4145 = vrot.lane.b32.xlu0 %v3342, 16
          %v4146 = vpop.permute.xlu0 %4145
          %4147 = vrot.lane.b32.xlu0 %v3343, 16
          %v4148 = vpop.permute.xlu0 %4147
          %4149 = vrot.lane.b32.xlu0 %v3344, 16
          %v4150 = vpop.permute.xlu0 %4149
          %4151 = vrot.lane.b32.xlu0 %v3345, 16
          %v4152 = vpop.permute.xlu0 %4151
          %4153 = vrot.lane.b32.xlu0 %v3346, 16
          %v4154 = vpop.permute.xlu0 %4153
          %4155 = vrot.lane.b32.xlu0 %v3347, 16
          %v4156 = vpop.permute.xlu0 %4155
          %4157 = vrot.lane.b32.xlu0 %v3348, 16
          %v4158 = vpop.permute.xlu0 %4157
          %4159 = vrot.lane.b32.xlu0 %v3349, 16
          %v4160 = vpop.permute.xlu0 %4159
          %4161 = vrot.lane.b32.xlu0 %v3350, 16
          %v4162 = vpop.permute.xlu0 %4161
          %4163 = vrot.lane.b32.xlu0 %v3351, 16
          %v4164 = vpop.permute.xlu0 %4163
          %4165 = vrot.lane.b32.xlu0 %v3352, 16
          %v4166 = vpop.permute.xlu0 %4165
          %4167 = vrot.lane.b32.xlu0 %v3353, 16
          %v4168 = vpop.permute.xlu0 %4167
          %4169 = vrot.lane.b32.xlu0 %v3354, 16
          %v4170 = vpop.permute.xlu0 %4169
          %4171 = vrot.lane.b32.xlu0 %v3355, 16
          %v4172 = vpop.permute.xlu0 %4171
          %4173 = vrot.lane.b32.xlu0 %v3356, 16
          %v4174 = vpop.permute.xlu0 %4173
          %4175 = vrot.lane.b32.xlu0 %v3357, 16
          %v4176 = vpop.permute.xlu0 %4175
          %4177 = vrot.lane.b32.xlu0 %v3358, 16
          %v4178 = vpop.permute.xlu0 %4177
          %4179 = vrot.lane.b32.xlu0 %v3359, 16
          %v4180 = vpop.permute.xlu0 %4179
          %4181 = vrot.lane.b32.xlu0 %v3360, 16
          %v4182 = vpop.permute.xlu0 %4181
          %4183 = vrot.lane.b32.xlu0 %v3361, 16
          %v4184 = vpop.permute.xlu0 %4183
          %4185 = vrot.lane.b32.xlu0 %v3362, 16
          %v4186 = vpop.permute.xlu0 %4185
          %4187 = vrot.lane.b32.xlu0 %v3363, 16
          %v4188 = vpop.permute.xlu0 %4187
          %4189 = vrot.lane.b32.xlu0 %v3364, 16
          %v4190 = vpop.permute.xlu0 %4189
          %4191 = vrot.lane.b32.xlu0 %v3365, 16
          %v4192 = vpop.permute.xlu0 %4191
          %4193 = vrot.lane.b32.xlu0 %v3366, 16
          %v4194 = vpop.permute.xlu0 %4193
          %4195 = vrot.lane.b32.xlu0 %v3367, 16
          %v4196 = vpop.permute.xlu0 %4195
          %v4229 = vmul.f32 %v3476, %v4134
          %v4230 = vmul.f32 %v3479, %v4136
          %v4231 = vmul.f32 %v3484, %v4138
          %v4232 = vmul.f32 %v3487, %v4140
          %v4233 = vmul.f32 %v3492, %v4142
          %v4234 = vmul.f32 %v3495, %v4144
          %v4235 = vmul.f32 %v3500, %v4146
          %v4236 = vmul.f32 %v3503, %v4148
          %v4237 = vmul.f32 %v3508, %v4150
          %v4238 = vmul.f32 %v3511, %v4152
          %v4239 = vmul.f32 %v3516, %v4154
          %v4240 = vmul.f32 %v3519, %v4156
          %v4241 = vmul.f32 %v3524, %v4158
          %v4242 = vmul.f32 %v3527, %v4160
          %v4243 = vmul.f32 %v3532, %v4162
          %v4244 = vmul.f32 %v3535, %v4164
          %v4245 = vmul.f32 %v3540, %v4166
          %v4246 = vmul.f32 %v3543, %v4168
          %v4247 = vmul.f32 %v3548, %v4170
          %v4248 = vmul.f32 %v3551, %v4172
          %v4249 = vmul.f32 %v3556, %v4174
          %v4250 = vmul.f32 %v3559, %v4176
          %v4251 = vmul.f32 %v3564, %v4178
          %v4252 = vmul.f32 %v3567, %v4180
          %v4253 = vmul.f32 %v3572, %v4182
          %v4254 = vmul.f32 %v3575, %v4184
          %v4255 = vmul.f32 %v3580, %v4186
          %v4256 = vmul.f32 %v3583, %v4188
          %v4257 = vmul.f32 %v3588, %v4190
          %v4258 = vmul.f32 %v3591, %v4192
          %v4259 = vmul.f32 %v3596, %v4194
          %v4260 = vmul.f32 %v3599, %v4196
          %4293 = vrot.lane.b32.xlu0 %v4229, 112
          %v4294 = vpop.permute.xlu0 %4293
          %4295 = vrot.lane.b32.xlu0 %v4230, 112
          %v4296 = vpop.permute.xlu0 %4295
          %4297 = vrot.lane.b32.xlu0 %v4231, 112
          %v4298 = vpop.permute.xlu0 %4297
          %4299 = vrot.lane.b32.xlu0 %v4232, 112
          %v4300 = vpop.permute.xlu0 %4299
          %4301 = vrot.lane.b32.xlu0 %v4233, 112
          %v4302 = vpop.permute.xlu0 %4301
          %4303 = vrot.lane.b32.xlu0 %v4234, 112
          %v4304 = vpop.permute.xlu0 %4303
          %4305 = vrot.lane.b32.xlu0 %v4235, 112
          %v4306 = vpop.permute.xlu0 %4305
          %4307 = vrot.lane.b32.xlu0 %v4236, 112
          %v4308 = vpop.permute.xlu0 %4307
          %4309 = vrot.lane.b32.xlu0 %v4237, 112
          %v4310 = vpop.permute.xlu0 %4309
          %4311 = vrot.lane.b32.xlu0 %v4238, 112
          %v4312 = vpop.permute.xlu0 %4311
          %4313 = vrot.lane.b32.xlu0 %v4239, 112
          %v4314 = vpop.permute.xlu0 %4313
          %4315 = vrot.lane.b32.xlu0 %v4240, 112
          %v4316 = vpop.permute.xlu0 %4315
          %4317 = vrot.lane.b32.xlu0 %v4241, 112
          %v4318 = vpop.permute.xlu0 %4317
          %4319 = vrot.lane.b32.xlu0 %v4242, 112
          %v4320 = vpop.permute.xlu0 %4319
          %4321 = vrot.lane.b32.xlu0 %v4243, 112
          %v4322 = vpop.permute.xlu0 %4321
          %4323 = vrot.lane.b32.xlu0 %v4244, 112
          %v4324 = vpop.permute.xlu0 %4323
          %4325 = vrot.lane.b32.xlu0 %v4245, 112
          %v4326 = vpop.permute.xlu0 %4325
          %4327 = vrot.lane.b32.xlu0 %v4246, 112
          %v4328 = vpop.permute.xlu0 %4327
          %4329 = vrot.lane.b32.xlu0 %v4247, 112
          %v4330 = vpop.permute.xlu0 %4329
          %4331 = vrot.lane.b32.xlu0 %v4248, 112
          %v4332 = vpop.permute.xlu0 %4331
          %4333 = vrot.lane.b32.xlu0 %v4249, 112
          %v4334 = vpop.permute.xlu0 %4333
          %4335 = vrot.lane.b32.xlu0 %v4250, 112
          %v4336 = vpop.permute.xlu0 %4335
          %4337 = vrot.lane.b32.xlu0 %v4251, 112
          %v4338 = vpop.permute.xlu0 %4337
          %4339 = vrot.lane.b32.xlu0 %v4252, 112
          %v4340 = vpop.permute.xlu0 %4339
          %4341 = vrot.lane.b32.xlu0 %v4253, 112
          %v4342 = vpop.permute.xlu0 %4341
          %4343 = vrot.lane.b32.xlu0 %v4254, 112
          %v4344 = vpop.permute.xlu0 %4343
          %4345 = vrot.lane.b32.xlu0 %v4255, 112
          %v4346 = vpop.permute.xlu0 %4345
          %4347 = vrot.lane.b32.xlu0 %v4256, 112
          %v4348 = vpop.permute.xlu0 %4347
          %4349 = vrot.lane.b32.xlu0 %v4257, 112
          %v4350 = vpop.permute.xlu0 %4349
          %4351 = vrot.lane.b32.xlu0 %v4258, 112
          %v4352 = vpop.permute.xlu0 %4351
          %4353 = vrot.lane.b32.xlu0 %v4259, 112
          %v4354 = vpop.permute.xlu0 %4353
          %4355 = vrot.lane.b32.xlu0 %v4260, 112
          %v4356 = vpop.permute.xlu0 %4355
          %v4389 = vsel %vm3392, %v4294, 0.0
          %4390 = vadd.xlane.f32.xlu0 %v4389
          %v4391 = vpop.xlane.xlu0 %4390
          %v4392 = vsel %vm3392, %v4296, 0.0
          %4393 = vadd.xlane.f32.xlu0 %v4392
          %v4394 = vpop.xlane.xlu0 %4393
          %v4395 = vsel %vm3392, %v4298, 0.0
          %4396 = vadd.xlane.f32.xlu0 %v4395
          %v4397 = vpop.xlane.xlu0 %4396
          %v4398 = vsel %vm3392, %v4300, 0.0
          %4399 = vadd.xlane.f32.xlu0 %v4398
          %v4400 = vpop.xlane.xlu0 %4399
          %v4401 = vsel %vm3392, %v4302, 0.0
          %4402 = vadd.xlane.f32.xlu0 %v4401
          %v4403 = vpop.xlane.xlu0 %4402
          %v4404 = vsel %vm3392, %v4304, 0.0
          %4405 = vadd.xlane.f32.xlu0 %v4404
          %v4406 = vpop.xlane.xlu0 %4405
          %v4407 = vsel %vm3392, %v4306, 0.0
          %4408 = vadd.xlane.f32.xlu0 %v4407
          %v4409 = vpop.xlane.xlu0 %4408
          %v4410 = vsel %vm3392, %v4308, 0.0
          %4411 = vadd.xlane.f32.xlu0 %v4410
          %v4412 = vpop.xlane.xlu0 %4411
          %v4413 = vsel %vm3392, %v4310, 0.0
          %4414 = vadd.xlane.f32.xlu0 %v4413
          %v4415 = vpop.xlane.xlu0 %4414
          %v4416 = vsel %vm3392, %v4312, 0.0
          %4417 = vadd.xlane.f32.xlu0 %v4416
          %v4418 = vpop.xlane.xlu0 %4417
          %v4419 = vsel %vm3392, %v4314, 0.0
          %4420 = vadd.xlane.f32.xlu0 %v4419
          %v4421 = vpop.xlane.xlu0 %4420
          %v4422 = vsel %vm3392, %v4316, 0.0
          %4423 = vadd.xlane.f32.xlu0 %v4422
          %v4424 = vpop.xlane.xlu0 %4423
          %v4425 = vsel %vm3392, %v4318, 0.0
          %4426 = vadd.xlane.f32.xlu0 %v4425
          %v4427 = vpop.xlane.xlu0 %4426
          %v4428 = vsel %vm3392, %v4320, 0.0
          %4429 = vadd.xlane.f32.xlu0 %v4428
          %v4430 = vpop.xlane.xlu0 %4429
          %v4431 = vsel %vm3392, %v4322, 0.0
          %4432 = vadd.xlane.f32.xlu0 %v4431
          %v4433 = vpop.xlane.xlu0 %4432
          %v4434 = vsel %vm3392, %v4324, 0.0
          %4435 = vadd.xlane.f32.xlu0 %v4434
          %v4436 = vpop.xlane.xlu0 %4435
          %v4437 = vsel %vm3392, %v4326, 0.0
          %4438 = vadd.xlane.f32.xlu0 %v4437
          %v4439 = vpop.xlane.xlu0 %4438
          %v4440 = vsel %vm3392, %v4328, 0.0
          %4441 = vadd.xlane.f32.xlu0 %v4440
          %v4442 = vpop.xlane.xlu0 %4441
          %v4443 = vsel %vm3392, %v4330, 0.0
          %4444 = vadd.xlane.f32.xlu0 %v4443
          %v4445 = vpop.xlane.xlu0 %4444
          %v4446 = vsel %vm3392, %v4332, 0.0
          %4447 = vadd.xlane.f32.xlu0 %v4446
          %v4448 = vpop.xlane.xlu0 %4447
          %v4449 = vsel %vm3392, %v4334, 0.0
          %4450 = vadd.xlane.f32.xlu0 %v4449
          %v4451 = vpop.xlane.xlu0 %4450
          %v4452 = vsel %vm3392, %v4336, 0.0
          %4453 = vadd.xlane.f32.xlu0 %v4452
          %v4454 = vpop.xlane.xlu0 %4453
          %v4455 = vsel %vm3392, %v4338, 0.0
          %4456 = vadd.xlane.f32.xlu0 %v4455
          %v4457 = vpop.xlane.xlu0 %4456
          %v4458 = vsel %vm3392, %v4340, 0.0
          %4459 = vadd.xlane.f32.xlu0 %v4458
          %v4460 = vpop.xlane.xlu0 %4459
          %v4461 = vsel %vm3392, %v4342, 0.0
          %4462 = vadd.xlane.f32.xlu0 %v4461
          %v4463 = vpop.xlane.xlu0 %4462
          %v4464 = vsel %vm3392, %v4344, 0.0
          %4465 = vadd.xlane.f32.xlu0 %v4464
          %v4466 = vpop.xlane.xlu0 %4465
          %v4467 = vsel %vm3392, %v4346, 0.0
          %4468 = vadd.xlane.f32.xlu0 %v4467
          %v4469 = vpop.xlane.xlu0 %4468
          %v4470 = vsel %vm3392, %v4348, 0.0
          %4471 = vadd.xlane.f32.xlu0 %v4470
          %v4472 = vpop.xlane.xlu0 %4471
          %v4473 = vsel %vm3392, %v4350, 0.0
          %4474 = vadd.xlane.f32.xlu0 %v4473
          %v4475 = vpop.xlane.xlu0 %4474
          %v4476 = vsel %vm3392, %v4352, 0.0
          %4477 = vadd.xlane.f32.xlu0 %v4476
          %v4478 = vpop.xlane.xlu0 %4477
          %v4479 = vsel %vm3392, %v4354, 0.0
          %4480 = vadd.xlane.f32.xlu0 %v4479
          %v4481 = vpop.xlane.xlu0 %4480
          %v4482 = vsel %vm3392, %v4356, 0.0
          %4483 = vadd.xlane.f32.xlu0 %v4482
          %v4484 = vpop.xlane.xlu0 %4483
          %v4485 = vadd.f32 %v4391, %v3476
          %v4486 = vadd.f32 %v4394, %v3479
          %v4487 = vadd.f32 %v4397, %v3484
          %v4488 = vadd.f32 %v4400, %v3487
          %v4489 = vadd.f32 %v4403, %v3492
          %v4490 = vadd.f32 %v4406, %v3495
          %v4491 = vadd.f32 %v4409, %v3500
          %v4492 = vadd.f32 %v4412, %v3503
          %v4493 = vadd.f32 %v4415, %v3508
          %v4494 = vadd.f32 %v4418, %v3511
          %v4495 = vadd.f32 %v4421, %v3516
          %v4496 = vadd.f32 %v4424, %v3519
          %v4497 = vadd.f32 %v4427, %v3524
          %v4498 = vadd.f32 %v4430, %v3527
          %v4499 = vadd.f32 %v4433, %v3532
          %v4500 = vadd.f32 %v4436, %v3535
          %v4501 = vadd.f32 %v4439, %v3540
          %v4502 = vadd.f32 %v4442, %v3543
          %v4503 = vadd.f32 %v4445, %v3548
          %v4504 = vadd.f32 %v4448, %v3551
          %v4505 = vadd.f32 %v4451, %v3556
          %v4506 = vadd.f32 %v4454, %v3559
          %v4507 = vadd.f32 %v4457, %v3564
          %v4508 = vadd.f32 %v4460, %v3567
          %v4509 = vadd.f32 %v4463, %v3572
          %v4510 = vadd.f32 %v4466, %v3575
          %v4511 = vadd.f32 %v4469, %v3580
          %v4512 = vadd.f32 %v4472, %v3583
          %v4513 = vadd.f32 %v4475, %v3588
          %v4514 = vadd.f32 %v4478, %v3591
          %v4515 = vadd.f32 %v4481, %v3596
          %v4516 = vadd.f32 %v4484, %v3599
          %v4517 = vadd.f32 %v4485, %v3775
          %v4518 = vadd.f32 %v4486, %v3778
          %v4519 = vadd.f32 %v4487, %v3781
          %v4520 = vadd.f32 %v4488, %v3784
          %v4521 = vadd.f32 %v4489, %v3787
          %v4522 = vadd.f32 %v4490, %v3790
          %v4523 = vadd.f32 %v4491, %v3793
          %v4524 = vadd.f32 %v4492, %v3796
          %v4525 = vadd.f32 %v4493, %v3799
          %v4526 = vadd.f32 %v4494, %v3802
          %v4527 = vadd.f32 %v4495, %v3805
          %v4528 = vadd.f32 %v4496, %v3808
          %v4529 = vadd.f32 %v4497, %v3811
          %v4530 = vadd.f32 %v4498, %v3814
          %v4531 = vadd.f32 %v4499, %v3817
          %v4532 = vadd.f32 %v4500, %v3820
          %v4533 = vadd.f32 %v4501, %v3823
          %v4534 = vadd.f32 %v4502, %v3826
          %v4535 = vadd.f32 %v4503, %v3829
          %v4536 = vadd.f32 %v4504, %v3832
          %v4537 = vadd.f32 %v4505, %v3835
          %v4538 = vadd.f32 %v4506, %v3838
          %v4539 = vadd.f32 %v4507, %v3841
          %v4540 = vadd.f32 %v4508, %v3844
          %v4541 = vadd.f32 %v4509, %v3847
          %v4542 = vadd.f32 %v4510, %v3850
          %v4543 = vadd.f32 %v4511, %v3853
          %v4544 = vadd.f32 %v4512, %v3856
          %v4545 = vadd.f32 %v4513, %v3859
          %v4546 = vadd.f32 %v4514, %v3862
          %v4547 = vadd.f32 %v4515, %v3865
          %v4548 = vadd.f32 %v4516, %v3868
          %v4549 = vadd.f32 %v4517, %v4067
          %v4550 = vadd.f32 %v4518, %v4067
          %v4551 = vadd.f32 %v4519, %v4067
          %v4552 = vadd.f32 %v4520, %v4067
          %v4553 = vadd.f32 %v4521, %v4067
          %v4554 = vadd.f32 %v4522, %v4067
          %v4555 = vadd.f32 %v4523, %v4067
          %v4556 = vadd.f32 %v4524, %v4067
          %v4557 = vadd.f32 %v4525, %v4067
          %v4558 = vadd.f32 %v4526, %v4067
          %v4559 = vadd.f32 %v4527, %v4067
          %v4560 = vadd.f32 %v4528, %v4067
          %v4561 = vadd.f32 %v4529, %v4067
          %v4562 = vadd.f32 %v4530, %v4067
          %v4563 = vadd.f32 %v4531, %v4067
          %v4564 = vadd.f32 %v4532, %v4067
          %v4565 = vadd.f32 %v4533, %v4067
          %v4566 = vadd.f32 %v4534, %v4067
          %v4567 = vadd.f32 %v4535, %v4067
          %v4568 = vadd.f32 %v4536, %v4067
          %v4569 = vadd.f32 %v4537, %v4067
          %v4570 = vadd.f32 %v4538, %v4067
          %v4571 = vadd.f32 %v4539, %v4067
          %v4572 = vadd.f32 %v4540, %v4067
          %v4573 = vadd.f32 %v4541, %v4067
          %v4574 = vadd.f32 %v4542, %v4067
          %v4575 = vadd.f32 %v4543, %v4067
          %v4576 = vadd.f32 %v4544, %v4067
          %v4577 = vadd.f32 %v4545, %v4067
          %v4578 = vadd.f32 %v4546, %v4067
          %v4579 = vadd.f32 %v4547, %v4067
          %v4580 = vadd.f32 %v4548, %v4067
          %vm4581 = vcmp.eq.s32.totalorder %v629, 0
          %vm4582 = vcmp.eq.s32.totalorder %v629, 1
          %4584 = vset.pattern.permute.xlu0 33
          %4585 = vperm.xlu0 %4584, %v4549
          %v4586 = vpop.permute.xlu0 %4585
          %4589 = vset.pattern.permute.xlu0 33
          %4590 = vperm.xlu0 %4589, %v4550
          %v4591 = vpop.permute.xlu0 %4590
          %4594 = vset.pattern.permute.xlu0 33
          %4595 = vperm.xlu0 %4594, %v4551
          %v4596 = vpop.permute.xlu0 %4595
          %4599 = vset.pattern.permute.xlu0 33
          %4600 = vperm.xlu0 %4599, %v4552
          %v4601 = vpop.permute.xlu0 %4600
          %4604 = vset.pattern.permute.xlu0 33
          %4605 = vperm.xlu0 %4604, %v4553
          %v4606 = vpop.permute.xlu0 %4605
          %4609 = vset.pattern.permute.xlu0 33
          %4610 = vperm.xlu0 %4609, %v4554
          %v4611 = vpop.permute.xlu0 %4610
          %4614 = vset.pattern.permute.xlu0 33
          %4615 = vperm.xlu0 %4614, %v4555
          %v4616 = vpop.permute.xlu0 %4615
          %4619 = vset.pattern.permute.xlu0 33
          %4620 = vperm.xlu0 %4619, %v4556
          %v4621 = vpop.permute.xlu0 %4620
          %4624 = vset.pattern.permute.xlu0 33
          %4625 = vperm.xlu0 %4624, %v4557
          %v4626 = vpop.permute.xlu0 %4625
          %4629 = vset.pattern.permute.xlu0 33
          %4630 = vperm.xlu0 %4629, %v4558
          %v4631 = vpop.permute.xlu0 %4630
          %4634 = vset.pattern.permute.xlu0 33
          %4635 = vperm.xlu0 %4634, %v4559
          %v4636 = vpop.permute.xlu0 %4635
          %4639 = vset.pattern.permute.xlu0 33
          %4640 = vperm.xlu0 %4639, %v4560
          %v4641 = vpop.permute.xlu0 %4640
          %4644 = vset.pattern.permute.xlu0 33
          %4645 = vperm.xlu0 %4644, %v4561
          %v4646 = vpop.permute.xlu0 %4645
          %4649 = vset.pattern.permute.xlu0 33
          %4650 = vperm.xlu0 %4649, %v4562
          %v4651 = vpop.permute.xlu0 %4650
          %4654 = vset.pattern.permute.xlu0 33
          %4655 = vperm.xlu0 %4654, %v4563
          %v4656 = vpop.permute.xlu0 %4655
          %4659 = vset.pattern.permute.xlu0 33
          %4660 = vperm.xlu0 %4659, %v4564
          %v4661 = vpop.permute.xlu0 %4660
          %4664 = vset.pattern.permute.xlu0 33
          %4665 = vperm.xlu0 %4664, %v4565
          %v4666 = vpop.permute.xlu0 %4665
          %4669 = vset.pattern.permute.xlu0 33
          %4670 = vperm.xlu0 %4669, %v4566
          %v4671 = vpop.permute.xlu0 %4670
          %4674 = vset.pattern.permute.xlu0 33
          %4675 = vperm.xlu0 %4674, %v4567
          %v4676 = vpop.permute.xlu0 %4675
          %4679 = vset.pattern.permute.xlu0 33
          %4680 = vperm.xlu0 %4679, %v4568
          %v4681 = vpop.permute.xlu0 %4680
          %4684 = vset.pattern.permute.xlu0 33
          %4685 = vperm.xlu0 %4684, %v4569
          %v4686 = vpop.permute.xlu0 %4685
          %4689 = vset.pattern.permute.xlu0 33
          %4690 = vperm.xlu0 %4689, %v4570
          %v4691 = vpop.permute.xlu0 %4690
          %4694 = vset.pattern.permute.xlu0 33
          %4695 = vperm.xlu0 %4694, %v4571
          %v4696 = vpop.permute.xlu0 %4695
          %4699 = vset.pattern.permute.xlu0 33
          %4700 = vperm.xlu0 %4699, %v4572
          %v4701 = vpop.permute.xlu0 %4700
          %4704 = vset.pattern.permute.xlu0 33
          %4705 = vperm.xlu0 %4704, %v4573
          %v4706 = vpop.permute.xlu0 %4705
          %4709 = vset.pattern.permute.xlu0 33
          %4710 = vperm.xlu0 %4709, %v4574
          %v4711 = vpop.permute.xlu0 %4710
          %4714 = vset.pattern.permute.xlu0 33
          %4715 = vperm.xlu0 %4714, %v4575
          %v4716 = vpop.permute.xlu0 %4715
          %4719 = vset.pattern.permute.xlu0 33
          %4720 = vperm.xlu0 %4719, %v4576
          %v4721 = vpop.permute.xlu0 %4720
          %4724 = vset.pattern.permute.xlu0 33
          %4725 = vperm.xlu0 %4724, %v4577
          %v4726 = vpop.permute.xlu0 %4725
          %4729 = vset.pattern.permute.xlu0 33
          %4730 = vperm.xlu0 %4729, %v4578
          %v4731 = vpop.permute.xlu0 %4730
          %4734 = vset.pattern.permute.xlu0 33
          %4735 = vperm.xlu0 %4734, %v4579
          %v4736 = vpop.permute.xlu0 %4735
          %4739 = vset.pattern.permute.xlu0 33
          %4740 = vperm.xlu0 %4739, %v4580
          %v4741 = vpop.permute.xlu0 %4740
          %v4743 = vsel %vm4582, %v4586, 0.0
          %v4744 = vsel %vm4582, %v4591, 0.0
          %v4745 = vsel %vm4582, %v4596, 0.0
          %v4746 = vsel %vm4582, %v4601, 0.0
          %v4747 = vsel %vm4582, %v4606, 0.0
          %v4748 = vsel %vm4582, %v4611, 0.0
          %v4749 = vsel %vm4582, %v4616, 0.0
          %v4750 = vsel %vm4582, %v4621, 0.0
          %v4751 = vsel %vm4582, %v4626, 0.0
          %v4752 = vsel %vm4582, %v4631, 0.0
          %v4753 = vsel %vm4582, %v4636, 0.0
          %v4754 = vsel %vm4582, %v4641, 0.0
          %v4755 = vsel %vm4582, %v4646, 0.0
          %v4756 = vsel %vm4582, %v4651, 0.0
          %v4757 = vsel %vm4582, %v4656, 0.0
          %v4758 = vsel %vm4582, %v4661, 0.0
          %v4759 = vsel %vm4582, %v4666, 0.0
          %v4760 = vsel %vm4582, %v4671, 0.0
          %v4761 = vsel %vm4582, %v4676, 0.0
          %v4762 = vsel %vm4582, %v4681, 0.0
          %v4763 = vsel %vm4582, %v4686, 0.0
          %v4764 = vsel %vm4582, %v4691, 0.0
          %v4765 = vsel %vm4582, %v4696, 0.0
          %v4766 = vsel %vm4582, %v4701, 0.0
          %v4767 = vsel %vm4582, %v4706, 0.0
          %v4768 = vsel %vm4582, %v4711, 0.0
          %v4769 = vsel %vm4582, %v4716, 0.0
          %v4770 = vsel %vm4582, %v4721, 0.0
          %v4771 = vsel %vm4582, %v4726, 0.0
          %v4772 = vsel %vm4582, %v4731, 0.0
          %v4773 = vsel %vm4582, %v4736, 0.0
          %v4774 = vsel %vm4582, %v4741, 0.0
          %4776 = vset.pattern.permute.xlu0 32
          %4777 = vperm.xlu0 %4776, %v4069
          %v4778 = vpop.permute.xlu0 %4777
          %4781 = vset.pattern.permute.xlu0 32
          %4782 = vperm.xlu0 %4781, %v4070
          %v4783 = vpop.permute.xlu0 %4782
          %4786 = vset.pattern.permute.xlu0 32
          %4787 = vperm.xlu0 %4786, %v4071
          %v4788 = vpop.permute.xlu0 %4787
          %4791 = vset.pattern.permute.xlu0 32
          %4792 = vperm.xlu0 %4791, %v4072
          %v4793 = vpop.permute.xlu0 %4792
          %4796 = vset.pattern.permute.xlu0 32
          %4797 = vperm.xlu0 %4796, %v4073
          %v4798 = vpop.permute.xlu0 %4797
          %4801 = vset.pattern.permute.xlu0 32
          %4802 = vperm.xlu0 %4801, %v4074
          %v4803 = vpop.permute.xlu0 %4802
          %4806 = vset.pattern.permute.xlu0 32
          %4807 = vperm.xlu0 %4806, %v4075
          %v4808 = vpop.permute.xlu0 %4807
          %4811 = vset.pattern.permute.xlu0 32
          %4812 = vperm.xlu0 %4811, %v4076
          %v4813 = vpop.permute.xlu0 %4812
          %4816 = vset.pattern.permute.xlu0 32
          %4817 = vperm.xlu0 %4816, %v4077
          %v4818 = vpop.permute.xlu0 %4817
          %4821 = vset.pattern.permute.xlu0 32
          %4822 = vperm.xlu0 %4821, %v4078
          %v4823 = vpop.permute.xlu0 %4822
          %4826 = vset.pattern.permute.xlu0 32
          %4827 = vperm.xlu0 %4826, %v4079
          %v4828 = vpop.permute.xlu0 %4827
          %4831 = vset.pattern.permute.xlu0 32
          %4832 = vperm.xlu0 %4831, %v4080
          %v4833 = vpop.permute.xlu0 %4832
          %4836 = vset.pattern.permute.xlu0 32
          %4837 = vperm.xlu0 %4836, %v4081
          %v4838 = vpop.permute.xlu0 %4837
          %4841 = vset.pattern.permute.xlu0 32
          %4842 = vperm.xlu0 %4841, %v4082
          %v4843 = vpop.permute.xlu0 %4842
          %4846 = vset.pattern.permute.xlu0 32
          %4847 = vperm.xlu0 %4846, %v4083
          %v4848 = vpop.permute.xlu0 %4847
          %4851 = vset.pattern.permute.xlu0 32
          %4852 = vperm.xlu0 %4851, %v4084
          %v4853 = vpop.permute.xlu0 %4852
          %4856 = vset.pattern.permute.xlu0 32
          %4857 = vperm.xlu0 %4856, %v4085
          %v4858 = vpop.permute.xlu0 %4857
          %4861 = vset.pattern.permute.xlu0 32
          %4862 = vperm.xlu0 %4861, %v4086
          %v4863 = vpop.permute.xlu0 %4862
          %4866 = vset.pattern.permute.xlu0 32
          %4867 = vperm.xlu0 %4866, %v4087
          %v4868 = vpop.permute.xlu0 %4867
          %4871 = vset.pattern.permute.xlu0 32
          %4872 = vperm.xlu0 %4871, %v4088
          %v4873 = vpop.permute.xlu0 %4872
          %4876 = vset.pattern.permute.xlu0 32
          %4877 = vperm.xlu0 %4876, %v4089
          %v4878 = vpop.permute.xlu0 %4877
          %4881 = vset.pattern.permute.xlu0 32
          %4882 = vperm.xlu0 %4881, %v4090
          %v4883 = vpop.permute.xlu0 %4882
          %4886 = vset.pattern.permute.xlu0 32
          %4887 = vperm.xlu0 %4886, %v4091
          %v4888 = vpop.permute.xlu0 %4887
          %4891 = vset.pattern.permute.xlu0 32
          %4892 = vperm.xlu0 %4891, %v4092
          %v4893 = vpop.permute.xlu0 %4892
          %4896 = vset.pattern.permute.xlu0 32
          %4897 = vperm.xlu0 %4896, %v4093
          %v4898 = vpop.permute.xlu0 %4897
          %4901 = vset.pattern.permute.xlu0 32
          %4902 = vperm.xlu0 %4901, %v4094
          %v4903 = vpop.permute.xlu0 %4902
          %4906 = vset.pattern.permute.xlu0 32
          %4907 = vperm.xlu0 %4906, %v4095
          %v4908 = vpop.permute.xlu0 %4907
          %4911 = vset.pattern.permute.xlu0 32
          %4912 = vperm.xlu0 %4911, %v4096
          %v4913 = vpop.permute.xlu0 %4912
          %4916 = vset.pattern.permute.xlu0 32
          %4917 = vperm.xlu0 %4916, %v4097
          %v4918 = vpop.permute.xlu0 %4917
          %4921 = vset.pattern.permute.xlu0 32
          %4922 = vperm.xlu0 %4921, %v4098
          %v4923 = vpop.permute.xlu0 %4922
          %4926 = vset.pattern.permute.xlu0 32
          %4927 = vperm.xlu0 %4926, %v4099
          %v4928 = vpop.permute.xlu0 %4927
          %4931 = vset.pattern.permute.xlu0 32
          %4932 = vperm.xlu0 %4931, %v4100
          %v4933 = vpop.permute.xlu0 %4932
          %v4935 = vsel %vm4581, %v4778, %v4743
          %v4936 = vsel %vm4581, %v4783, %v4744
          %v4937 = vsel %vm4581, %v4788, %v4745
          %v4938 = vsel %vm4581, %v4793, %v4746
          %v4939 = vsel %vm4581, %v4798, %v4747
          %v4940 = vsel %vm4581, %v4803, %v4748
          %v4941 = vsel %vm4581, %v4808, %v4749
          %v4942 = vsel %vm4581, %v4813, %v4750
          %v4943 = vsel %vm4581, %v4818, %v4751
          %v4944 = vsel %vm4581, %v4823, %v4752
          %v4945 = vsel %vm4581, %v4828, %v4753
          %v4946 = vsel %vm4581, %v4833, %v4754
          %v4947 = vsel %vm4581, %v4838, %v4755
          %v4948 = vsel %vm4581, %v4843, %v4756
          %v4949 = vsel %vm4581, %v4848, %v4757
          %v4950 = vsel %vm4581, %v4853, %v4758
          %v4951 = vsel %vm4581, %v4858, %v4759
          %v4952 = vsel %vm4581, %v4863, %v4760
          %v4953 = vsel %vm4581, %v4868, %v4761
          %v4954 = vsel %vm4581, %v4873, %v4762
          %v4955 = vsel %vm4581, %v4878, %v4763
          %v4956 = vsel %vm4581, %v4883, %v4764
          %v4957 = vsel %vm4581, %v4888, %v4765
          %v4958 = vsel %vm4581, %v4893, %v4766
          %v4959 = vsel %vm4581, %v4898, %v4767
          %v4960 = vsel %vm4581, %v4903, %v4768
          %v4961 = vsel %vm4581, %v4908, %v4769
          %v4962 = vsel %vm4581, %v4913, %v4770
          %v4963 = vsel %vm4581, %v4918, %v4771
          %v4964 = vsel %vm4581, %v4923, %v4772
          %v4965 = vsel %vm4581, %v4928, %v4773
          %v4966 = vsel %vm4581, %v4933, %v4774
          %4967 = vst [vmem:[%s565] sm:$0xff] %v4935
          %4968 = vst [vmem:[%s565 + $0x8] sm:$0xff] %v4936
          %4969 = vst [vmem:[%s565 + $0x10] sm:$0xff] %v4937
          %4970 = vst [vmem:[%s565 + $0x18] sm:$0xff] %v4938
          %4971 = vst [vmem:[%s565 + $0x20] sm:$0xff] %v4939
          %4972 = vst [vmem:[%s565 + $0x28] sm:$0xff] %v4940
          %4973 = vst [vmem:[%s565 + $0x30] sm:$0xff] %v4941
          %4974 = vst [vmem:[%s565 + $0x38] sm:$0xff] %v4942
          %4975 = vst [vmem:[%s565 + $0x40] sm:$0xff] %v4943
          %4976 = vst [vmem:[%s565 + $0x48] sm:$0xff] %v4944
          %4977 = vst [vmem:[%s565 + $0x50] sm:$0xff] %v4945
          %4978 = vst [vmem:[%s565 + $0x58] sm:$0xff] %v4946
          %4979 = vst [vmem:[%s565 + $0x60] sm:$0xff] %v4947
          %4980 = vst [vmem:[%s565 + $0x68] sm:$0xff] %v4948
          %4981 = vst [vmem:[%s565 + $0x70] sm:$0xff] %v4949
          %4982 = vst [vmem:[%s565 + $0x78] sm:$0xff] %v4950
          %4983 = vst [vmem:[%s565 + $0x80] sm:$0xff] %v4951
          %4984 = vst [vmem:[%s565 + $0x88] sm:$0xff] %v4952
          %4985 = vst [vmem:[%s565 + $0x90] sm:$0xff] %v4953
          %4986 = vst [vmem:[%s565 + $0x98] sm:$0xff] %v4954
          %4987 = vst [vmem:[%s565 + $0xa0] sm:$0xff] %v4955
          %4988 = vst [vmem:[%s565 + $0xa8] sm:$0xff] %v4956
          %4989 = vst [vmem:[%s565 + $0xb0] sm:$0xff] %v4957
          %4990 = vst [vmem:[%s565 + $0xb8] sm:$0xff] %v4958
          %4991 = vst [vmem:[%s565 + $0xc0] sm:$0xff] %v4959
          %4992 = vst [vmem:[%s565 + $0xc8] sm:$0xff] %v4960
          %4993 = vst [vmem:[%s565 + $0xd0] sm:$0xff] %v4961
          %4994 = vst [vmem:[%s565 + $0xd8] sm:$0xff] %v4962
          %4995 = vst [vmem:[%s565 + $0xe0] sm:$0xff] %v4963
          %4996 = vst [vmem:[%s565 + $0xe8] sm:$0xff] %v4964
          %4997 = vst [vmem:[%s565 + $0xf0] sm:$0xff] %v4965
          %4998 = vst [vmem:[%s565 + $0xf8] sm:$0xff] %v4966
          %4999 = vrot.lane.b32.xlu0 %v4549, 127
          %v5000 = vpop.permute.xlu0 %4999
          %5001 = vrot.lane.b32.xlu0 %v4550, 127
          %v5002 = vpop.permute.xlu0 %5001
          %5003 = vrot.lane.b32.xlu0 %v4551, 127
          %v5004 = vpop.permute.xlu0 %5003
          %5005 = vrot.lane.b32.xlu0 %v4552, 127
          %v5006 = vpop.permute.xlu0 %5005
          %5007 = vrot.lane.b32.xlu0 %v4553, 127
          %v5008 = vpop.permute.xlu0 %5007
          %5009 = vrot.lane.b32.xlu0 %v4554, 127
          %v5010 = vpop.permute.xlu0 %5009
          %5011 = vrot.lane.b32.xlu0 %v4555, 127
          %v5012 = vpop.permute.xlu0 %5011
          %5013 = vrot.lane.b32.xlu0 %v4556, 127
          %v5014 = vpop.permute.xlu0 %5013
          %5015 = vrot.lane.b32.xlu0 %v4557, 127
          %v5016 = vpop.permute.xlu0 %5015
          %5017 = vrot.lane.b32.xlu0 %v4558, 127
          %v5018 = vpop.permute.xlu0 %5017
          %5019 = vrot.lane.b32.xlu0 %v4559, 127
          %v5020 = vpop.permute.xlu0 %5019
          %5021 = vrot.lane.b32.xlu0 %v4560, 127
          %v5022 = vpop.permute.xlu0 %5021
          %5023 = vrot.lane.b32.xlu0 %v4561, 127
          %v5024 = vpop.permute.xlu0 %5023
          %5025 = vrot.lane.b32.xlu0 %v4562, 127
          %v5026 = vpop.permute.xlu0 %5025
          %5027 = vrot.lane.b32.xlu0 %v4563, 127
          %v5028 = vpop.permute.xlu0 %5027
          %5029 = vrot.lane.b32.xlu0 %v4564, 127
          %v5030 = vpop.permute.xlu0 %5029
          %5031 = vrot.lane.b32.xlu0 %v4565, 127
          %v5032 = vpop.permute.xlu0 %5031
          %5033 = vrot.lane.b32.xlu0 %v4566, 127
          %v5034 = vpop.permute.xlu0 %5033
          %5035 = vrot.lane.b32.xlu0 %v4567, 127
          %v5036 = vpop.permute.xlu0 %5035
          %5037 = vrot.lane.b32.xlu0 %v4568, 127
          %v5038 = vpop.permute.xlu0 %5037
          %5039 = vrot.lane.b32.xlu0 %v4569, 127
          %v5040 = vpop.permute.xlu0 %5039
          %5041 = vrot.lane.b32.xlu0 %v4570, 127
          %v5042 = vpop.permute.xlu0 %5041
          %5043 = vrot.lane.b32.xlu0 %v4571, 127
          %v5044 = vpop.permute.xlu0 %5043
          %5045 = vrot.lane.b32.xlu0 %v4572, 127
          %v5046 = vpop.permute.xlu0 %5045
          %5047 = vrot.lane.b32.xlu0 %v4573, 127
          %v5048 = vpop.permute.xlu0 %5047
          %5049 = vrot.lane.b32.xlu0 %v4574, 127
          %v5050 = vpop.permute.xlu0 %5049
          %5051 = vrot.lane.b32.xlu0 %v4575, 127
          %v5052 = vpop.permute.xlu0 %5051
          %5053 = vrot.lane.b32.xlu0 %v4576, 127
          %v5054 = vpop.permute.xlu0 %5053
          %5055 = vrot.lane.b32.xlu0 %v4577, 127
          %v5056 = vpop.permute.xlu0 %5055
          %5057 = vrot.lane.b32.xlu0 %v4578, 127
          %v5058 = vpop.permute.xlu0 %5057
          %5059 = vrot.lane.b32.xlu0 %v4579, 127
          %v5060 = vpop.permute.xlu0 %5059
          %5061 = vrot.lane.b32.xlu0 %v4580, 127
          %v5062 = vpop.permute.xlu0 %5061
          %v5095 = vmax.f32 %v4069, %v5000
          %v5096 = vmax.f32 %v4070, %v5002
          %v5097 = vmax.f32 %v4071, %v5004
          %v5098 = vmax.f32 %v4072, %v5006
          %v5099 = vmax.f32 %v4073, %v5008
          %v5100 = vmax.f32 %v4074, %v5010
          %v5101 = vmax.f32 %v4075, %v5012
          %v5102 = vmax.f32 %v4076, %v5014
          %v5103 = vmax.f32 %v4077, %v5016
          %v5104 = vmax.f32 %v4078, %v5018
          %v5105 = vmax.f32 %v4079, %v5020
          %v5106 = vmax.f32 %v4080, %v5022
          %v5107 = vmax.f32 %v4081, %v5024
          %v5108 = vmax.f32 %v4082, %v5026
          %v5109 = vmax.f32 %v4083, %v5028
          %v5110 = vmax.f32 %v4084, %v5030
          %v5111 = vmax.f32 %v4085, %v5032
          %v5112 = vmax.f32 %v4086, %v5034
          %v5113 = vmax.f32 %v4087, %v5036
          %v5114 = vmax.f32 %v4088, %v5038
          %v5115 = vmax.f32 %v4089, %v5040
          %v5116 = vmax.f32 %v4090, %v5042
          %v5117 = vmax.f32 %v4091, %v5044
          %v5118 = vmax.f32 %v4092, %v5046
          %v5119 = vmax.f32 %v4093, %v5048
          %v5120 = vmax.f32 %v4094, %v5050
          %v5121 = vmax.f32 %v4095, %v5052
          %v5122 = vmax.f32 %v4096, %v5054
          %v5123 = vmax.f32 %v4097, %v5056
          %v5124 = vmax.f32 %v4098, %v5058
          %v5125 = vmax.f32 %v4099, %v5060
          %v5126 = vmax.f32 %v4100, %v5062
          %v5127 = vsub.f32 %v4069, %v5095
          %v5128 = vsub.f32 %v4070, %v5096
          %v5129 = vsub.f32 %v4071, %v5097
          %v5130 = vsub.f32 %v4072, %v5098
          %v5131 = vsub.f32 %v4073, %v5099
          %v5132 = vsub.f32 %v4074, %v5100
          %v5133 = vsub.f32 %v4075, %v5101
          %v5134 = vsub.f32 %v4076, %v5102
          %v5135 = vsub.f32 %v4077, %v5103
          %v5136 = vsub.f32 %v4078, %v5104
          %v5137 = vsub.f32 %v4079, %v5105
          %v5138 = vsub.f32 %v4080, %v5106
          %v5139 = vsub.f32 %v4081, %v5107
          %v5140 = vsub.f32 %v4082, %v5108
          %v5141 = vsub.f32 %v4083, %v5109
          %v5142 = vsub.f32 %v4084, %v5110
          %v5143 = vsub.f32 %v4085, %v5111
          %v5144 = vsub.f32 %v4086, %v5112
          %v5145 = vsub.f32 %v4087, %v5113
          %v5146 = vsub.f32 %v4088, %v5114
          %v5147 = vsub.f32 %v4089, %v5115
          %v5148 = vsub.f32 %v4090, %v5116
          %v5149 = vsub.f32 %v4091, %v5117
          %v5150 = vsub.f32 %v4092, %v5118
          %v5151 = vsub.f32 %v4093, %v5119
          %v5152 = vsub.f32 %v4094, %v5120
          %v5153 = vsub.f32 %v4095, %v5121
          %v5154 = vsub.f32 %v4096, %v5122
          %v5155 = vsub.f32 %v4097, %v5123
          %v5156 = vsub.f32 %v4098, %v5124
          %v5157 = vsub.f32 %v4099, %v5125
          %v5158 = vsub.f32 %v4100, %v5126
          %v5159 = vmul.f32 %v5127, 1.442695
          %v5160 = vpow.pop %v5159
          %v5161 = vmul.f32 %v5128, 1.442695
          %v5162 = vpow.pop %v5161
          %v5163 = vmul.f32 %v5129, 1.442695
          %v5164 = vpow.pop %v5163
          %v5165 = vmul.f32 %v5130, 1.442695
          %v5166 = vpow.pop %v5165
          %v5167 = vmul.f32 %v5131, 1.442695
          %v5168 = vpow.pop %v5167
          %v5169 = vmul.f32 %v5132, 1.442695
          %v5170 = vpow.pop %v5169
          %v5171 = vmul.f32 %v5133, 1.442695
          %v5172 = vpow.pop %v5171
          %v5173 = vmul.f32 %v5134, 1.442695
          %v5174 = vpow.pop %v5173
          %v5175 = vmul.f32 %v5135, 1.442695
          %v5176 = vpow.pop %v5175
          %v5177 = vmul.f32 %v5136, 1.442695
          %v5178 = vpow.pop %v5177
          %v5179 = vmul.f32 %v5137, 1.442695
          %v5180 = vpow.pop %v5179
          %v5181 = vmul.f32 %v5138, 1.442695
          %v5182 = vpow.pop %v5181
          %v5183 = vmul.f32 %v5139, 1.442695
          %v5184 = vpow.pop %v5183
          %v5185 = vmul.f32 %v5140, 1.442695
          %v5186 = vpow.pop %v5185
          %v5187 = vmul.f32 %v5141, 1.442695
          %v5188 = vpow.pop %v5187
          %v5189 = vmul.f32 %v5142, 1.442695
          %v5190 = vpow.pop %v5189
          %v5191 = vmul.f32 %v5143, 1.442695
          %v5192 = vpow.pop %v5191
          %v5193 = vmul.f32 %v5144, 1.442695
          %v5194 = vpow.pop %v5193
          %v5195 = vmul.f32 %v5145, 1.442695
          %v5196 = vpow.pop %v5195
          %v5197 = vmul.f32 %v5146, 1.442695
          %v5198 = vpow.pop %v5197
          %v5199 = vmul.f32 %v5147, 1.442695
          %v5200 = vpow.pop %v5199
          %v5201 = vmul.f32 %v5148, 1.442695
          %v5202 = vpow.pop %v5201
          %v5203 = vmul.f32 %v5149, 1.442695
          %v5204 = vpow.pop %v5203
          %v5205 = vmul.f32 %v5150, 1.442695
          %v5206 = vpow.pop %v5205
          %v5207 = vmul.f32 %v5151, 1.442695
          %v5208 = vpow.pop %v5207
          %v5209 = vmul.f32 %v5152, 1.442695
          %v5210 = vpow.pop %v5209
          %v5211 = vmul.f32 %v5153, 1.442695
          %v5212 = vpow.pop %v5211
          %v5213 = vmul.f32 %v5154, 1.442695
          %v5214 = vpow.pop %v5213
          %v5215 = vmul.f32 %v5155, 1.442695
          %v5216 = vpow.pop %v5215
          %v5217 = vmul.f32 %v5156, 1.442695
          %v5218 = vpow.pop %v5217
          %v5219 = vmul.f32 %v5157, 1.442695
          %v5220 = vpow.pop %v5219
          %v5221 = vmul.f32 %v5158, 1.442695
          %v5222 = vpow.pop %v5221
          %5255 = vrot.lane.b32.xlu0 %v5095, 1
          %v5256 = vpop.permute.xlu0 %5255
          %5257 = vrot.lane.b32.xlu0 %v5096, 1
          %v5258 = vpop.permute.xlu0 %5257
          %5259 = vrot.lane.b32.xlu0 %v5097, 1
          %v5260 = vpop.permute.xlu0 %5259
          %5261 = vrot.lane.b32.xlu0 %v5098, 1
          %v5262 = vpop.permute.xlu0 %5261
          %5263 = vrot.lane.b32.xlu0 %v5099, 1
          %v5264 = vpop.permute.xlu0 %5263
          %5265 = vrot.lane.b32.xlu0 %v5100, 1
          %v5266 = vpop.permute.xlu0 %5265
          %5267 = vrot.lane.b32.xlu0 %v5101, 1
          %v5268 = vpop.permute.xlu0 %5267
          %5269 = vrot.lane.b32.xlu0 %v5102, 1
          %v5270 = vpop.permute.xlu0 %5269
          %5271 = vrot.lane.b32.xlu0 %v5103, 1
          %v5272 = vpop.permute.xlu0 %5271
          %5273 = vrot.lane.b32.xlu0 %v5104, 1
          %v5274 = vpop.permute.xlu0 %5273
          %5275 = vrot.lane.b32.xlu0 %v5105, 1
          %v5276 = vpop.permute.xlu0 %5275
          %5277 = vrot.lane.b32.xlu0 %v5106, 1
          %v5278 = vpop.permute.xlu0 %5277
          %5279 = vrot.lane.b32.xlu0 %v5107, 1
          %v5280 = vpop.permute.xlu0 %5279
          %5281 = vrot.lane.b32.xlu0 %v5108, 1
          %v5282 = vpop.permute.xlu0 %5281
          %5283 = vrot.lane.b32.xlu0 %v5109, 1
          %v5284 = vpop.permute.xlu0 %5283
          %5285 = vrot.lane.b32.xlu0 %v5110, 1
          %v5286 = vpop.permute.xlu0 %5285
          %5287 = vrot.lane.b32.xlu0 %v5111, 1
          %v5288 = vpop.permute.xlu0 %5287
          %5289 = vrot.lane.b32.xlu0 %v5112, 1
          %v5290 = vpop.permute.xlu0 %5289
          %5291 = vrot.lane.b32.xlu0 %v5113, 1
          %v5292 = vpop.permute.xlu0 %5291
          %5293 = vrot.lane.b32.xlu0 %v5114, 1
          %v5294 = vpop.permute.xlu0 %5293
          %5295 = vrot.lane.b32.xlu0 %v5115, 1
          %v5296 = vpop.permute.xlu0 %5295
          %5297 = vrot.lane.b32.xlu0 %v5116, 1
          %v5298 = vpop.permute.xlu0 %5297
          %5299 = vrot.lane.b32.xlu0 %v5117, 1
          %v5300 = vpop.permute.xlu0 %5299
          %5301 = vrot.lane.b32.xlu0 %v5118, 1
          %v5302 = vpop.permute.xlu0 %5301
          %5303 = vrot.lane.b32.xlu0 %v5119, 1
          %v5304 = vpop.permute.xlu0 %5303
          %5305 = vrot.lane.b32.xlu0 %v5120, 1
          %v5306 = vpop.permute.xlu0 %5305
          %5307 = vrot.lane.b32.xlu0 %v5121, 1
          %v5308 = vpop.permute.xlu0 %5307
          %5309 = vrot.lane.b32.xlu0 %v5122, 1
          %v5310 = vpop.permute.xlu0 %5309
          %5311 = vrot.lane.b32.xlu0 %v5123, 1
          %v5312 = vpop.permute.xlu0 %5311
          %5313 = vrot.lane.b32.xlu0 %v5124, 1
          %v5314 = vpop.permute.xlu0 %5313
          %5315 = vrot.lane.b32.xlu0 %v5125, 1
          %v5316 = vpop.permute.xlu0 %5315
          %5317 = vrot.lane.b32.xlu0 %v5126, 1
          %v5318 = vpop.permute.xlu0 %5317
          %v5351 = vsub.f32 %v4549, %v5256
          %v5352 = vsub.f32 %v4550, %v5258
          %v5353 = vsub.f32 %v4551, %v5260
          %v5354 = vsub.f32 %v4552, %v5262
          %v5355 = vsub.f32 %v4553, %v5264
          %v5356 = vsub.f32 %v4554, %v5266
          %v5357 = vsub.f32 %v4555, %v5268
          %v5358 = vsub.f32 %v4556, %v5270
          %v5359 = vsub.f32 %v4557, %v5272
          %v5360 = vsub.f32 %v4558, %v5274
          %v5361 = vsub.f32 %v4559, %v5276
          %v5362 = vsub.f32 %v4560, %v5278
          %v5363 = vsub.f32 %v4561, %v5280
          %v5364 = vsub.f32 %v4562, %v5282
          %v5365 = vsub.f32 %v4563, %v5284
          %v5366 = vsub.f32 %v4564, %v5286
          %v5367 = vsub.f32 %v4565, %v5288
          %v5368 = vsub.f32 %v4566, %v5290
          %v5369 = vsub.f32 %v4567, %v5292
          %v5370 = vsub.f32 %v4568, %v5294
          %v5371 = vsub.f32 %v4569, %v5296
          %v5372 = vsub.f32 %v4570, %v5298
          %v5373 = vsub.f32 %v4571, %v5300
          %v5374 = vsub.f32 %v4572, %v5302
          %v5375 = vsub.f32 %v4573, %v5304
          %v5376 = vsub.f32 %v4574, %v5306
          %v5377 = vsub.f32 %v4575, %v5308
          %v5378 = vsub.f32 %v4576, %v5310
          %v5379 = vsub.f32 %v4577, %v5312
          %v5380 = vsub.f32 %v4578, %v5314
          %v5381 = vsub.f32 %v4579, %v5316
          %v5382 = vsub.f32 %v4580, %v5318
          %v5383 = vmul.f32 %v5351, 1.442695
          %v5384 = vpow.pop %v5383
          %v5385 = vmul.f32 %v5352, 1.442695
          %v5386 = vpow.pop %v5385
          %v5387 = vmul.f32 %v5353, 1.442695
          %v5388 = vpow.pop %v5387
          %v5389 = vmul.f32 %v5354, 1.442695
          %v5390 = vpow.pop %v5389
          %v5391 = vmul.f32 %v5355, 1.442695
          %v5392 = vpow.pop %v5391
          %v5393 = vmul.f32 %v5356, 1.442695
          %v5394 = vpow.pop %v5393
          %v5395 = vmul.f32 %v5357, 1.442695
          %v5396 = vpow.pop %v5395
          %v5397 = vmul.f32 %v5358, 1.442695
          %v5398 = vpow.pop %v5397
          %v5399 = vmul.f32 %v5359, 1.442695
          %v5400 = vpow.pop %v5399
          %v5401 = vmul.f32 %v5360, 1.442695
          %v5402 = vpow.pop %v5401
          %v5403 = vmul.f32 %v5361, 1.442695
          %v5404 = vpow.pop %v5403
          %v5405 = vmul.f32 %v5362, 1.442695
          %v5406 = vpow.pop %v5405
          %v5407 = vmul.f32 %v5363, 1.442695
          %v5408 = vpow.pop %v5407
          %v5409 = vmul.f32 %v5364, 1.442695
          %v5410 = vpow.pop %v5409
          %v5411 = vmul.f32 %v5365, 1.442695
          %v5412 = vpow.pop %v5411
          %v5413 = vmul.f32 %v5366, 1.442695
          %v5414 = vpow.pop %v5413
          %v5415 = vmul.f32 %v5367, 1.442695
          %v5416 = vpow.pop %v5415
          %v5417 = vmul.f32 %v5368, 1.442695
          %v5418 = vpow.pop %v5417
          %v5419 = vmul.f32 %v5369, 1.442695
          %v5420 = vpow.pop %v5419
          %v5421 = vmul.f32 %v5370, 1.442695
          %v5422 = vpow.pop %v5421
          %v5423 = vmul.f32 %v5371, 1.442695
          %v5424 = vpow.pop %v5423
          %v5425 = vmul.f32 %v5372, 1.442695
          %v5426 = vpow.pop %v5425
          %v5427 = vmul.f32 %v5373, 1.442695
          %v5428 = vpow.pop %v5427
          %v5429 = vmul.f32 %v5374, 1.442695
          %v5430 = vpow.pop %v5429
          %v5431 = vmul.f32 %v5375, 1.442695
          %v5432 = vpow.pop %v5431
          %v5433 = vmul.f32 %v5376, 1.442695
          %v5434 = vpow.pop %v5433
          %v5435 = vmul.f32 %v5377, 1.442695
          %v5436 = vpow.pop %v5435
          %v5437 = vmul.f32 %v5378, 1.442695
          %v5438 = vpow.pop %v5437
          %v5439 = vmul.f32 %v5379, 1.442695
          %v5440 = vpow.pop %v5439
          %v5441 = vmul.f32 %v5380, 1.442695
          %v5442 = vpow.pop %v5441
          %v5443 = vmul.f32 %v5381, 1.442695
          %v5444 = vpow.pop %v5443
          %v5445 = vmul.f32 %v5382, 1.442695
          %v5446 = vpow.pop %v5445
          %5479 = vrot.lane.b32.xlu0 %v5384, 127
          %v5480 = vpop.permute.xlu0 %5479
          %5481 = vrot.lane.b32.xlu0 %v5386, 127
          %v5482 = vpop.permute.xlu0 %5481
          %5483 = vrot.lane.b32.xlu0 %v5388, 127
          %v5484 = vpop.permute.xlu0 %5483
          %5485 = vrot.lane.b32.xlu0 %v5390, 127
          %v5486 = vpop.permute.xlu0 %5485
          %5487 = vrot.lane.b32.xlu0 %v5392, 127
          %v5488 = vpop.permute.xlu0 %5487
          %5489 = vrot.lane.b32.xlu0 %v5394, 127
          %v5490 = vpop.permute.xlu0 %5489
          %5491 = vrot.lane.b32.xlu0 %v5396, 127
          %v5492 = vpop.permute.xlu0 %5491
          %5493 = vrot.lane.b32.xlu0 %v5398, 127
          %v5494 = vpop.permute.xlu0 %5493
          %5495 = vrot.lane.b32.xlu0 %v5400, 127
          %v5496 = vpop.permute.xlu0 %5495
          %5497 = vrot.lane.b32.xlu0 %v5402, 127
          %v5498 = vpop.permute.xlu0 %5497
          %5499 = vrot.lane.b32.xlu0 %v5404, 127
          %v5500 = vpop.permute.xlu0 %5499
          %5501 = vrot.lane.b32.xlu0 %v5406, 127
          %v5502 = vpop.permute.xlu0 %5501
          %5503 = vrot.lane.b32.xlu0 %v5408, 127
          %v5504 = vpop.permute.xlu0 %5503
          %5505 = vrot.lane.b32.xlu0 %v5410, 127
          %v5506 = vpop.permute.xlu0 %5505
          %5507 = vrot.lane.b32.xlu0 %v5412, 127
          %v5508 = vpop.permute.xlu0 %5507
          %5509 = vrot.lane.b32.xlu0 %v5414, 127
          %v5510 = vpop.permute.xlu0 %5509
          %5511 = vrot.lane.b32.xlu0 %v5416, 127
          %v5512 = vpop.permute.xlu0 %5511
          %5513 = vrot.lane.b32.xlu0 %v5418, 127
          %v5514 = vpop.permute.xlu0 %5513
          %5515 = vrot.lane.b32.xlu0 %v5420, 127
          %v5516 = vpop.permute.xlu0 %5515
          %5517 = vrot.lane.b32.xlu0 %v5422, 127
          %v5518 = vpop.permute.xlu0 %5517
          %5519 = vrot.lane.b32.xlu0 %v5424, 127
          %v5520 = vpop.permute.xlu0 %5519
          %5521 = vrot.lane.b32.xlu0 %v5426, 127
          %v5522 = vpop.permute.xlu0 %5521
          %5523 = vrot.lane.b32.xlu0 %v5428, 127
          %v5524 = vpop.permute.xlu0 %5523
          %5525 = vrot.lane.b32.xlu0 %v5430, 127
          %v5526 = vpop.permute.xlu0 %5525
          %5527 = vrot.lane.b32.xlu0 %v5432, 127
          %v5528 = vpop.permute.xlu0 %5527
          %5529 = vrot.lane.b32.xlu0 %v5434, 127
          %v5530 = vpop.permute.xlu0 %5529
          %5531 = vrot.lane.b32.xlu0 %v5436, 127
          %v5532 = vpop.permute.xlu0 %5531
          %5533 = vrot.lane.b32.xlu0 %v5438, 127
          %v5534 = vpop.permute.xlu0 %5533
          %5535 = vrot.lane.b32.xlu0 %v5440, 127
          %v5536 = vpop.permute.xlu0 %5535
          %5537 = vrot.lane.b32.xlu0 %v5442, 127
          %v5538 = vpop.permute.xlu0 %5537
          %5539 = vrot.lane.b32.xlu0 %v5444, 127
          %v5540 = vpop.permute.xlu0 %5539
          %5541 = vrot.lane.b32.xlu0 %v5446, 127
          %v5542 = vpop.permute.xlu0 %5541
          %v5575 = vadd.f32 %v5160, %v5480
          %v5576 = vadd.f32 %v5162, %v5482
          %v5577 = vadd.f32 %v5164, %v5484
          %v5578 = vadd.f32 %v5166, %v5486
          %v5579 = vadd.f32 %v5168, %v5488
          %v5580 = vadd.f32 %v5170, %v5490
          %v5581 = vadd.f32 %v5172, %v5492
          %v5582 = vadd.f32 %v5174, %v5494
          %v5583 = vadd.f32 %v5176, %v5496
          %v5584 = vadd.f32 %v5178, %v5498
          %v5585 = vadd.f32 %v5180, %v5500
          %v5586 = vadd.f32 %v5182, %v5502
          %v5587 = vadd.f32 %v5184, %v5504
          %v5588 = vadd.f32 %v5186, %v5506
          %v5589 = vadd.f32 %v5188, %v5508
          %v5590 = vadd.f32 %v5190, %v5510
          %v5591 = vadd.f32 %v5192, %v5512
          %v5592 = vadd.f32 %v5194, %v5514
          %v5593 = vadd.f32 %v5196, %v5516
          %v5594 = vadd.f32 %v5198, %v5518
          %v5595 = vadd.f32 %v5200, %v5520
          %v5596 = vadd.f32 %v5202, %v5522
          %v5597 = vadd.f32 %v5204, %v5524
          %v5598 = vadd.f32 %v5206, %v5526
          %v5599 = vadd.f32 %v5208, %v5528
          %v5600 = vadd.f32 %v5210, %v5530
          %v5601 = vadd.f32 %v5212, %v5532
          %v5602 = vadd.f32 %v5214, %v5534
          %v5603 = vadd.f32 %v5216, %v5536
          %v5604 = vadd.f32 %v5218, %v5538
          %v5605 = vadd.f32 %v5220, %v5540
          %v5606 = vadd.f32 %v5222, %v5542
          %v5607 = vlog2.pop %v5575
          %v5608 = vmul.f32 %v5607, 0.6931472
          %v5609 = vlog2.pop %v5576
          %v5610 = vmul.f32 %v5609, 0.6931472
          %v5611 = vlog2.pop %v5577
          %v5612 = vmul.f32 %v5611, 0.6931472
          %v5613 = vlog2.pop %v5578
          %v5614 = vmul.f32 %v5613, 0.6931472
          %v5615 = vlog2.pop %v5579
          %v5616 = vmul.f32 %v5615, 0.6931472
          %v5617 = vlog2.pop %v5580
          %v5618 = vmul.f32 %v5617, 0.6931472
          %v5619 = vlog2.pop %v5581
          %v5620 = vmul.f32 %v5619, 0.6931472
          %v5621 = vlog2.pop %v5582
          %v5622 = vmul.f32 %v5621, 0.6931472
          %v5623 = vlog2.pop %v5583
          %v5624 = vmul.f32 %v5623, 0.6931472
          %v5625 = vlog2.pop %v5584
          %v5626 = vmul.f32 %v5625, 0.6931472
          %v5627 = vlog2.pop %v5585
          %v5628 = vmul.f32 %v5627, 0.6931472
          %v5629 = vlog2.pop %v5586
          %v5630 = vmul.f32 %v5629, 0.6931472
          %v5631 = vlog2.pop %v5587
          %v5632 = vmul.f32 %v5631, 0.6931472
          %v5633 = vlog2.pop %v5588
          %v5634 = vmul.f32 %v5633, 0.6931472
          %v5635 = vlog2.pop %v5589
          %v5636 = vmul.f32 %v5635, 0.6931472
          %v5637 = vlog2.pop %v5590
          %v5638 = vmul.f32 %v5637, 0.6931472
          %v5639 = vlog2.pop %v5591
          %v5640 = vmul.f32 %v5639, 0.6931472
          %v5641 = vlog2.pop %v5592
          %v5642 = vmul.f32 %v5641, 0.6931472
          %v5643 = vlog2.pop %v5593
          %v5644 = vmul.f32 %v5643, 0.6931472
          %v5645 = vlog2.pop %v5594
          %v5646 = vmul.f32 %v5645, 0.6931472
          %v5647 = vlog2.pop %v5595
          %v5648 = vmul.f32 %v5647, 0.6931472
          %v5649 = vlog2.pop %v5596
          %v5650 = vmul.f32 %v5649, 0.6931472
          %v5651 = vlog2.pop %v5597
          %v5652 = vmul.f32 %v5651, 0.6931472
          %v5653 = vlog2.pop %v5598
          %v5654 = vmul.f32 %v5653, 0.6931472
          %v5655 = vlog2.pop %v5599
          %v5656 = vmul.f32 %v5655, 0.6931472
          %v5657 = vlog2.pop %v5600
          %v5658 = vmul.f32 %v5657, 0.6931472
          %v5659 = vlog2.pop %v5601
          %v5660 = vmul.f32 %v5659, 0.6931472
          %v5661 = vlog2.pop %v5602
          %v5662 = vmul.f32 %v5661, 0.6931472
          %v5663 = vlog2.pop %v5603
          %v5664 = vmul.f32 %v5663, 0.6931472
          %v5665 = vlog2.pop %v5604
          %v5666 = vmul.f32 %v5665, 0.6931472
          %v5667 = vlog2.pop %v5605
          %v5668 = vmul.f32 %v5667, 0.6931472
          %v5669 = vlog2.pop %v5606
          %v5670 = vmul.f32 %v5669, 0.6931472
          %v5671 = vadd.f32 %v5095, %v5608
          %v5672 = vadd.f32 %v5096, %v5610
          %v5673 = vadd.f32 %v5097, %v5612
          %v5674 = vadd.f32 %v5098, %v5614
          %v5675 = vadd.f32 %v5099, %v5616
          %v5676 = vadd.f32 %v5100, %v5618
          %v5677 = vadd.f32 %v5101, %v5620
          %v5678 = vadd.f32 %v5102, %v5622
          %v5679 = vadd.f32 %v5103, %v5624
          %v5680 = vadd.f32 %v5104, %v5626
          %v5681 = vadd.f32 %v5105, %v5628
          %v5682 = vadd.f32 %v5106, %v5630
          %v5683 = vadd.f32 %v5107, %v5632
          %v5684 = vadd.f32 %v5108, %v5634
          %v5685 = vadd.f32 %v5109, %v5636
          %v5686 = vadd.f32 %v5110, %v5638
          %v5687 = vadd.f32 %v5111, %v5640
          %v5688 = vadd.f32 %v5112, %v5642
          %v5689 = vadd.f32 %v5113, %v5644
          %v5690 = vadd.f32 %v5114, %v5646
          %v5691 = vadd.f32 %v5115, %v5648
          %v5692 = vadd.f32 %v5116, %v5650
          %v5693 = vadd.f32 %v5117, %v5652
          %v5694 = vadd.f32 %v5118, %v5654
          %v5695 = vadd.f32 %v5119, %v5656
          %v5696 = vadd.f32 %v5120, %v5658
          %v5697 = vadd.f32 %v5121, %v5660
          %v5698 = vadd.f32 %v5122, %v5662
          %v5699 = vadd.f32 %v5123, %v5664
          %v5700 = vadd.f32 %v5124, %v5666
          %v5701 = vadd.f32 %v5125, %v5668
          %v5702 = vadd.f32 %v5126, %v5670
          %vm5703 = vcmp.eq.s32.totalorder %v595, 1
          %vm5704 = vcmp.eq.s32.totalorder %v596, 1
          %vm5705 = vcmp.eq.s32.totalorder %v597, 1
          %vm5706 = vcmp.eq.s32.totalorder %v598, 1
          %vm5707 = vcmp.eq.s32.totalorder %v599, 1
          %vm5708 = vcmp.eq.s32.totalorder %v600, 1
          %vm5709 = vcmp.eq.s32.totalorder %v601, 1
          %vm5710 = vcmp.eq.s32.totalorder %v602, 1
          %vm5711 = vcmp.eq.s32.totalorder %v603, 1
          %vm5712 = vcmp.eq.s32.totalorder %v604, 1
          %vm5713 = vcmp.eq.s32.totalorder %v605, 1
          %vm5714 = vcmp.eq.s32.totalorder %v606, 1
          %vm5715 = vcmp.eq.s32.totalorder %v607, 1
          %vm5716 = vcmp.eq.s32.totalorder %v608, 1
          %vm5717 = vcmp.eq.s32.totalorder %v609, 1
          %vm5718 = vcmp.eq.s32.totalorder %v610, 1
          %vm5719 = vcmp.eq.s32.totalorder %v611, 1
          %vm5720 = vcmp.eq.s32.totalorder %v612, 1
          %vm5721 = vcmp.eq.s32.totalorder %v613, 1
          %vm5722 = vcmp.eq.s32.totalorder %v614, 1
          %vm5723 = vcmp.eq.s32.totalorder %v615, 1
          %vm5724 = vcmp.eq.s32.totalorder %v616, 1
          %vm5725 = vcmp.eq.s32.totalorder %v617, 1
          %vm5726 = vcmp.eq.s32.totalorder %v618, 1
          %vm5727 = vcmp.eq.s32.totalorder %v619, 1
          %vm5728 = vcmp.eq.s32.totalorder %v620, 1
          %vm5729 = vcmp.eq.s32.totalorder %v621, 1
          %vm5730 = vcmp.eq.s32.totalorder %v622, 1
          %vm5731 = vcmp.eq.s32.totalorder %v623, 1
          %vm5732 = vcmp.eq.s32.totalorder %v624, 1
          %vm5733 = vcmp.eq.s32.totalorder %v625, 1
          %vm5734 = vcmp.eq.s32.totalorder %v626, 1
          %5735 = vrot.lane.b32.xlu0 %v4549, 99
          %v5736 = vpop.permute.xlu0 %5735
          %5737 = vrot.lane.b32.xlu0 %v4550, 99
          %v5738 = vpop.permute.xlu0 %5737
          %5739 = vrot.lane.b32.xlu0 %v4551, 99
          %v5740 = vpop.permute.xlu0 %5739
          %5741 = vrot.lane.b32.xlu0 %v4552, 99
          %v5742 = vpop.permute.xlu0 %5741
          %5743 = vrot.lane.b32.xlu0 %v4553, 99
          %v5744 = vpop.permute.xlu0 %5743
          %5745 = vrot.lane.b32.xlu0 %v4554, 99
          %v5746 = vpop.permute.xlu0 %5745
          %5747 = vrot.lane.b32.xlu0 %v4555, 99
          %v5748 = vpop.permute.xlu0 %5747
          %5749 = vrot.lane.b32.xlu0 %v4556, 99
          %v5750 = vpop.permute.xlu0 %5749
          %5751 = vrot.lane.b32.xlu0 %v4557, 99
          %v5752 = vpop.permute.xlu0 %5751
          %5753 = vrot.lane.b32.xlu0 %v4558, 99
          %v5754 = vpop.permute.xlu0 %5753
          %5755 = vrot.lane.b32.xlu0 %v4559, 99
          %v5756 = vpop.permute.xlu0 %5755
          %5757 = vrot.lane.b32.xlu0 %v4560, 99
          %v5758 = vpop.permute.xlu0 %5757
          %5759 = vrot.lane.b32.xlu0 %v4561, 99
          %v5760 = vpop.permute.xlu0 %5759
          %5761 = vrot.lane.b32.xlu0 %v4562, 99
          %v5762 = vpop.permute.xlu0 %5761
          %5763 = vrot.lane.b32.xlu0 %v4563, 99
          %v5764 = vpop.permute.xlu0 %5763
          %5765 = vrot.lane.b32.xlu0 %v4564, 99
          %v5766 = vpop.permute.xlu0 %5765
          %5767 = vrot.lane.b32.xlu0 %v4565, 99
          %v5768 = vpop.permute.xlu0 %5767
          %5769 = vrot.lane.b32.xlu0 %v4566, 99
          %v5770 = vpop.permute.xlu0 %5769
          %5771 = vrot.lane.b32.xlu0 %v4567, 99
          %v5772 = vpop.permute.xlu0 %5771
          %5773 = vrot.lane.b32.xlu0 %v4568, 99
          %v5774 = vpop.permute.xlu0 %5773
          %5775 = vrot.lane.b32.xlu0 %v4569, 99
          %v5776 = vpop.permute.xlu0 %5775
          %5777 = vrot.lane.b32.xlu0 %v4570, 99
          %v5778 = vpop.permute.xlu0 %5777
          %5779 = vrot.lane.b32.xlu0 %v4571, 99
          %v5780 = vpop.permute.xlu0 %5779
          %5781 = vrot.lane.b32.xlu0 %v4572, 99
          %v5782 = vpop.permute.xlu0 %5781
          %5783 = vrot.lane.b32.xlu0 %v4573, 99
          %v5784 = vpop.permute.xlu0 %5783
          %5785 = vrot.lane.b32.xlu0 %v4574, 99
          %v5786 = vpop.permute.xlu0 %5785
          %5787 = vrot.lane.b32.xlu0 %v4575, 99
          %v5788 = vpop.permute.xlu0 %5787
          %5789 = vrot.lane.b32.xlu0 %v4576, 99
          %v5790 = vpop.permute.xlu0 %5789
          %5791 = vrot.lane.b32.xlu0 %v4577, 99
          %v5792 = vpop.permute.xlu0 %5791
          %5793 = vrot.lane.b32.xlu0 %v4578, 99
          %v5794 = vpop.permute.xlu0 %5793
          %5795 = vrot.lane.b32.xlu0 %v4579, 99
          %v5796 = vpop.permute.xlu0 %5795
          %5797 = vrot.lane.b32.xlu0 %v4580, 99
          %v5798 = vpop.permute.xlu0 %5797
          %5831 = vrot.lane.b32.xlu0 %v4069, 100
          %v5832 = vpop.permute.xlu0 %5831
          %5833 = vrot.lane.b32.xlu0 %v4070, 100
          %v5834 = vpop.permute.xlu0 %5833
          %5835 = vrot.lane.b32.xlu0 %v4071, 100
          %v5836 = vpop.permute.xlu0 %5835
          %5837 = vrot.lane.b32.xlu0 %v4072, 100
          %v5838 = vpop.permute.xlu0 %5837
          %5839 = vrot.lane.b32.xlu0 %v4073, 100
          %v5840 = vpop.permute.xlu0 %5839
          %5841 = vrot.lane.b32.xlu0 %v4074, 100
          %v5842 = vpop.permute.xlu0 %5841
          %5843 = vrot.lane.b32.xlu0 %v4075, 100
          %v5844 = vpop.permute.xlu0 %5843
          %5845 = vrot.lane.b32.xlu0 %v4076, 100
          %v5846 = vpop.permute.xlu0 %5845
          %5847 = vrot.lane.b32.xlu0 %v4077, 100
          %v5848 = vpop.permute.xlu0 %5847
          %5849 = vrot.lane.b32.xlu0 %v4078, 100
          %v5850 = vpop.permute.xlu0 %5849
          %5851 = vrot.lane.b32.xlu0 %v4079, 100
          %v5852 = vpop.permute.xlu0 %5851
          %5853 = vrot.lane.b32.xlu0 %v4080, 100
          %v5854 = vpop.permute.xlu0 %5853
          %5855 = vrot.lane.b32.xlu0 %v4081, 100
          %v5856 = vpop.permute.xlu0 %5855
          %5857 = vrot.lane.b32.xlu0 %v4082, 100
          %v5858 = vpop.permute.xlu0 %5857
          %5859 = vrot.lane.b32.xlu0 %v4083, 100
          %v5860 = vpop.permute.xlu0 %5859
          %5861 = vrot.lane.b32.xlu0 %v4084, 100
          %v5862 = vpop.permute.xlu0 %5861
          %5863 = vrot.lane.b32.xlu0 %v4085, 100
          %v5864 = vpop.permute.xlu0 %5863
          %5865 = vrot.lane.b32.xlu0 %v4086, 100
          %v5866 = vpop.permute.xlu0 %5865
          %5867 = vrot.lane.b32.xlu0 %v4087, 100
          %v5868 = vpop.permute.xlu0 %5867
          %5869 = vrot.lane.b32.xlu0 %v4088, 100
          %v5870 = vpop.permute.xlu0 %5869
          %5871 = vrot.lane.b32.xlu0 %v4089, 100
          %v5872 = vpop.permute.xlu0 %5871
          %5873 = vrot.lane.b32.xlu0 %v4090, 100
          %v5874 = vpop.permute.xlu0 %5873
          %5875 = vrot.lane.b32.xlu0 %v4091, 100
          %v5876 = vpop.permute.xlu0 %5875
          %5877 = vrot.lane.b32.xlu0 %v4092, 100
          %v5878 = vpop.permute.xlu0 %5877
          %5879 = vrot.lane.b32.xlu0 %v4093, 100
          %v5880 = vpop.permute.xlu0 %5879
          %5881 = vrot.lane.b32.xlu0 %v4094, 100
          %v5882 = vpop.permute.xlu0 %5881
          %5883 = vrot.lane.b32.xlu0 %v4095, 100
          %v5884 = vpop.permute.xlu0 %5883
          %5885 = vrot.lane.b32.xlu0 %v4096, 100
          %v5886 = vpop.permute.xlu0 %5885
          %5887 = vrot.lane.b32.xlu0 %v4097, 100
          %v5888 = vpop.permute.xlu0 %5887
          %5889 = vrot.lane.b32.xlu0 %v4098, 100
          %v5890 = vpop.permute.xlu0 %5889
          %5891 = vrot.lane.b32.xlu0 %v4099, 100
          %v5892 = vpop.permute.xlu0 %5891
          %5893 = vrot.lane.b32.xlu0 %v4100, 100
          %v5894 = vpop.permute.xlu0 %5893
          %v5927 = vsel %vm5703, %v5736, %v5832
          %v5928 = vsel %vm5704, %v5738, %v5834
          %v5929 = vsel %vm5705, %v5740, %v5836
          %v5930 = vsel %vm5706, %v5742, %v5838
          %v5931 = vsel %vm5707, %v5744, %v5840
          %v5932 = vsel %vm5708, %v5746, %v5842
          %v5933 = vsel %vm5709, %v5748, %v5844
          %v5934 = vsel %vm5710, %v5750, %v5846
          %v5935 = vsel %vm5711, %v5752, %v5848
          %v5936 = vsel %vm5712, %v5754, %v5850
          %v5937 = vsel %vm5713, %v5756, %v5852
          %v5938 = vsel %vm5714, %v5758, %v5854
          %v5939 = vsel %vm5715, %v5760, %v5856
          %v5940 = vsel %vm5716, %v5762, %v5858
          %v5941 = vsel %vm5717, %v5764, %v5860
          %v5942 = vsel %vm5718, %v5766, %v5862
          %v5943 = vsel %vm5719, %v5768, %v5864
          %v5944 = vsel %vm5720, %v5770, %v5866
          %v5945 = vsel %vm5721, %v5772, %v5868
          %v5946 = vsel %vm5722, %v5774, %v5870
          %v5947 = vsel %vm5723, %v5776, %v5872
          %v5948 = vsel %vm5724, %v5778, %v5874
          %v5949 = vsel %vm5725, %v5780, %v5876
          %v5950 = vsel %vm5726, %v5782, %v5878
          %v5951 = vsel %vm5727, %v5784, %v5880
          %v5952 = vsel %vm5728, %v5786, %v5882
          %v5953 = vsel %vm5729, %v5788, %v5884
          %v5954 = vsel %vm5730, %v5790, %v5886
          %v5955 = vsel %vm5731, %v5792, %v5888
          %v5956 = vsel %vm5732, %v5794, %v5890
          %v5957 = vsel %vm5733, %v5796, %v5892
          %v5958 = vsel %vm5734, %v5798, %v5894
          %5991 = vrot.lane.b32.xlu0 %v5927, 28
          %v5992 = vpop.permute.xlu0 %5991
          %5993 = vrot.lane.b32.xlu0 %v5928, 28
          %v5994 = vpop.permute.xlu0 %5993
          %5995 = vrot.lane.b32.xlu0 %v5929, 28
          %v5996 = vpop.permute.xlu0 %5995
          %5997 = vrot.lane.b32.xlu0 %v5930, 28
          %v5998 = vpop.permute.xlu0 %5997
          %5999 = vrot.lane.b32.xlu0 %v5931, 28
          %v6000 = vpop.permute.xlu0 %5999
          %6001 = vrot.lane.b32.xlu0 %v5932, 28
          %v6002 = vpop.permute.xlu0 %6001
          %6003 = vrot.lane.b32.xlu0 %v5933, 28
          %v6004 = vpop.permute.xlu0 %6003
          %6005 = vrot.lane.b32.xlu0 %v5934, 28
          %v6006 = vpop.permute.xlu0 %6005
          %6007 = vrot.lane.b32.xlu0 %v5935, 28
          %v6008 = vpop.permute.xlu0 %6007
          %6009 = vrot.lane.b32.xlu0 %v5936, 28
          %v6010 = vpop.permute.xlu0 %6009
          %6011 = vrot.lane.b32.xlu0 %v5937, 28
          %v6012 = vpop.permute.xlu0 %6011
          %6013 = vrot.lane.b32.xlu0 %v5938, 28
          %v6014 = vpop.permute.xlu0 %6013
          %6015 = vrot.lane.b32.xlu0 %v5939, 28
          %v6016 = vpop.permute.xlu0 %6015
          %6017 = vrot.lane.b32.xlu0 %v5940, 28
          %v6018 = vpop.permute.xlu0 %6017
          %6019 = vrot.lane.b32.xlu0 %v5941, 28
          %v6020 = vpop.permute.xlu0 %6019
          %6021 = vrot.lane.b32.xlu0 %v5942, 28
          %v6022 = vpop.permute.xlu0 %6021
          %6023 = vrot.lane.b32.xlu0 %v5943, 28
          %v6024 = vpop.permute.xlu0 %6023
          %6025 = vrot.lane.b32.xlu0 %v5944, 28
          %v6026 = vpop.permute.xlu0 %6025
          %6027 = vrot.lane.b32.xlu0 %v5945, 28
          %v6028 = vpop.permute.xlu0 %6027
          %6029 = vrot.lane.b32.xlu0 %v5946, 28
          %v6030 = vpop.permute.xlu0 %6029
          %6031 = vrot.lane.b32.xlu0 %v5947, 28
          %v6032 = vpop.permute.xlu0 %6031
          %6033 = vrot.lane.b32.xlu0 %v5948, 28
          %v6034 = vpop.permute.xlu0 %6033
          %6035 = vrot.lane.b32.xlu0 %v5949, 28
          %v6036 = vpop.permute.xlu0 %6035
          %6037 = vrot.lane.b32.xlu0 %v5950, 28
          %v6038 = vpop.permute.xlu0 %6037
          %6039 = vrot.lane.b32.xlu0 %v5951, 28
          %v6040 = vpop.permute.xlu0 %6039
          %6041 = vrot.lane.b32.xlu0 %v5952, 28
          %v6042 = vpop.permute.xlu0 %6041
          %6043 = vrot.lane.b32.xlu0 %v5953, 28
          %v6044 = vpop.permute.xlu0 %6043
          %6045 = vrot.lane.b32.xlu0 %v5954, 28
          %v6046 = vpop.permute.xlu0 %6045
          %6047 = vrot.lane.b32.xlu0 %v5955, 28
          %v6048 = vpop.permute.xlu0 %6047
          %6049 = vrot.lane.b32.xlu0 %v5956, 28
          %v6050 = vpop.permute.xlu0 %6049
          %6051 = vrot.lane.b32.xlu0 %v5957, 28
          %v6052 = vpop.permute.xlu0 %6051
          %6053 = vrot.lane.b32.xlu0 %v5958, 28
          %v6054 = vpop.permute.xlu0 %6053
          %v6087 = vsub.f32 %v5671, %v5992
          %v6088 = vsub.f32 %v5672, %v5994
          %v6089 = vsub.f32 %v5673, %v5996
          %v6090 = vsub.f32 %v5674, %v5998
          %v6091 = vsub.f32 %v5675, %v6000
          %v6092 = vsub.f32 %v5676, %v6002
          %v6093 = vsub.f32 %v5677, %v6004
          %v6094 = vsub.f32 %v5678, %v6006
          %v6095 = vsub.f32 %v5679, %v6008
          %v6096 = vsub.f32 %v5680, %v6010
          %v6097 = vsub.f32 %v5681, %v6012
          %v6098 = vsub.f32 %v5682, %v6014
          %v6099 = vsub.f32 %v5683, %v6016
          %v6100 = vsub.f32 %v5684, %v6018
          %v6101 = vsub.f32 %v5685, %v6020
          %v6102 = vsub.f32 %v5686, %v6022
          %v6103 = vsub.f32 %v5687, %v6024
          %v6104 = vsub.f32 %v5688, %v6026
          %v6105 = vsub.f32 %v5689, %v6028
          %v6106 = vsub.f32 %v5690, %v6030
          %v6107 = vsub.f32 %v5691, %v6032
          %v6108 = vsub.f32 %v5692, %v6034
          %v6109 = vsub.f32 %v5693, %v6036
          %v6110 = vsub.f32 %v5694, %v6038
          %v6111 = vsub.f32 %v5695, %v6040
          %v6112 = vsub.f32 %v5696, %v6042
          %v6113 = vsub.f32 %v5697, %v6044
          %v6114 = vsub.f32 %v5698, %v6046
          %v6115 = vsub.f32 %v5699, %v6048
          %v6116 = vsub.f32 %v5700, %v6050
          %v6117 = vsub.f32 %v5701, %v6052
          %v6118 = vsub.f32 %v5702, %v6054
          %v6119 = vlaneseq
          %v6120 = vshrl.u32 %v6119, 7
          %v6121 = vadd.s32 %v6120, 8
          %v6122 = vadd.s32 %v6120, 16
          %v6123 = vadd.s32 %v6120, 24
          %v6124 = vadd.s32 %v6120, 32
          %v6125 = vadd.s32 %v6120, 40
          %v6126 = vadd.s32 %v6120, 48
          %v6127 = vadd.s32 %v6120, 56
          %v6128 = vadd.s32 %v6120, 64
          %v6129 = vadd.s32 %v6120, 72
          %v6130 = vadd.s32 %v6120, 80
          %v6131 = vadd.s32 %v6120, 88
          %v6132 = vadd.s32 %v6120, 96
          %v6133 = vadd.s32 %v6120, 104
          %v6134 = vadd.s32 %v6120, 112
          %v6135 = vadd.s32 %v6120, 120
          %v6136 = vadd.s32 %v6120, 128
          %v6137 = vadd.s32 %v6120, 136
          %v6138 = vadd.s32 %v6120, 144
          %v6139 = vadd.s32 %v6120, 152
          %v6140 = vadd.s32 %v6120, 160
          %v6141 = vadd.s32 %v6120, 168
          %v6142 = vadd.s32 %v6120, 176
          %v6143 = vadd.s32 %v6120, 184
          %v6144 = vadd.s32 %v6120, 192
          %v6145 = vadd.s32 %v6120, 200
          %v6146 = vadd.s32 %v6120, 208
          %v6147 = vadd.s32 %v6120, 216
          %v6148 = vadd.s32 %v6120, 224
          %v6149 = vadd.s32 %v6120, 232
          %v6150 = vadd.s32 %v6120, 240
          %v6151 = vadd.s32 %v6120, 248
          %v6152 = vstv %s590
          %v6153 = vadd.s32 %v6152, %v6120
          %v6154 = vadd.s32 %v6152, %v6121
          %v6155 = vadd.s32 %v6152, %v6122
          %v6156 = vadd.s32 %v6152, %v6123
          %v6157 = vadd.s32 %v6152, %v6124
          %v6158 = vadd.s32 %v6152, %v6125
          %v6159 = vadd.s32 %v6152, %v6126
          %v6160 = vadd.s32 %v6152, %v6127
          %v6161 = vadd.s32 %v6152, %v6128
          %v6162 = vadd.s32 %v6152, %v6129
          %v6163 = vadd.s32 %v6152, %v6130
          %v6164 = vadd.s32 %v6152, %v6131
          %v6165 = vadd.s32 %v6152, %v6132
          %v6166 = vadd.s32 %v6152, %v6133
          %v6167 = vadd.s32 %v6152, %v6134
          %v6168 = vadd.s32 %v6152, %v6135
          %v6169 = vadd.s32 %v6152, %v6136
          %v6170 = vadd.s32 %v6152, %v6137
          %v6171 = vadd.s32 %v6152, %v6138
          %v6172 = vadd.s32 %v6152, %v6139
          %v6173 = vadd.s32 %v6152, %v6140
          %v6174 = vadd.s32 %v6152, %v6141
          %v6175 = vadd.s32 %v6152, %v6142
          %v6176 = vadd.s32 %v6152, %v6143
          %v6177 = vadd.s32 %v6152, %v6144
          %v6178 = vadd.s32 %v6152, %v6145
          %v6179 = vadd.s32 %v6152, %v6146
          %v6180 = vadd.s32 %v6152, %v6147
          %v6181 = vadd.s32 %v6152, %v6148
          %v6182 = vadd.s32 %v6152, %v6149
          %v6183 = vadd.s32 %v6152, %v6150
          %v6184 = vadd.s32 %v6152, %v6151
          %v6185 = vstv %s589
          %vm6186 = vcmp.lt.s32.totalorder %v6153, %v6185
          %vm6187 = vcmp.lt.s32.totalorder %v6154, %v6185
          %vm6188 = vcmp.lt.s32.totalorder %v6155, %v6185
          %vm6189 = vcmp.lt.s32.totalorder %v6156, %v6185
          %vm6190 = vcmp.lt.s32.totalorder %v6157, %v6185
          %vm6191 = vcmp.lt.s32.totalorder %v6158, %v6185
          %vm6192 = vcmp.lt.s32.totalorder %v6159, %v6185
          %vm6193 = vcmp.lt.s32.totalorder %v6160, %v6185
          %vm6194 = vcmp.lt.s32.totalorder %v6161, %v6185
          %vm6195 = vcmp.lt.s32.totalorder %v6162, %v6185
          %vm6196 = vcmp.lt.s32.totalorder %v6163, %v6185
          %vm6197 = vcmp.lt.s32.totalorder %v6164, %v6185
          %vm6198 = vcmp.lt.s32.totalorder %v6165, %v6185
          %vm6199 = vcmp.lt.s32.totalorder %v6166, %v6185
          %vm6200 = vcmp.lt.s32.totalorder %v6167, %v6185
          %vm6201 = vcmp.lt.s32.totalorder %v6168, %v6185
          %vm6202 = vcmp.lt.s32.totalorder %v6169, %v6185
          %vm6203 = vcmp.lt.s32.totalorder %v6170, %v6185
          %vm6204 = vcmp.lt.s32.totalorder %v6171, %v6185
          %vm6205 = vcmp.lt.s32.totalorder %v6172, %v6185
          %vm6206 = vcmp.lt.s32.totalorder %v6173, %v6185
          %vm6207 = vcmp.lt.s32.totalorder %v6174, %v6185
          %vm6208 = vcmp.lt.s32.totalorder %v6175, %v6185
          %vm6209 = vcmp.lt.s32.totalorder %v6176, %v6185
          %vm6210 = vcmp.lt.s32.totalorder %v6177, %v6185
          %vm6211 = vcmp.lt.s32.totalorder %v6178, %v6185
          %vm6212 = vcmp.lt.s32.totalorder %v6179, %v6185
          %vm6213 = vcmp.lt.s32.totalorder %v6180, %v6185
          %vm6214 = vcmp.lt.s32.totalorder %v6181, %v6185
          %vm6215 = vcmp.lt.s32.totalorder %v6182, %v6185
          %vm6216 = vcmp.lt.s32.totalorder %v6183, %v6185
          %vm6217 = vcmp.lt.s32.totalorder %v6184, %v6185
          %p6218 = scmp.gt.s32.totalorder %s589, 1
          %s6219 = scalar_select %p6218, %s589, 1
          %s6220 = scvt.s32.f32 %s6219
          %v6221 = vstv %s6220
          %v6222 = vrcp.pop %v6221
          %s6223 = vtos %v6222
          %v6224 = vstv %s6223
          %v6225 = vmul.f32 %v6087, %v6224
          %v6226 = vmul.f32 %v6088, %v6224
          %v6227 = vmul.f32 %v6089, %v6224
          %v6228 = vmul.f32 %v6090, %v6224
          %v6229 = vmul.f32 %v6091, %v6224
          %v6230 = vmul.f32 %v6092, %v6224
          %v6231 = vmul.f32 %v6093, %v6224
          %v6232 = vmul.f32 %v6094, %v6224
          %v6233 = vmul.f32 %v6095, %v6224
          %v6234 = vmul.f32 %v6096, %v6224
          %v6235 = vmul.f32 %v6097, %v6224
          %v6236 = vmul.f32 %v6098, %v6224
          %v6237 = vmul.f32 %v6099, %v6224
          %v6238 = vmul.f32 %v6100, %v6224
          %v6239 = vmul.f32 %v6101, %v6224
          %v6240 = vmul.f32 %v6102, %v6224
          %v6241 = vmul.f32 %v6103, %v6224
          %v6242 = vmul.f32 %v6104, %v6224
          %v6243 = vmul.f32 %v6105, %v6224
          %v6244 = vmul.f32 %v6106, %v6224
          %v6245 = vmul.f32 %v6107, %v6224
          %v6246 = vmul.f32 %v6108, %v6224
          %v6247 = vmul.f32 %v6109, %v6224
          %v6248 = vmul.f32 %v6110, %v6224
          %v6249 = vmul.f32 %v6111, %v6224
          %v6250 = vmul.f32 %v6112, %v6224
          %v6251 = vmul.f32 %v6113, %v6224
          %v6252 = vmul.f32 %v6114, %v6224
          %v6253 = vmul.f32 %v6115, %v6224
          %v6254 = vmul.f32 %v6116, %v6224
          %v6255 = vmul.f32 %v6117, %v6224
          %v6256 = vmul.f32 %v6118, %v6224
          %v6257 = vsel %vm6186, %v6225, 0.0
          %v6258 = vsel %vm6187, %v6226, 0.0
          %v6259 = vsel %vm6188, %v6227, 0.0
          %v6260 = vsel %vm6189, %v6228, 0.0
          %v6261 = vsel %vm6190, %v6229, 0.0
          %v6262 = vsel %vm6191, %v6230, 0.0
          %v6263 = vsel %vm6192, %v6231, 0.0
          %v6264 = vsel %vm6193, %v6232, 0.0
          %v6265 = vsel %vm6194, %v6233, 0.0
          %v6266 = vsel %vm6195, %v6234, 0.0
          %v6267 = vsel %vm6196, %v6235, 0.0
          %v6268 = vsel %vm6197, %v6236, 0.0
          %v6269 = vsel %vm6198, %v6237, 0.0
          %v6270 = vsel %vm6199, %v6238, 0.0
          %v6271 = vsel %vm6200, %v6239, 0.0
          %v6272 = vsel %vm6201, %v6240, 0.0
          %v6273 = vsel %vm6202, %v6241, 0.0
          %v6274 = vsel %vm6203, %v6242, 0.0
          %v6275 = vsel %vm6204, %v6243, 0.0
          %v6276 = vsel %vm6205, %v6244, 0.0
          %v6277 = vsel %vm6206, %v6245, 0.0
          %v6278 = vsel %vm6207, %v6246, 0.0
          %v6279 = vsel %vm6208, %v6247, 0.0
          %v6280 = vsel %vm6209, %v6248, 0.0
          %v6281 = vsel %vm6210, %v6249, 0.0
          %v6282 = vsel %vm6211, %v6250, 0.0
          %v6283 = vsel %vm6212, %v6251, 0.0
          %v6284 = vsel %vm6213, %v6252, 0.0
          %v6285 = vsel %vm6214, %v6253, 0.0
          %v6286 = vsel %vm6215, %v6254, 0.0
          %v6287 = vsel %vm6216, %v6255, 0.0
          %v6288 = vsel %vm6217, %v6256, 0.0
          %vm6289 = vcmask 269568
          %v6290 = vsel %vm6289, %v6257, 0.0
          %v6291 = vsel %vm6289, %v6258, 0.0
          %v6292 = vadd.f32 %v6290, %v6291
          %v6293 = vsel %vm6289, %v6259, 0.0
          %v6294 = vadd.f32 %v6292, %v6293
          %v6295 = vsel %vm6289, %v6260, 0.0
          %v6296 = vadd.f32 %v6294, %v6295
          %v6297 = vsel %vm6289, %v6261, 0.0
          %v6298 = vadd.f32 %v6296, %v6297
          %v6299 = vsel %vm6289, %v6262, 0.0
          %v6300 = vadd.f32 %v6298, %v6299
          %v6301 = vsel %vm6289, %v6263, 0.0
          %v6302 = vadd.f32 %v6300, %v6301
          %v6303 = vsel %vm6289, %v6264, 0.0
          %v6304 = vadd.f32 %v6302, %v6303
          %v6305 = vsel %vm6289, %v6265, 0.0
          %v6306 = vadd.f32 %v6304, %v6305
          %v6307 = vsel %vm6289, %v6266, 0.0
          %v6308 = vadd.f32 %v6306, %v6307
          %v6309 = vsel %vm6289, %v6267, 0.0
          %v6310 = vadd.f32 %v6308, %v6309
          %v6311 = vsel %vm6289, %v6268, 0.0
          %v6312 = vadd.f32 %v6310, %v6311
          %v6313 = vsel %vm6289, %v6269, 0.0
          %v6314 = vadd.f32 %v6312, %v6313
          %v6315 = vsel %vm6289, %v6270, 0.0
          %v6316 = vadd.f32 %v6314, %v6315
          %v6317 = vsel %vm6289, %v6271, 0.0
          %v6318 = vadd.f32 %v6316, %v6317
          %v6319 = vsel %vm6289, %v6272, 0.0
          %v6320 = vadd.f32 %v6318, %v6319
          %v6321 = vsel %vm6289, %v6273, 0.0
          %v6322 = vadd.f32 %v6320, %v6321
          %v6323 = vsel %vm6289, %v6274, 0.0
          %v6324 = vadd.f32 %v6322, %v6323
          %v6325 = vsel %vm6289, %v6275, 0.0
          %v6326 = vadd.f32 %v6324, %v6325
          %v6327 = vsel %vm6289, %v6276, 0.0
          %v6328 = vadd.f32 %v6326, %v6327
          %v6329 = vsel %vm6289, %v6277, 0.0
          %v6330 = vadd.f32 %v6328, %v6329
          %v6331 = vsel %vm6289, %v6278, 0.0
          %v6332 = vadd.f32 %v6330, %v6331
          %v6333 = vsel %vm6289, %v6279, 0.0
          %v6334 = vadd.f32 %v6332, %v6333
          %v6335 = vsel %vm6289, %v6280, 0.0
          %v6336 = vadd.f32 %v6334, %v6335
          %v6337 = vsel %vm6289, %v6281, 0.0
          %v6338 = vadd.f32 %v6336, %v6337
          %v6339 = vsel %vm6289, %v6282, 0.0
          %v6340 = vadd.f32 %v6338, %v6339
          %v6341 = vsel %vm6289, %v6283, 0.0
          %v6342 = vadd.f32 %v6340, %v6341
          %v6343 = vsel %vm6289, %v6284, 0.0
          %v6344 = vadd.f32 %v6342, %v6343
          %v6345 = vsel %vm6289, %v6285, 0.0
          %v6346 = vadd.f32 %v6344, %v6345
          %v6347 = vsel %vm6289, %v6286, 0.0
          %v6348 = vadd.f32 %v6346, %v6347
          %v6349 = vsel %vm6289, %v6287, 0.0
          %v6350 = vadd.f32 %v6348, %v6349
          %v6351 = vsel %vm6289, %v6288, 0.0
          %v6352 = vadd.f32 %v6350, %v6351
          %v6353 = vrot.slane %v6352, 4
          %v6354 = vadd.f32 %v6352, %v6353
          %v6355 = vrot.slane %v6354, 2
          %v6356 = vadd.f32 %v6354, %v6355
          %v6357 = vrot.slane %v6356, 1
          %v6358 = vadd.f32 %v6356, %v6357
          %6360 = vset.pattern.permute.xlu0 32
          %6361 = vperm.xlu0 %6360, %v6358
          %v6362 = vpop.permute.xlu0 %6361
          %v6364 = vadd.f32 %v6362, 0.0
          %6365 = vst [vmem:[%s572] sm:$0xff] %v6364
        $region84: #{tpu_custom_call.1} parent=79 // pred_fallthru
          _
        %p6366 = scmp.ge.s32.totalorder %s590, %s589
        // Predicated region
        $region85: #{tpu_custom_call.1} parent=79 // pred_check
          %p6367 = pneg %p6366
        $region86: #{tpu_custom_call.1} parent=79 // pred_check_branch
          %6369 = sbr.rel (%p6367) target = $region88
        $region87: #{tpu_custom_call.1} parent=79 // pred_region
          %6370 = vst [vmem:[%s572] sm:$0xff] 0.0
        $region88: #{tpu_custom_call.1} parent=79 // pred_fallthru
          _
        %s6371 = sand.u32 %s390, 1
        %s6372 = scalar_lea.sflag [#allocation5], %s6371
        %s6373 = sand.u32 %s390, 1
        %s6374 = smul.addr %s6373, 256
        %s6375 = scalar_lea.vmem [#allocation4], %s6374
        %s6376 = sand.u32 %s418, 1
        %s6377 = scalar_lea.sflag [#allocation7], %s6376
        %s6378 = sand.u32 %s418, 1
        %s6379 = smul.addr %s6378, 8
        %s6380 = scalar_lea.vmem [#allocation6], %s6379
        // Predicated region
        $region89: #{tpu_custom_call.1} parent=79 // pred_check
          %p6381 = pneg %p400
        $region90: #{tpu_custom_call.1} parent=79 // pred_check_branch
          %6383 = sbr.rel (%p6381) target = $region92
        $region91: #{tpu_custom_call.1} parent=79 // pred_region
          %s6384 = smul.u32 32, %s46
          %s6386 = ssub.s32 4096, 4096
          %6387 = vsyncadd %s6372, %s6386
          %s6388 = smul.addr %s45, 32
          %s6389 = sadd.s32 %s6384, %s6388
          %s6390 = smul.addr %s6389, 128
          %s6391 = scalar_lea.hbm %s16, %s6390
          %s6392 = sshll.u32 %s6375, 4
          %s6393 = int_to_ptr.vmem [resolvable:$true] %s6392
          %6398 = dma.vmem_to_hbm [thread:$0]  %s6393, 4096, %s6391, %s6372, 128, 128, 8
        $region92: #{tpu_custom_call.1} parent=79 // pred_fallthru
          _
        // Predicated region
        $region93: #{tpu_custom_call.1} parent=79 // pred_check
          %p6399 = pneg %p428
        $region94: #{tpu_custom_call.1} parent=79 // pred_check_branch
          %6401 = sbr.rel (%p6399) target = $region96
        $region95: #{tpu_custom_call.1} parent=79 // pred_region
          %s6403 = ssub.s32 128, 128
          %6404 = vsyncadd %s6377, %s6403
          %s6405 = sadd.s32 %s46, %s45
          %s6406 = smul.addr %s6405, 128
          %s6407 = scalar_lea.hbm %s17, %s6406
          %s6409 = sshll.u32 %s6380, 4
          %s6410 = int_to_ptr.vmem [resolvable:$true] %s6409
          %6412 = dma.vmem_to_hbm [thread:$0]  %s6410, 128, %s6407, %s6377
        $region96: #{tpu_custom_call.1} parent=79 // pred_fallthru
          _
      $region80: #{tpu_custom_call.1} parent=5 // pred_fallthru
        _
      %p6413 = scmp.le.s32.totalorder 2, %s36
      // Predicated region
      $region97: #{tpu_custom_call.1} parent=5 // pred_check
        %p6414 = pneg %p6413
      $region98: #{tpu_custom_call.1} parent=5 // pred_check_branch
        %6416 = sbr.rel (%p6414) target = $region100
      $region99: #{tpu_custom_call.1} parent=5 // pred_region
        %s6417 = ssub.s32 %s36, 2
        // Predicated region
        $region101: #{tpu_custom_call.1} parent=99 // pred_check
          %p6418 = pneg %p406
        $region102: #{tpu_custom_call.1} parent=99 // pred_check_branch
          %6420 = sbr.rel (%p6418) target = $region104
        $region103: #{tpu_custom_call.1} parent=99 // pred_region
          %s6421 = sand.u32 %s391, 1
          %s6422 = scalar_lea.sflag [#allocation5], %s6421
          %s6423 = sand.u32 %s391, 1
          %s6424 = smul.addr %s6423, 256
          %s6425 = scalar_lea.vmem [#allocation4], %s6424
          %6426 = dma.done %s6422, 4096
        $region104: #{tpu_custom_call.1} parent=99 // pred_fallthru
          _
        // Predicated region
        $region105: #{tpu_custom_call.1} parent=99 // pred_check
          %p6427 = pneg %p434
        $region106: #{tpu_custom_call.1} parent=99 // pred_check_branch
          %6429 = sbr.rel (%p6427) target = $region108
        $region107: #{tpu_custom_call.1} parent=99 // pred_region
          %s6430 = sand.u32 %s419, 1
          %s6431 = scalar_lea.sflag [#allocation7], %s6430
          %s6432 = sand.u32 %s419, 1
          %s6433 = smul.addr %s6432, 8
          %s6434 = scalar_lea.vmem [#allocation6], %s6433
          %6435 = dma.done %s6431, 128
        $region108: #{tpu_custom_call.1} parent=99 // pred_fallthru
          _
      $region100: #{tpu_custom_call.1} parent=5 // pred_fallthru
        _
    $region6: #{tpu_custom_call.1} parent=1 // loop_footer
      %s40 = sadd.s32 1, %s36
    $region7: #{tpu_custom_call.1} parent=1 // loop_footer_branch
      %35 = sbr.rel target = $region3
    $region8: #{tpu_custom_call.1} parent=1 // loop_exit
      _
    %6436 = vsyncpa [#allocation5], 1
    %s6437 = scalar_lea.sflag [#allocation5], 1
    %6438 = vsyncpa %s6437, 1
    %6439 = vsyncpa [#allocation7], 1
    %s6440 = scalar_lea.sflag [#allocation7], 1
    %6441 = vsyncpa %s6440, 1

</llo_original>
